<compile_context>
chip_gen: v7x
topology: tpu7x:2x2x1
jax: 0.10.0
libtpu: 0.0.40
codegen_flags: <defaults>
</compile_context>

<pallas_src>
import jax
import jax.numpy as jnp
from jax.experimental import pallas as pl
from jax.experimental.pallas import tpu as pltpu


def _round_up(n: int, m: int) -> int:
    return ((n + m - 1) // m) * m


def _mlp_kernel(xt_ref, w1_ref, b1_ref, w2_ref, b2_ref, w3_ref, b3_ref, o_ref):
    # Layer 1: Linear(feature, hidden) + ReLU   (Dropout = identity, eval)
    #   (H, F_pad) f32 @ (F_pad, TB) f32 -> (H, TB) f32
    h1 = jnp.dot(w1_ref[...], xt_ref[...], preferred_element_type=jnp.float32)
    h1 = jnp.maximum(h1 + b1_ref[...], 0.0)

    # Layer 2: Linear(hidden, hidden) + ReLU    (Dropout = identity, eval)
    #   bf16 x bf16 MXU matmul, f32 accumulation.
    h2 = jnp.dot(w2_ref[...], h1.astype(jnp.bfloat16),
                 preferred_element_type=jnp.float32)
    h2 = jnp.maximum(h2 + b2_ref[...], 0.0)

    # Layer 3: Linear(hidden, 1) as VPU multiply + sublane (XLU) reduction.
    # Produces a lane-dense (1, TB) row instead of a masked (TB, 1) column,
    # and keeps the N=1 matmul off the MXU critical path.
    out = jnp.sum(h2 * w3_ref[...], axis=0, keepdims=True)       # (1, TB) f32
    o_ref[...] = out + b3_ref[0, 0]


@jax.jit
def mlp_forward(x, w1, b1, w2, b2, w3, b3):
    """Forward pass.  Params are in PyTorch nn.Linear layout:
       w1 (H, F), b1 (H,), w2 (H, H), b2 (H,), w3 (1, H), b3 (1,)."""
    B, F = x.shape
    H = w1.shape[0]

    F_pad = _round_up(F, 8)                     # pad feature dim to a sublane tile
    tb = min(256, _round_up(max(B, 1), 128))    # batch tile (lanes): 128..256
    b_pad = _round_up(B, tb)
    grid = (b_pad // tb,)

    # Feature-major, zero-padded input; padded cols/rows contribute zeros.
    xt = jnp.zeros((F_pad, b_pad), jnp.float32).at[:F, :B].set(x.T)
    w1p = jnp.zeros((H, F_pad), jnp.float32).at[:, :F].set(w1.astype(jnp.float32))
    w2b = w2.astype(jnp.bfloat16)               # dominant HBM traffic -> bf16
    b1c = b1.reshape(H, 1).astype(jnp.float32)
    b2c = b2.reshape(H, 1).astype(jnp.float32)
    w3c = w3.reshape(H, 1).astype(jnp.float32)  # (1, H) -> (H, 1) column
    b3c = b3.reshape(1, 1).astype(jnp.float32)  # scalar -> SMEM

    out = pl.pallas_call(
        _mlp_kernel,
        out_shape=jax.ShapeDtypeStruct((1, b_pad), jnp.float32),
        grid=grid,
        in_specs=[
            pl.BlockSpec((F_pad, tb), lambda i: (0, i)),          # x tile (pipelined)
            pl.BlockSpec((H, F_pad), lambda i: (0, 0)),           # w1 (resident)
            pl.BlockSpec((H, 1), lambda i: (0, 0)),               # b1 (resident)
            pl.BlockSpec((H, H), lambda i: (0, 0)),               # w2 bf16 (resident)
            pl.BlockSpec((H, 1), lambda i: (0, 0)),               # b2 (resident)
            pl.BlockSpec((H, 1), lambda i: (0, 0)),               # w3 (resident)
            pl.BlockSpec(memory_space=pltpu.MemorySpace.SMEM),    # b3 scalar
        ],
        out_specs=pl.BlockSpec((1, tb), lambda i: (0, i)),        # lane-dense out
        compiler_params=pltpu.CompilerParams(
            dimension_semantics=("parallel",),                    # v7x: 2 TCs
        ),
    )(xt, w1p, b1c, w2b, b2c, w3c, b3c)

    # (1, b_pad) -> (B,)  : matches `out.squeeze(-1)` in the PyTorch module.
    return out[0, :B]


def init_params(key, feature_size=5, hidden_size=512):
    """Deterministic init mimicking nn.Linear's U(-1/sqrt(fan_in), 1/sqrt(fan_in)),
    stored in PyTorch layout (out_features, in_features)."""
    ks = jax.random.split(key, 6)

    def lin(kw, kb, fan_in, fan_out):
        bound = 1.0 / (fan_in ** 0.5)
        w = jax.random.uniform(kw, (fan_out, fan_in), jnp.float32, -bound, bound)
        b = jax.random.uniform(kb, (fan_out,), jnp.float32, -bound, bound)
        return w, b

    w1, b1 = lin(ks[0], ks[1], feature_size, hidden_size)
    w2, b2 = lin(ks[2], ks[3], hidden_size, hidden_size)
    w3, b3 = lin(ks[4], ks[5], hidden_size, 1)
    return w1, b1, w2, b2, w3, b3


if __name__ == "__main__":
    feature_size = 5
    hidden_size = 512
    batch = 300   # not a multiple of the tile -> exercises grid=2 + padding path

    key = jax.random.PRNGKey(0)
    k_x, k_p = jax.random.split(key)

    x = jax.random.normal(k_x, (batch, feature_size), jnp.float32)
    params = init_params(k_p, feature_size, hidden_size)

    y = mlp_forward(x, *params)
    jax.block_until_ready(y)

    # Plain-JAX f32 reference of the same (eval-mode) forward pass.
    # Tolerance is loosened because the kernel runs the 512x512 layer in bf16
    # (with f32 accumulation).
    w1, b1, w2, b2, w3, b3 = params
    ref = jnp.maximum(x @ w1.T + b1, 0.0)
    ref = jnp.maximum(ref @ w2.T + b2, 0.0)
    ref = (ref @ w3.T + b3)[:, 0]

    assert y.shape == (batch,)
    assert jnp.allclose(y, ref, atol=2e-2, rtol=2e-2), (
        float(jnp.max(jnp.abs(y - ref)))
    )

    print("KERNEL_OK")
</pallas_src>

<mosaic_0001>
module attributes {stable_mosaic.version = 11 : i64} {
  func.func @_mlp_kernel(%arg0: i32, %arg1: memref<8x256xf32, #tpu.memory_space<vmem>>, %arg2: memref<512x8xf32, #tpu.memory_space<vmem>>, %arg3: memref<512x1xf32, #tpu.memory_space<vmem>>, %arg4: memref<512x512xbf16, #tpu.memory_space<vmem>>, %arg5: memref<512x1xf32, #tpu.memory_space<vmem>>, %arg6: memref<512x1xf32, #tpu.memory_space<vmem>>, %arg7: memref<1x1xf32, #tpu.memory_space<smem>>, %arg8: memref<1x256xf32, #tpu.memory_space<vmem>>) attributes {dimension_semantics = [#tpu.dimension_semantics<parallel>], iteration_bounds = array<i64: 2>, scalar_prefetch = 0 : i64, scratch_operands = 0 : i64, tpu.core_type = #tpu.core_type<tc>, window_params = [{transform_indices = @transform_0, window_bounds = array<i64: 8, 256>}, {pipeline_mode = #tpu.pipeline_mode<synchronous>, transform_indices = @transform_1, window_bounds = array<i64: 512, 8>}, {pipeline_mode = #tpu.pipeline_mode<synchronous>, transform_indices = @transform_2, window_bounds = array<i64: 512, 1>}, {pipeline_mode = #tpu.pipeline_mode<synchronous>, transform_indices = @transform_3, window_bounds = array<i64: 512, 512>}, {pipeline_mode = #tpu.pipeline_mode<synchronous>, transform_indices = @transform_4, window_bounds = array<i64: 512, 1>}, {pipeline_mode = #tpu.pipeline_mode<synchronous>, transform_indices = @transform_5, window_bounds = array<i64: 512, 1>}, {transform_indices = @transform_6, window_bounds = array<i64: 1, 1>}, {transform_indices = @transform_7, window_bounds = array<i64: 1, 256>}]} {
    %c0 = arith.constant 0 : index
    %c0_0 = arith.constant 0 : index
    %0 = vector.load %arg2[%c0, %c0_0] : memref<512x8xf32, #tpu.memory_space<vmem>>, vector<512x8xf32>
    %c0_1 = arith.constant 0 : index
    %c0_2 = arith.constant 0 : index
    %1 = vector.load %arg1[%c0_1, %c0_2] : memref<8x256xf32, #tpu.memory_space<vmem>>, vector<8x256xf32>
    %cst = arith.constant dense<0.000000e+00> : vector<512x256xf32>
    %2 = tpu.matmul %0, %1, %cst {dimension_numbers = #tpu.dot_dimension_numbers<[1], [0], [0], [1], [0, 0, 1, 1], [], []>} : vector<512x8xf32>, vector<8x256xf32>, vector<512x256xf32> -> vector<512x256xf32>
    %c0_3 = arith.constant 0 : index
    %c0_4 = arith.constant 0 : index
    %3 = vector.load %arg3[%c0_3, %c0_4] : memref<512x1xf32, #tpu.memory_space<vmem>>, vector<512x1xf32>
    %4 = vector.broadcast %3 : vector<512x1xf32> to vector<512x256xf32>
    %5 = arith.addf %2, %4 : vector<512x256xf32>
    %cst_5 = arith.constant 0.000000e+00 : f32
    %6 = vector.broadcast %cst_5 : f32 to vector<512x256xf32>
    %7 = arith.maximumf %5, %6 : vector<512x256xf32>
    %c0_6 = arith.constant 0 : index
    %c0_7 = arith.constant 0 : index
    %8 = vector.load %arg4[%c0_6, %c0_7] : memref<512x512xbf16, #tpu.memory_space<vmem>>, vector<512x512xbf16>
    %9 = arith.truncf %7 : vector<512x256xf32> to vector<512x256xbf16>
    %cst_8 = arith.constant dense<0.000000e+00> : vector<512x256xf32>
    %10 = tpu.matmul %8, %9, %cst_8 {dimension_numbers = #tpu.dot_dimension_numbers<[1], [0], [0], [1], [0, 0, 1, 1], [], []>} : vector<512x512xbf16>, vector<512x256xbf16>, vector<512x256xf32> -> vector<512x256xf32>
    %c0_9 = arith.constant 0 : index
    %c0_10 = arith.constant 0 : index
    %11 = vector.load %arg5[%c0_9, %c0_10] : memref<512x1xf32, #tpu.memory_space<vmem>>, vector<512x1xf32>
    %12 = vector.broadcast %11 : vector<512x1xf32> to vector<512x256xf32>
    %13 = arith.addf %10, %12 : vector<512x256xf32>
    %cst_11 = arith.constant 0.000000e+00 : f32
    %14 = vector.broadcast %cst_11 : f32 to vector<512x256xf32>
    %15 = arith.maximumf %13, %14 : vector<512x256xf32>
    %c0_12 = arith.constant 0 : index
    %c0_13 = arith.constant 0 : index
    %16 = vector.load %arg6[%c0_12, %c0_13] : memref<512x1xf32, #tpu.memory_space<vmem>>, vector<512x1xf32>
    %17 = vector.broadcast %16 : vector<512x1xf32> to vector<512x256xf32>
    %18 = arith.mulf %15, %17 : vector<512x256xf32>
    %cst_14 = arith.constant dense<0.000000e+00> : vector<256xf32>
    %19 = vector.multi_reduction <add>, %18, %cst_14 [0] : vector<512x256xf32> to vector<256xf32>
    %20 = vector.shape_cast %19 : vector<256xf32> to vector<1x256xf32>
    %c0_15 = arith.constant 0 : index
    %c0_16 = arith.constant 0 : index
    %21 = memref.load %arg7[%c0_15, %c0_16] : memref<1x1xf32, #tpu.memory_space<smem>>
    %22 = vector.broadcast %21 : f32 to vector<1x256xf32>
    %23 = arith.addf %20, %22 : vector<1x256xf32>
    %c0_17 = arith.constant 0 : index
    %c0_18 = arith.constant 0 : index
    %24 = vector.load %arg8[%c0_17, %c0_18] : memref<1x256xf32, #tpu.memory_space<vmem>>, vector<1x256xf32>
    tpu.vector_store %arg8[%c0_17, %c0_18], %23 {strides = array<i32>} : memref<1x256xf32, #tpu.memory_space<vmem>>, vector<1x256xf32>,
    return
  }
  func.func @transform_0(%arg0: i32) -> (i32, i32) {
    %c0_i32 = arith.constant 0 : i32
    %c0_i32_0 = arith.constant 0 : i32
    return %c0_i32, %arg0 : i32, i32
  }
  func.func @transform_1(%arg0: i32) -> (i32, i32) {
    %c0_i32 = arith.constant 0 : i32
    %c0_i32_0 = arith.constant 0 : i32
    %c0_i32_1 = arith.constant 0 : i32
    return %c0_i32, %c0_i32_0 : i32, i32
  }
  func.func @transform_2(%arg0: i32) -> (i32, i32) {
    %c0_i32 = arith.constant 0 : i32
    %c0_i32_0 = arith.constant 0 : i32
    %c0_i32_1 = arith.constant 0 : i32
    return %c0_i32, %c0_i32_0 : i32, i32
  }
  func.func @transform_3(%arg0: i32) -> (i32, i32) {
    %c0_i32 = arith.constant 0 : i32
    %c0_i32_0 = arith.constant 0 : i32
    %c0_i32_1 = arith.constant 0 : i32
    return %c0_i32, %c0_i32_0 : i32, i32
  }
  func.func @transform_4(%arg0: i32) -> (i32, i32) {
    %c0_i32 = arith.constant 0 : i32
    %c0_i32_0 = arith.constant 0 : i32
    %c0_i32_1 = arith.constant 0 : i32
    return %c0_i32, %c0_i32_0 : i32, i32
  }
  func.func @transform_5(%arg0: i32) -> (i32, i32) {
    %c0_i32 = arith.constant 0 : i32
    %c0_i32_0 = arith.constant 0 : i32
    %c0_i32_1 = arith.constant 0 : i32
    return %c0_i32, %c0_i32_0 : i32, i32
  }
  func.func @transform_6(%arg0: i32) -> (i32, i32) {
    %c0_i32 = arith.constant 0 : i32
    %c0_i32_0 = arith.constant 0 : i32
    %c0_i32_1 = arith.constant 0 : i32
    return %c0_i32, %c0_i32_0 : i32, i32
  }
  func.func @transform_7(%arg0: i32) -> (i32, i32) {
    %c0_i32 = arith.constant 0 : i32
    %c0_i32_0 = arith.constant 0 : i32
    return %c0_i32, %arg0 : i32, i32
  }
}

</mosaic_0001>

<llo_original>
// kernel: mlp_forward.1
$region0: #{mlp_forward.1}
  #allocation0 [shape = 'u32[]', space=smem, size = 0x4, offset = 0x4, fixed_abs, tag = 'smem constant byte address 0x4 - core index']
  #allocation1 [shape = 'u32[144,128]{1,0:T(1,128)}', space=vmem, size = 0x12000, scoped, tag = 'internal scratch']
  #allocation2 [shape = 'f32[1,1]{1,0:T(1,128)S(6)}', space=smem, size = 0x200, scoped, tag = 'scoped memory for mlp_forward.1']
  %s0 = inlined_call_operand.vmem [shape: f32[8,512], index: 0, kind: input, shape index: {}]
  %s1 = inlined_call_operand.vmem [shape: f32[512,8], index: 1, kind: input, shape index: {}]
  %s2 = inlined_call_operand.vmem [shape: f32[512,1], index: 2, kind: input, shape index: {}]
  %s3 = inlined_call_operand.vmem [shape: bf16[512,512], index: 3, kind: input, shape index: {}]
  %s4 = inlined_call_operand.vmem [shape: f32[512,1], index: 4, kind: input, shape index: {}]
  %s5 = inlined_call_operand.vmem [shape: f32[512,1], index: 5, kind: input, shape index: {}]
  %s6 = inlined_call_operand.<no memory space> [shape: f32[1,1], index: 6, kind: input, shape index: {}]
  %s7 = inlined_call_operand.vmem [shape: f32[1,512], index: 7, kind: output, shape index: {}]
  %s8 = sld [smem:[#allocation0]]
  $region61: #{mlp_forward.1} parent=0
    _
  %s10 = ssub.s32 1, %s8
  %s11 = scalar_select 0, %s10, %s8
  %12 = sst [smem:[#allocation2]] %s6
  loop: start=0, step=1, limit=4
  $region2: #{mlp_forward.1} parent=0 // loop_pre_header
    _
  $region3: #{mlp_forward.1} parent=0 // loop_header
    %s14 = sphi 0, %s18
    %p15 = scmp.ge.s32.totalorder %s14, 4
    %s24 = sphi 0, %s26
    %s27 = sphi 0, %s24
    %s28 = sphi 0, %s27
    %s44 = sphi 0, %s28
    %s48 = sphi 0, %s48
    %s50 = sphi 0, %s48
    %s51 = sphi 0, %s50
    %s65 = sphi 0, %s51
    %s69 = sphi 0, %s69
    %s71 = sphi 0, %s69
    %s72 = sphi 0, %s71
    %s86 = sphi 0, %s72
    %s90 = sphi 0, %s90
    %s92 = sphi 0, %s90
    %s93 = sphi 0, %s92
    %s107 = sphi 0, %s93
    %s111 = sphi 0, %s111
    %s113 = sphi 0, %s111
    %s114 = sphi 0, %s113
    %s128 = sphi 0, %s114
    %s132 = sphi 0, %s132
    %s134 = sphi 0, %s132
    %s135 = sphi 0, %s134
    %s149 = sphi 0, %s135
    %s153 = sphi 0, %s153
    %s155 = sphi 0, %s153
    %s156 = sphi 0, %s155
    %s170 = sphi 0, %s156
    %s176 = sphi 0, %s178
    %s179 = sphi 0, %s176
    %s180 = sphi 0, %s179
    %s196 = sphi 0, %s180
  $region4: #{mlp_forward.1} parent=0 // loop_header_branch
    %17 = sbr.rel (%p15) target = $region8
  $region5: #{mlp_forward.1} parent=0 // loop_body
    %s19 = ssub.s32 %s14, 1
    %s20 = ssub.s32 %s14, 2
    %s21 = sadd.s32 %s14, 1
    %s22 = ssub.s32 %s14, %s21
    %p23 = scmp.eq.s32.totalorder %s22, 0
    %s25 = sadd.s32 %s24, 1
    %s26 = scalar_select %p23, %s24, %s25
    %p29 = pneg %p23
    %p30 = scmp.eq.s32.totalorder %s14, 1
    %p31 = por %p29, %p30
    %p32 = scmp.ne.s32.totalorder %s24, %s27
    %p33 = scmp.eq.s32.totalorder %s14, 0
    %p34 = por %p32, %p33
    %p35 = scmp.ne.s32.totalorder %s24, %s27
    %p36 = scmp.eq.s32.totalorder %s19, 1
    %p37 = por %p35, %p36
    %p38 = scmp.ne.s32.totalorder %s27, %s28
    %p39 = scmp.eq.s32.totalorder %s19, 0
    %p40 = por %p38, %p39
    %p41 = scmp.ne.s32.totalorder %s27, %s28
    %p42 = scmp.eq.s32.totalorder %s20, 1
    %p43 = por %p41, %p42
    %p45 = scmp.ne.s32.totalorder %s28, %s44
    %p46 = scmp.eq.s32.totalorder %s20, 0
    %p47 = por %p45, %p46
    %s49 = sadd.s32 %s48, 1
    %p52 = scmp.eq.s32.totalorder %s14, 1
    %p53 = scmp.ne.s32.totalorder %s48, %s50
    %p54 = scmp.eq.s32.totalorder %s14, 0
    %p55 = por %p53, %p54
    %p56 = scmp.ne.s32.totalorder %s48, %s50
    %p57 = scmp.eq.s32.totalorder %s19, 1
    %p58 = por %p56, %p57
    %p59 = scmp.ne.s32.totalorder %s50, %s51
    %p60 = scmp.eq.s32.totalorder %s19, 0
    %p61 = por %p59, %p60
    %p62 = scmp.ne.s32.totalorder %s50, %s51
    %p63 = scmp.eq.s32.totalorder %s20, 1
    %p64 = por %p62, %p63
    %p66 = scmp.ne.s32.totalorder %s51, %s65
    %p67 = scmp.eq.s32.totalorder %s20, 0
    %p68 = por %p66, %p67
    %s70 = sadd.s32 %s69, 1
    %p73 = scmp.eq.s32.totalorder %s14, 1
    %p74 = scmp.ne.s32.totalorder %s69, %s71
    %p75 = scmp.eq.s32.totalorder %s14, 0
    %p76 = por %p74, %p75
    %p77 = scmp.ne.s32.totalorder %s69, %s71
    %p78 = scmp.eq.s32.totalorder %s19, 1
    %p79 = por %p77, %p78
    %p80 = scmp.ne.s32.totalorder %s71, %s72
    %p81 = scmp.eq.s32.totalorder %s19, 0
    %p82 = por %p80, %p81
    %p83 = scmp.ne.s32.totalorder %s71, %s72
    %p84 = scmp.eq.s32.totalorder %s20, 1
    %p85 = por %p83, %p84
    %p87 = scmp.ne.s32.totalorder %s72, %s86
    %p88 = scmp.eq.s32.totalorder %s20, 0
    %p89 = por %p87, %p88
    %s91 = sadd.s32 %s90, 1
    %p94 = scmp.eq.s32.totalorder %s14, 1
    %p95 = scmp.ne.s32.totalorder %s90, %s92
    %p96 = scmp.eq.s32.totalorder %s14, 0
    %p97 = por %p95, %p96
    %p98 = scmp.ne.s32.totalorder %s90, %s92
    %p99 = scmp.eq.s32.totalorder %s19, 1
    %p100 = por %p98, %p99
    %p101 = scmp.ne.s32.totalorder %s92, %s93
    %p102 = scmp.eq.s32.totalorder %s19, 0
    %p103 = por %p101, %p102
    %p104 = scmp.ne.s32.totalorder %s92, %s93
    %p105 = scmp.eq.s32.totalorder %s20, 1
    %p106 = por %p104, %p105
    %p108 = scmp.ne.s32.totalorder %s93, %s107
    %p109 = scmp.eq.s32.totalorder %s20, 0
    %p110 = por %p108, %p109
    %s112 = sadd.s32 %s111, 1
    %p115 = scmp.eq.s32.totalorder %s14, 1
    %p116 = scmp.ne.s32.totalorder %s111, %s113
    %p117 = scmp.eq.s32.totalorder %s14, 0
    %p118 = por %p116, %p117
    %p119 = scmp.ne.s32.totalorder %s111, %s113
    %p120 = scmp.eq.s32.totalorder %s19, 1
    %p121 = por %p119, %p120
    %p122 = scmp.ne.s32.totalorder %s113, %s114
    %p123 = scmp.eq.s32.totalorder %s19, 0
    %p124 = por %p122, %p123
    %p125 = scmp.ne.s32.totalorder %s113, %s114
    %p126 = scmp.eq.s32.totalorder %s20, 1
    %p127 = por %p125, %p126
    %p129 = scmp.ne.s32.totalorder %s114, %s128
    %p130 = scmp.eq.s32.totalorder %s20, 0
    %p131 = por %p129, %p130
    %s133 = sadd.s32 %s132, 1
    %p136 = scmp.eq.s32.totalorder %s14, 1
    %p137 = scmp.ne.s32.totalorder %s132, %s134
    %p138 = scmp.eq.s32.totalorder %s14, 0
    %p139 = por %p137, %p138
    %p140 = scmp.ne.s32.totalorder %s132, %s134
    %p141 = scmp.eq.s32.totalorder %s19, 1
    %p142 = por %p140, %p141
    %p143 = scmp.ne.s32.totalorder %s134, %s135
    %p144 = scmp.eq.s32.totalorder %s19, 0
    %p145 = por %p143, %p144
    %p146 = scmp.ne.s32.totalorder %s134, %s135
    %p147 = scmp.eq.s32.totalorder %s20, 1
    %p148 = por %p146, %p147
    %p150 = scmp.ne.s32.totalorder %s135, %s149
    %p151 = scmp.eq.s32.totalorder %s20, 0
    %p152 = por %p150, %p151
    %s154 = sadd.s32 %s153, 1
    %p157 = scmp.eq.s32.totalorder %s14, 1
    %p158 = scmp.ne.s32.totalorder %s153, %s155
    %p159 = scmp.eq.s32.totalorder %s14, 0
    %p160 = por %p158, %p159
    %p161 = scmp.ne.s32.totalorder %s153, %s155
    %p162 = scmp.eq.s32.totalorder %s19, 1
    %p163 = por %p161, %p162
    %p164 = scmp.ne.s32.totalorder %s155, %s156
    %p165 = scmp.eq.s32.totalorder %s19, 0
    %p166 = por %p164, %p165
    %p167 = scmp.ne.s32.totalorder %s155, %s156
    %p168 = scmp.eq.s32.totalorder %s20, 1
    %p169 = por %p167, %p168
    %p171 = scmp.ne.s32.totalorder %s156, %s170
    %p172 = scmp.eq.s32.totalorder %s20, 0
    %p173 = por %p171, %p172
    %s174 = ssub.s32 %s14, %s21
    %p175 = scmp.eq.s32.totalorder %s174, 0
    %s177 = sadd.s32 %s176, 1
    %s178 = scalar_select %p175, %s176, %s177
    %p181 = pneg %p175
    %p182 = scmp.eq.s32.totalorder %s14, 1
    %p183 = por %p181, %p182
    %p184 = scmp.ne.s32.totalorder %s176, %s179
    %p185 = scmp.eq.s32.totalorder %s14, 0
    %p186 = por %p184, %p185
    %p187 = scmp.ne.s32.totalorder %s176, %s179
    %p188 = scmp.eq.s32.totalorder %s19, 1
    %p189 = por %p187, %p188
    %p190 = scmp.ne.s32.totalorder %s179, %s180
    %p191 = scmp.eq.s32.totalorder %s19, 0
    %p192 = por %p190, %p191
    %p193 = scmp.ne.s32.totalorder %s179, %s180
    %p194 = scmp.eq.s32.totalorder %s20, 1
    %p195 = por %p193, %p194
    %p197 = scmp.ne.s32.totalorder %s180, %s196
    %p198 = scmp.eq.s32.totalorder %s20, 0
    %p199 = por %p197, %p198
    %p200 = scmp.le.s32.totalorder 1, %s14
    %p201 = scmp.lt.s32.totalorder %s14, 3
    %p202 = pnand %p200, %p201
    %p203 = pneg %p202
    // Predicated region
    $region9: #{mlp_forward.1} parent=5 // pred_check
      _
    $region10: #{mlp_forward.1} parent=5 // pred_check_branch
      %205 = sbr.rel (%p202) target = $region12
    $region11: #{mlp_forward.1} parent=5 // pred_region
      %s206 = ssub.s32 %s14, 1
      // Predicated region
      $region13: #{mlp_forward.1} parent=11 // pred_check
        %p207 = pneg %p61
      $region14: #{mlp_forward.1} parent=11 // pred_check_branch
        %209 = sbr.rel (%p207) target = $region16
      $region15: #{mlp_forward.1} parent=11 // pred_region
        _
      $region16: #{mlp_forward.1} parent=11 // pred_fallthru
        _
      // Predicated region
      $region17: #{mlp_forward.1} parent=11 // pred_check
        %p210 = pneg %p82
      $region18: #{mlp_forward.1} parent=11 // pred_check_branch
        %212 = sbr.rel (%p210) target = $region20
      $region19: #{mlp_forward.1} parent=11 // pred_region
        _
      $region20: #{mlp_forward.1} parent=11 // pred_fallthru
        _
      // Predicated region
      $region21: #{mlp_forward.1} parent=11 // pred_check
        %p213 = pneg %p103
      $region22: #{mlp_forward.1} parent=11 // pred_check_branch
        %215 = sbr.rel (%p213) target = $region24
      $region23: #{mlp_forward.1} parent=11 // pred_region
        _
      $region24: #{mlp_forward.1} parent=11 // pred_fallthru
        _
      // Predicated region
      $region25: #{mlp_forward.1} parent=11 // pred_check
        %p216 = pneg %p124
      $region26: #{mlp_forward.1} parent=11 // pred_check_branch
        %218 = sbr.rel (%p216) target = $region28
      $region27: #{mlp_forward.1} parent=11 // pred_region
        _
      $region28: #{mlp_forward.1} parent=11 // pred_fallthru
        _
      // Predicated region
      $region29: #{mlp_forward.1} parent=11 // pred_check
        %p219 = pneg %p145
      $region30: #{mlp_forward.1} parent=11 // pred_check_branch
        %221 = sbr.rel (%p219) target = $region32
      $region31: #{mlp_forward.1} parent=11 // pred_region
        _
      $region32: #{mlp_forward.1} parent=11 // pred_fallthru
        _
      // Predicated region
      $region33: #{mlp_forward.1} parent=11 // pred_check
        %p222 = pneg %p166
      $region34: #{mlp_forward.1} parent=11 // pred_check_branch
        %224 = sbr.rel (%p222) target = $region36
      $region35: #{mlp_forward.1} parent=11 // pred_region
        _
      $region36: #{mlp_forward.1} parent=11 // pred_fallthru
        _
    $region12: #{mlp_forward.1} parent=5 // pred_fallthru
      _
    %p225 = scmp.lt.s32.totalorder %s14, 2
    // Predicated region
    $region37: #{mlp_forward.1} parent=5 // pred_check
      %p226 = pneg %p225
    $region38: #{mlp_forward.1} parent=5 // pred_check_branch
      %228 = sbr.rel (%p226) target = $region40
    $region39: #{mlp_forward.1} parent=5 // pred_region
      // Predicated region
      $region41: #{mlp_forward.1} parent=39 // pred_check
        %p229 = pneg %p34
      $region42: #{mlp_forward.1} parent=39 // pred_check_branch
        %231 = sbr.rel (%p229) target = $region44
      $region43: #{mlp_forward.1} parent=39 // pred_region
        %s232 = smul.u32 2, %s14
        %p233 = scmp.lt.s32.totalorder %s232, 3
        %s234 = scalar_select %p233, %s232, 3
        %s235 = smul.addr %s234, 8
        %s236 = scalar_lea.vmem %s0, %s235
        %s237 = smul.u32 2, %s14
      $region44: #{mlp_forward.1} parent=39 // pred_fallthru
        _
    $region40: #{mlp_forward.1} parent=5 // pred_fallthru
      _
    %p238 = scmp.le.s32.totalorder 1, %s14
    %p239 = scmp.lt.s32.totalorder %s14, 3
    %p240 = pnand %p238, %p239
    %p241 = pneg %p240
    // Predicated region
    $region45: #{mlp_forward.1} parent=5 // pred_check
      _
    $region46: #{mlp_forward.1} parent=5 // pred_check_branch
      %243 = sbr.rel (%p240) target = $region48
    $region47: #{mlp_forward.1} parent=5 // pred_region
      %s244 = ssub.s32 %s14, 1
      %s245 = smul.u32 2, %s19
      %p246 = scmp.lt.s32.totalorder %s245, 3
      %s247 = scalar_select %p246, %s245, 3
      %s248 = smul.addr %s247, 8
      %s249 = scalar_lea.vmem %s0, %s248
      %p250 = pneg %p40
      %p251 = pneg %p37
      %p252 = pneg %p61
      %p253 = pneg %p58
      %p254 = pneg %p82
      %p255 = pneg %p79
      %p256 = pneg %p103
      %p257 = pneg %p100
      %p258 = pneg %p124
      %p259 = pneg %p121
      %p260 = pneg %p145
      %p261 = pneg %p142
      %p262 = pneg %p166
      %p263 = pneg %p163
      %p264 = pneg %p192
      %p265 = pneg %p189
      %s266 = smul.u32 2, %s19
      %p267 = scmp.lt.s32.totalorder %s266, 3
      %s268 = scalar_select %p267, %s266, 3
      %s269 = scalar_lea.vmem %s7, %s268
      %s270 = smul.u32 2, %s19
      %p271 = scmp.lt.s32.totalorder %s270, 3
      %s272 = scalar_select %p271, %s270, 3
      %s273 = smul.addr %s272, 8
      %s274 = scalar_lea.vmem %s0, %s273
      %s275 = smul.u32 2, %s19
      %s276 = smul.u32 2, %s19
      %p277 = scmp.lt.s32.totalorder %s276, 3
      %s278 = scalar_select %p277, %s276, 3
      %s279 = scalar_lea.vmem %s7, %s278
      %s280 = smul.u32 2, %s19
      %v281 = vld [vmem:[%s1] sm:$0xff]
      %v282 = vld [vmem:[%s1 + $0x8] sm:$0xff]
      %v283 = vld [vmem:[%s1 + $0x10] sm:$0xff]
      %v284 = vld [vmem:[%s1 + $0x18] sm:$0xff]
      %v285 = vld [vmem:[%s1 + $0x20] sm:$0xff]
      %v286 = vld [vmem:[%s1 + $0x28] sm:$0xff]
      %v287 = vld [vmem:[%s1 + $0x30] sm:$0xff]
      %v288 = vld [vmem:[%s1 + $0x38] sm:$0xff]
      %v289 = vld [vmem:[%s1 + $0x40] sm:$0xff]
      %v290 = vld [vmem:[%s1 + $0x48] sm:$0xff]
      %v291 = vld [vmem:[%s1 + $0x50] sm:$0xff]
      %v292 = vld [vmem:[%s1 + $0x58] sm:$0xff]
      %v293 = vld [vmem:[%s1 + $0x60] sm:$0xff]
      %v294 = vld [vmem:[%s1 + $0x68] sm:$0xff]
      %v295 = vld [vmem:[%s1 + $0x70] sm:$0xff]
      %v296 = vld [vmem:[%s1 + $0x78] sm:$0xff]
      %v297 = vld [vmem:[%s1 + $0x80] sm:$0xff]
      %v298 = vld [vmem:[%s1 + $0x88] sm:$0xff]
      %v299 = vld [vmem:[%s1 + $0x90] sm:$0xff]
      %v300 = vld [vmem:[%s1 + $0x98] sm:$0xff]
      %v301 = vld [vmem:[%s1 + $0xa0] sm:$0xff]
      %v302 = vld [vmem:[%s1 + $0xa8] sm:$0xff]
      %v303 = vld [vmem:[%s1 + $0xb0] sm:$0xff]
      %v304 = vld [vmem:[%s1 + $0xb8] sm:$0xff]
      %v305 = vld [vmem:[%s1 + $0xc0] sm:$0xff]
      %v306 = vld [vmem:[%s1 + $0xc8] sm:$0xff]
      %v307 = vld [vmem:[%s1 + $0xd0] sm:$0xff]
      %v308 = vld [vmem:[%s1 + $0xd8] sm:$0xff]
      %v309 = vld [vmem:[%s1 + $0xe0] sm:$0xff]
      %v310 = vld [vmem:[%s1 + $0xe8] sm:$0xff]
      %v311 = vld [vmem:[%s1 + $0xf0] sm:$0xff]
      %v312 = vld [vmem:[%s1 + $0xf8] sm:$0xff]
      %v313 = vld [vmem:[%s1 + $0x100] sm:$0xff]
      %v314 = vld [vmem:[%s1 + $0x108] sm:$0xff]
      %v315 = vld [vmem:[%s1 + $0x110] sm:$0xff]
      %v316 = vld [vmem:[%s1 + $0x118] sm:$0xff]
      %v317 = vld [vmem:[%s1 + $0x120] sm:$0xff]
      %v318 = vld [vmem:[%s1 + $0x128] sm:$0xff]
      %v319 = vld [vmem:[%s1 + $0x130] sm:$0xff]
      %v320 = vld [vmem:[%s1 + $0x138] sm:$0xff]
      %v321 = vld [vmem:[%s1 + $0x140] sm:$0xff]
      %v322 = vld [vmem:[%s1 + $0x148] sm:$0xff]
      %v323 = vld [vmem:[%s1 + $0x150] sm:$0xff]
      %v324 = vld [vmem:[%s1 + $0x158] sm:$0xff]
      %v325 = vld [vmem:[%s1 + $0x160] sm:$0xff]
      %v326 = vld [vmem:[%s1 + $0x168] sm:$0xff]
      %v327 = vld [vmem:[%s1 + $0x170] sm:$0xff]
      %v328 = vld [vmem:[%s1 + $0x178] sm:$0xff]
      %v329 = vld [vmem:[%s1 + $0x180] sm:$0xff]
      %v330 = vld [vmem:[%s1 + $0x188] sm:$0xff]
      %v331 = vld [vmem:[%s1 + $0x190] sm:$0xff]
      %v332 = vld [vmem:[%s1 + $0x198] sm:$0xff]
      %v333 = vld [vmem:[%s1 + $0x1a0] sm:$0xff]
      %v334 = vld [vmem:[%s1 + $0x1a8] sm:$0xff]
      %v335 = vld [vmem:[%s1 + $0x1b0] sm:$0xff]
      %v336 = vld [vmem:[%s1 + $0x1b8] sm:$0xff]
      %v337 = vld [vmem:[%s1 + $0x1c0] sm:$0xff]
      %v338 = vld [vmem:[%s1 + $0x1c8] sm:$0xff]
      %v339 = vld [vmem:[%s1 + $0x1d0] sm:$0xff]
      %v340 = vld [vmem:[%s1 + $0x1d8] sm:$0xff]
      %v341 = vld [vmem:[%s1 + $0x1e0] sm:$0xff]
      %v342 = vld [vmem:[%s1 + $0x1e8] sm:$0xff]
      %v343 = vld [vmem:[%s1 + $0x1f0] sm:$0xff]
      %v344 = vld [vmem:[%s1 + $0x1f8] sm:$0xff]
      %v345 = vld [vmem:[%s274] sm:$0xff]
      %v346 = vld [vmem:[%s274 + $0x8] sm:$0xff]
      %v347 = vld [vmem:[%s2] sm:$0xff]
      %v348 = vld [vmem:[%s2 + $0x8] sm:$0xff]
      %v349 = vld [vmem:[%s2 + $0x10] sm:$0xff]
      %v350 = vld [vmem:[%s2 + $0x18] sm:$0xff]
      %v351 = vld [vmem:[%s2 + $0x20] sm:$0xff]
      %v352 = vld [vmem:[%s2 + $0x28] sm:$0xff]
      %v353 = vld [vmem:[%s2 + $0x30] sm:$0xff]
      %v354 = vld [vmem:[%s2 + $0x38] sm:$0xff]
      %v355 = vld [vmem:[%s2 + $0x40] sm:$0xff]
      %v356 = vld [vmem:[%s2 + $0x48] sm:$0xff]
      %v357 = vld [vmem:[%s2 + $0x50] sm:$0xff]
      %v358 = vld [vmem:[%s2 + $0x58] sm:$0xff]
      %v359 = vld [vmem:[%s2 + $0x60] sm:$0xff]
      %v360 = vld [vmem:[%s2 + $0x68] sm:$0xff]
      %v361 = vld [vmem:[%s2 + $0x70] sm:$0xff]
      %v362 = vld [vmem:[%s2 + $0x78] sm:$0xff]
      %v363 = vld [vmem:[%s2 + $0x80] sm:$0xff]
      %v364 = vld [vmem:[%s2 + $0x88] sm:$0xff]
      %v365 = vld [vmem:[%s2 + $0x90] sm:$0xff]
      %v366 = vld [vmem:[%s2 + $0x98] sm:$0xff]
      %v367 = vld [vmem:[%s2 + $0xa0] sm:$0xff]
      %v368 = vld [vmem:[%s2 + $0xa8] sm:$0xff]
      %v369 = vld [vmem:[%s2 + $0xb0] sm:$0xff]
      %v370 = vld [vmem:[%s2 + $0xb8] sm:$0xff]
      %v371 = vld [vmem:[%s2 + $0xc0] sm:$0xff]
      %v372 = vld [vmem:[%s2 + $0xc8] sm:$0xff]
      %v373 = vld [vmem:[%s2 + $0xd0] sm:$0xff]
      %v374 = vld [vmem:[%s2 + $0xd8] sm:$0xff]
      %v375 = vld [vmem:[%s2 + $0xe0] sm:$0xff]
      %v376 = vld [vmem:[%s2 + $0xe8] sm:$0xff]
      %v377 = vld [vmem:[%s2 + $0xf0] sm:$0xff]
      %v378 = vld [vmem:[%s2 + $0xf8] sm:$0xff]
      %v379 = vld [vmem:[%s2 + $0x100] sm:$0xff]
      %v380 = vld [vmem:[%s2 + $0x108] sm:$0xff]
      %v381 = vld [vmem:[%s2 + $0x110] sm:$0xff]
      %v382 = vld [vmem:[%s2 + $0x118] sm:$0xff]
      %v383 = vld [vmem:[%s2 + $0x120] sm:$0xff]
      %v384 = vld [vmem:[%s2 + $0x128] sm:$0xff]
      %v385 = vld [vmem:[%s2 + $0x130] sm:$0xff]
      %v386 = vld [vmem:[%s2 + $0x138] sm:$0xff]
      %v387 = vld [vmem:[%s2 + $0x140] sm:$0xff]
      %v388 = vld [vmem:[%s2 + $0x148] sm:$0xff]
      %v389 = vld [vmem:[%s2 + $0x150] sm:$0xff]
      %v390 = vld [vmem:[%s2 + $0x158] sm:$0xff]
      %v391 = vld [vmem:[%s2 + $0x160] sm:$0xff]
      %v392 = vld [vmem:[%s2 + $0x168] sm:$0xff]
      %v393 = vld [vmem:[%s2 + $0x170] sm:$0xff]
      %v394 = vld [vmem:[%s2 + $0x178] sm:$0xff]
      %v395 = vld [vmem:[%s2 + $0x180] sm:$0xff]
      %v396 = vld [vmem:[%s2 + $0x188] sm:$0xff]
      %v397 = vld [vmem:[%s2 + $0x190] sm:$0xff]
      %v398 = vld [vmem:[%s2 + $0x198] sm:$0xff]
      %v399 = vld [vmem:[%s2 + $0x1a0] sm:$0xff]
      %v400 = vld [vmem:[%s2 + $0x1a8] sm:$0xff]
      %v401 = vld [vmem:[%s2 + $0x1b0] sm:$0xff]
      %v402 = vld [vmem:[%s2 + $0x1b8] sm:$0xff]
      %v403 = vld [vmem:[%s2 + $0x1c0] sm:$0xff]
      %v404 = vld [vmem:[%s2 + $0x1c8] sm:$0xff]
      %v405 = vld [vmem:[%s2 + $0x1d0] sm:$0xff]
      %v406 = vld [vmem:[%s2 + $0x1d8] sm:$0xff]
      %v407 = vld [vmem:[%s2 + $0x1e0] sm:$0xff]
      %v408 = vld [vmem:[%s2 + $0x1e8] sm:$0xff]
      %v409 = vld [vmem:[%s2 + $0x1f0] sm:$0xff]
      %v410 = vld [vmem:[%s2 + $0x1f8] sm:$0xff]
      %412 = vset.pattern.permute.xlu0 0
      %413 = vperm.xlu0 %412, %v347
      %v414 = vpop.permute.xlu0 %413
      %417 = vset.pattern.permute.xlu0 0
      %418 = vperm.xlu0 %417, %v348
      %v419 = vpop.permute.xlu0 %418
      %422 = vset.pattern.permute.xlu0 0
      %423 = vperm.xlu0 %422, %v349
      %v424 = vpop.permute.xlu0 %423
      %427 = vset.pattern.permute.xlu0 0
      %428 = vperm.xlu0 %427, %v350
      %v429 = vpop.permute.xlu0 %428
      %432 = vset.pattern.permute.xlu0 0
      %433 = vperm.xlu0 %432, %v351
      %v434 = vpop.permute.xlu0 %433
      %437 = vset.pattern.permute.xlu0 0
      %438 = vperm.xlu0 %437, %v352
      %v439 = vpop.permute.xlu0 %438
      %442 = vset.pattern.permute.xlu0 0
      %443 = vperm.xlu0 %442, %v353
      %v444 = vpop.permute.xlu0 %443
      %447 = vset.pattern.permute.xlu0 0
      %448 = vperm.xlu0 %447, %v354
      %v449 = vpop.permute.xlu0 %448
      %452 = vset.pattern.permute.xlu0 0
      %453 = vperm.xlu0 %452, %v355
      %v454 = vpop.permute.xlu0 %453
      %457 = vset.pattern.permute.xlu0 0
      %458 = vperm.xlu0 %457, %v356
      %v459 = vpop.permute.xlu0 %458
      %462 = vset.pattern.permute.xlu0 0
      %463 = vperm.xlu0 %462, %v357
      %v464 = vpop.permute.xlu0 %463
      %467 = vset.pattern.permute.xlu0 0
      %468 = vperm.xlu0 %467, %v358
      %v469 = vpop.permute.xlu0 %468
      %472 = vset.pattern.permute.xlu0 0
      %473 = vperm.xlu0 %472, %v359
      %v474 = vpop.permute.xlu0 %473
      %477 = vset.pattern.permute.xlu0 0
      %478 = vperm.xlu0 %477, %v360
      %v479 = vpop.permute.xlu0 %478
      %482 = vset.pattern.permute.xlu0 0
      %483 = vperm.xlu0 %482, %v361
      %v484 = vpop.permute.xlu0 %483
      %487 = vset.pattern.permute.xlu0 0
      %488 = vperm.xlu0 %487, %v362
      %v489 = vpop.permute.xlu0 %488
      %492 = vset.pattern.permute.xlu0 0
      %493 = vperm.xlu0 %492, %v363
      %v494 = vpop.permute.xlu0 %493
      %497 = vset.pattern.permute.xlu0 0
      %498 = vperm.xlu0 %497, %v364
      %v499 = vpop.permute.xlu0 %498
      %502 = vset.pattern.permute.xlu0 0
      %503 = vperm.xlu0 %502, %v365
      %v504 = vpop.permute.xlu0 %503
      %507 = vset.pattern.permute.xlu0 0
      %508 = vperm.xlu0 %507, %v366
      %v509 = vpop.permute.xlu0 %508
      %512 = vset.pattern.permute.xlu0 0
      %513 = vperm.xlu0 %512, %v367
      %v514 = vpop.permute.xlu0 %513
      %517 = vset.pattern.permute.xlu0 0
      %518 = vperm.xlu0 %517, %v368
      %v519 = vpop.permute.xlu0 %518
      %522 = vset.pattern.permute.xlu0 0
      %523 = vperm.xlu0 %522, %v369
      %v524 = vpop.permute.xlu0 %523
      %527 = vset.pattern.permute.xlu0 0
      %528 = vperm.xlu0 %527, %v370
      %v529 = vpop.permute.xlu0 %528
      %532 = vset.pattern.permute.xlu0 0
      %533 = vperm.xlu0 %532, %v371
      %v534 = vpop.permute.xlu0 %533
      %537 = vset.pattern.permute.xlu0 0
      %538 = vperm.xlu0 %537, %v372
      %v539 = vpop.permute.xlu0 %538
      %542 = vset.pattern.permute.xlu0 0
      %543 = vperm.xlu0 %542, %v373
      %v544 = vpop.permute.xlu0 %543
      %547 = vset.pattern.permute.xlu0 0
      %548 = vperm.xlu0 %547, %v374
      %v549 = vpop.permute.xlu0 %548
      %552 = vset.pattern.permute.xlu0 0
      %553 = vperm.xlu0 %552, %v375
      %v554 = vpop.permute.xlu0 %553
      %557 = vset.pattern.permute.xlu0 0
      %558 = vperm.xlu0 %557, %v376
      %v559 = vpop.permute.xlu0 %558
      %562 = vset.pattern.permute.xlu0 0
      %563 = vperm.xlu0 %562, %v377
      %v564 = vpop.permute.xlu0 %563
      %567 = vset.pattern.permute.xlu0 0
      %568 = vperm.xlu0 %567, %v378
      %v569 = vpop.permute.xlu0 %568
      %572 = vset.pattern.permute.xlu0 0
      %573 = vperm.xlu0 %572, %v379
      %v574 = vpop.permute.xlu0 %573
      %577 = vset.pattern.permute.xlu0 0
      %578 = vperm.xlu0 %577, %v380
      %v579 = vpop.permute.xlu0 %578
      %582 = vset.pattern.permute.xlu0 0
      %583 = vperm.xlu0 %582, %v381
      %v584 = vpop.permute.xlu0 %583
      %587 = vset.pattern.permute.xlu0 0
      %588 = vperm.xlu0 %587, %v382
      %v589 = vpop.permute.xlu0 %588
      %592 = vset.pattern.permute.xlu0 0
      %593 = vperm.xlu0 %592, %v383
      %v594 = vpop.permute.xlu0 %593
      %597 = vset.pattern.permute.xlu0 0
      %598 = vperm.xlu0 %597, %v384
      %v599 = vpop.permute.xlu0 %598
      %602 = vset.pattern.permute.xlu0 0
      %603 = vperm.xlu0 %602, %v385
      %v604 = vpop.permute.xlu0 %603
      %607 = vset.pattern.permute.xlu0 0
      %608 = vperm.xlu0 %607, %v386
      %v609 = vpop.permute.xlu0 %608
      %612 = vset.pattern.permute.xlu0 0
      %613 = vperm.xlu0 %612, %v387
      %v614 = vpop.permute.xlu0 %613
      %617 = vset.pattern.permute.xlu0 0
      %618 = vperm.xlu0 %617, %v388
      %v619 = vpop.permute.xlu0 %618
      %622 = vset.pattern.permute.xlu0 0
      %623 = vperm.xlu0 %622, %v389
      %v624 = vpop.permute.xlu0 %623
      %627 = vset.pattern.permute.xlu0 0
      %628 = vperm.xlu0 %627, %v390
      %v629 = vpop.permute.xlu0 %628
      %632 = vset.pattern.permute.xlu0 0
      %633 = vperm.xlu0 %632, %v391
      %v634 = vpop.permute.xlu0 %633
      %637 = vset.pattern.permute.xlu0 0
      %638 = vperm.xlu0 %637, %v392
      %v639 = vpop.permute.xlu0 %638
      %642 = vset.pattern.permute.xlu0 0
      %643 = vperm.xlu0 %642, %v393
      %v644 = vpop.permute.xlu0 %643
      %647 = vset.pattern.permute.xlu0 0
      %648 = vperm.xlu0 %647, %v394
      %v649 = vpop.permute.xlu0 %648
      %652 = vset.pattern.permute.xlu0 0
      %653 = vperm.xlu0 %652, %v395
      %v654 = vpop.permute.xlu0 %653
      %657 = vset.pattern.permute.xlu0 0
      %658 = vperm.xlu0 %657, %v396
      %v659 = vpop.permute.xlu0 %658
      %662 = vset.pattern.permute.xlu0 0
      %663 = vperm.xlu0 %662, %v397
      %v664 = vpop.permute.xlu0 %663
      %667 = vset.pattern.permute.xlu0 0
      %668 = vperm.xlu0 %667, %v398
      %v669 = vpop.permute.xlu0 %668
      %672 = vset.pattern.permute.xlu0 0
      %673 = vperm.xlu0 %672, %v399
      %v674 = vpop.permute.xlu0 %673
      %677 = vset.pattern.permute.xlu0 0
      %678 = vperm.xlu0 %677, %v400
      %v679 = vpop.permute.xlu0 %678
      %682 = vset.pattern.permute.xlu0 0
      %683 = vperm.xlu0 %682, %v401
      %v684 = vpop.permute.xlu0 %683
      %687 = vset.pattern.permute.xlu0 0
      %688 = vperm.xlu0 %687, %v402
      %v689 = vpop.permute.xlu0 %688
      %692 = vset.pattern.permute.xlu0 0
      %693 = vperm.xlu0 %692, %v403
      %v694 = vpop.permute.xlu0 %693
      %697 = vset.pattern.permute.xlu0 0
      %698 = vperm.xlu0 %697, %v404
      %v699 = vpop.permute.xlu0 %698
      %702 = vset.pattern.permute.xlu0 0
      %703 = vperm.xlu0 %702, %v405
      %v704 = vpop.permute.xlu0 %703
      %707 = vset.pattern.permute.xlu0 0
      %708 = vperm.xlu0 %707, %v406
      %v709 = vpop.permute.xlu0 %708
      %712 = vset.pattern.permute.xlu0 0
      %713 = vperm.xlu0 %712, %v407
      %v714 = vpop.permute.xlu0 %713
      %717 = vset.pattern.permute.xlu0 0
      %718 = vperm.xlu0 %717, %v408
      %v719 = vpop.permute.xlu0 %718
      %722 = vset.pattern.permute.xlu0 0
      %723 = vperm.xlu0 %722, %v409
      %v724 = vpop.permute.xlu0 %723
      %727 = vset.pattern.permute.xlu0 0
      %728 = vperm.xlu0 %727, %v410
      %v729 = vpop.permute.xlu0 %728
      %vm731 = vcmask 64512
      %v733 = vsel %vm731, %v281, 0
      %v736 = vsel %vm731, %v282, 0
      %v739 = vsel %vm731, %v283, 0
      %v742 = vsel %vm731, %v284, 0
      %v745 = vsel %vm731, %v285, 0
      %v748 = vsel %vm731, %v286, 0
      %v751 = vsel %vm731, %v287, 0
      %v754 = vsel %vm731, %v288, 0
      %v757 = vsel %vm731, %v289, 0
      %v760 = vsel %vm731, %v290, 0
      %v763 = vsel %vm731, %v291, 0
      %v766 = vsel %vm731, %v292, 0
      %v769 = vsel %vm731, %v293, 0
      %v772 = vsel %vm731, %v294, 0
      %v775 = vsel %vm731, %v295, 0
      %v778 = vsel %vm731, %v296, 0
      %v781 = vsel %vm731, %v297, 0
      %v784 = vsel %vm731, %v298, 0
      %v787 = vsel %vm731, %v299, 0
      %v790 = vsel %vm731, %v300, 0
      %v793 = vsel %vm731, %v301, 0
      %v796 = vsel %vm731, %v302, 0
      %v799 = vsel %vm731, %v303, 0
      %v802 = vsel %vm731, %v304, 0
      %v805 = vsel %vm731, %v305, 0
      %v808 = vsel %vm731, %v306, 0
      %v811 = vsel %vm731, %v307, 0
      %v814 = vsel %vm731, %v308, 0
      %v817 = vsel %vm731, %v309, 0
      %v820 = vsel %vm731, %v310, 0
      %v823 = vsel %vm731, %v311, 0
      %v826 = vsel %vm731, %v312, 0
      %v829 = vsel %vm731, %v313, 0
      %v832 = vsel %vm731, %v314, 0
      %v835 = vsel %vm731, %v315, 0
      %v838 = vsel %vm731, %v316, 0
      %v841 = vsel %vm731, %v317, 0
      %v844 = vsel %vm731, %v318, 0
      %v847 = vsel %vm731, %v319, 0
      %v850 = vsel %vm731, %v320, 0
      %v853 = vsel %vm731, %v321, 0
      %v856 = vsel %vm731, %v322, 0
      %v859 = vsel %vm731, %v323, 0
      %v862 = vsel %vm731, %v324, 0
      %v865 = vsel %vm731, %v325, 0
      %v868 = vsel %vm731, %v326, 0
      %v871 = vsel %vm731, %v327, 0
      %v874 = vsel %vm731, %v328, 0
      %v877 = vsel %vm731, %v329, 0
      %v880 = vsel %vm731, %v330, 0
      %v883 = vsel %vm731, %v331, 0
      %v886 = vsel %vm731, %v332, 0
      %v889 = vsel %vm731, %v333, 0
      %v892 = vsel %vm731, %v334, 0
      %v895 = vsel %vm731, %v335, 0
      %v898 = vsel %vm731, %v336, 0
      %v901 = vsel %vm731, %v337, 0
      %v904 = vsel %vm731, %v338, 0
      %v907 = vsel %vm731, %v339, 0
      %v910 = vsel %vm731, %v340, 0
      %v913 = vsel %vm731, %v341, 0
      %v916 = vsel %vm731, %v342, 0
      %v919 = vsel %vm731, %v343, 0
      %v922 = vsel %vm731, %v344, 0
      %924 = vmatprep.subr.mxu0 %v346
      %925 = vmatpush1.msra.mxu0 %v345
      %926 = vmatprep.subr.mxu0 0.0
      %927 = vmatpush1.msra.mxu0 0.0
      %928 = vmatprep.subr.mxu0 0.0
      %929 = vmatpush1.msra.mxu0 0.0
      %930 = vmatprep.subr.mxu0 0.0
      %931 = vmatpush1.msra.mxu0 0.0
      %932 = vmatprep.subr.mxu0 0.0
      %933 = vmatpush1.msra.mxu0 0.0
      %934 = vmatprep.subr.mxu0 0.0
      %935 = vmatpush1.msra.mxu0 0.0
      %936 = vmatprep.subr.mxu0 0.0
      %937 = vmatpush1.msra.mxu0 0.0
      %938 = vmatprep.subr.mxu0 0.0
      %939 = vmatpush1.msra.mxu0 0.0
      %940 = vmatprep.subr.mxu0 0.0
      %941 = vmatpush1.msra.mxu0 0.0
      %942 = vmatprep.subr.mxu0 0.0
      %943 = vmatpush1.msra.mxu0 0.0
      %944 = vmatprep.subr.mxu0 0.0
      %945 = vmatpush1.msra.mxu0 0.0
      %946 = vmatprep.subr.mxu0 0.0
      %947 = vmatpush1.msra.mxu0 0.0
      %948 = vmatprep.subr.mxu0 0.0
      %949 = vmatpush1.msra.mxu0 0.0
      %950 = vmatprep.subr.mxu0 0.0
      %951 = vmatpush1.msra.mxu0 0.0
      %952 = vmatprep.subr.mxu0 0.0
      %953 = vmatpush1.msra.mxu0 0.0
      %954 = vmatprep.subr.mxu0 0.0
      %955 = vmatpush1.msra.mxu0 0.0
      %956 = vmatprep.subr.mxu0 0.0
      %957 = vmatpush1.msra.mxu0 0.0
      %958 = vmatprep.subr.mxu0 0.0
      %959 = vmatpush1.msra.mxu0 0.0
      %960 = vmatprep.subr.mxu0 0.0
      %961 = vmatpush1.msra.mxu0 0.0
      %962 = vmatprep.subr.mxu0 0.0
      %963 = vmatpush1.msra.mxu0 0.0
      %964 = vmatprep.subr.mxu0 0.0
      %965 = vmatpush1.msra.mxu0 0.0
      %966 = vmatprep.subr.mxu0 0.0
      %967 = vmatpush1.msra.mxu0 0.0
      %968 = vmatprep.subr.mxu0 0.0
      %969 = vmatpush1.msra.mxu0 0.0
      %970 = vmatprep.subr.mxu0 0.0
      %971 = vmatpush1.msra.mxu0 0.0
      %972 = vmatprep.subr.mxu0 0.0
      %973 = vmatpush1.msra.mxu0 0.0
      %974 = vmatprep.subr.mxu0 0.0
      %975 = vmatpush1.msra.mxu0 0.0
      %976 = vmatprep.subr.mxu0 0.0
      %977 = vmatpush1.msra.mxu0 0.0
      %978 = vmatprep.subr.mxu0 0.0
      %979 = vmatpush1.msra.mxu0 0.0
      %980 = vmatprep.subr.mxu0 0.0
      %981 = vmatpush1.msra.mxu0 0.0
      %982 = vmatprep.subr.mxu0 0.0
      %983 = vmatpush1.msra.mxu0 0.0
      %984 = vmatprep.subr.mxu0 0.0
      %985 = vmatpush1.msra.mxu0 0.0
      %986 = vmatprep.subr.mxu0 0.0
      %987 = vmatpush1.msra.mxu0 0.0
      %988 = vmatprep.mubr.f32.mxu0 0.0
      %989 = vmatmul.mubr.f32.gmra.mrb[0].mxu0 %v733
      %v990 = vpop.f32.mrb[0].mxu0
      %v991 = vadd.f32 %v414, %v990
      %v992 = vpop.f32.mrb[0].mxu0
      %v993 = vadd.f32 %v414, %v992
      %994 = vmatprep.mubr.f32.mxu0 0.0
      %995 = vmatmul.mubr.f32.gmra.mrb[0].mxu0 %v736
      %v996 = vpop.f32.mrb[0].mxu0
      %v997 = vadd.f32 %v419, %v996
      %v998 = vpop.f32.mrb[0].mxu0
      %v999 = vadd.f32 %v419, %v998
      %1000 = vmatprep.mubr.f32.mxu0 0.0
      %1001 = vmatmul.mubr.f32.gmra.mrb[0].mxu0 %v739
      %v1002 = vpop.f32.mrb[0].mxu0
      %v1003 = vadd.f32 %v424, %v1002
      %v1004 = vpop.f32.mrb[0].mxu0
      %v1005 = vadd.f32 %v424, %v1004
      %1006 = vmatprep.mubr.f32.mxu0 0.0
      %1007 = vmatmul.mubr.f32.gmra.mrb[0].mxu0 %v742
      %v1008 = vpop.f32.mrb[0].mxu0
      %v1009 = vadd.f32 %v429, %v1008
      %v1010 = vpop.f32.mrb[0].mxu0
      %v1011 = vadd.f32 %v429, %v1010
      %1012 = vmatprep.mubr.f32.mxu0 0.0
      %1013 = vmatmul.mubr.f32.gmra.mrb[0].mxu0 %v745
      %v1014 = vpop.f32.mrb[0].mxu0
      %v1015 = vadd.f32 %v434, %v1014
      %v1016 = vpop.f32.mrb[0].mxu0
      %v1017 = vadd.f32 %v434, %v1016
      %1018 = vmatprep.mubr.f32.mxu0 0.0
      %1019 = vmatmul.mubr.f32.gmra.mrb[0].mxu0 %v748
      %v1020 = vpop.f32.mrb[0].mxu0
      %v1021 = vadd.f32 %v439, %v1020
      %v1022 = vpop.f32.mrb[0].mxu0
      %v1023 = vadd.f32 %v439, %v1022
      %1024 = vmatprep.mubr.f32.mxu0 0.0
      %1025 = vmatmul.mubr.f32.gmra.mrb[0].mxu0 %v751
      %v1026 = vpop.f32.mrb[0].mxu0
      %v1027 = vadd.f32 %v444, %v1026
      %v1028 = vpop.f32.mrb[0].mxu0
      %v1029 = vadd.f32 %v444, %v1028
      %1030 = vmatprep.mubr.f32.mxu0 0.0
      %1031 = vmatmul.mubr.f32.gmra.mrb[0].mxu0 %v754
      %v1032 = vpop.f32.mrb[0].mxu0
      %v1033 = vadd.f32 %v449, %v1032
      %v1034 = vpop.f32.mrb[0].mxu0
      %v1035 = vadd.f32 %v449, %v1034
      %1036 = vmatprep.mubr.f32.mxu0 0.0
      %1037 = vmatmul.mubr.f32.gmra.mrb[0].mxu0 %v757
      %v1038 = vpop.f32.mrb[0].mxu0
      %v1039 = vadd.f32 %v454, %v1038
      %v1040 = vpop.f32.mrb[0].mxu0
      %v1041 = vadd.f32 %v454, %v1040
      %1042 = vmatprep.mubr.f32.mxu0 0.0
      %1043 = vmatmul.mubr.f32.gmra.mrb[0].mxu0 %v760
      %v1044 = vpop.f32.mrb[0].mxu0
      %v1045 = vadd.f32 %v459, %v1044
      %v1046 = vpop.f32.mrb[0].mxu0
      %v1047 = vadd.f32 %v459, %v1046
      %1048 = vmatprep.mubr.f32.mxu0 0.0
      %1049 = vmatmul.mubr.f32.gmra.mrb[0].mxu0 %v763
      %v1050 = vpop.f32.mrb[0].mxu0
      %v1051 = vadd.f32 %v464, %v1050
      %v1052 = vpop.f32.mrb[0].mxu0
      %v1053 = vadd.f32 %v464, %v1052
      %1054 = vmatprep.mubr.f32.mxu0 0.0
      %1055 = vmatmul.mubr.f32.gmra.mrb[0].mxu0 %v766
      %v1056 = vpop.f32.mrb[0].mxu0
      %v1057 = vadd.f32 %v469, %v1056
      %v1058 = vpop.f32.mrb[0].mxu0
      %v1059 = vadd.f32 %v469, %v1058
      %1060 = vmatprep.mubr.f32.mxu0 0.0
      %1061 = vmatmul.mubr.f32.gmra.mrb[0].mxu0 %v769
      %v1062 = vpop.f32.mrb[0].mxu0
      %v1063 = vadd.f32 %v474, %v1062
      %v1064 = vpop.f32.mrb[0].mxu0
      %v1065 = vadd.f32 %v474, %v1064
      %1066 = vmatprep.mubr.f32.mxu0 0.0
      %1067 = vmatmul.mubr.f32.gmra.mrb[0].mxu0 %v772
      %v1068 = vpop.f32.mrb[0].mxu0
      %v1069 = vadd.f32 %v479, %v1068
      %v1070 = vpop.f32.mrb[0].mxu0
      %v1071 = vadd.f32 %v479, %v1070
      %1072 = vmatprep.mubr.f32.mxu0 0.0
      %1073 = vmatmul.mubr.f32.gmra.mrb[0].mxu0 %v775
      %v1074 = vpop.f32.mrb[0].mxu0
      %v1075 = vadd.f32 %v484, %v1074
      %v1076 = vpop.f32.mrb[0].mxu0
      %v1077 = vadd.f32 %v484, %v1076
      %1078 = vmatprep.mubr.f32.mxu0 0.0
      %1079 = vmatmul.mubr.f32.gmra.mrb[0].mxu0 %v778
      %v1080 = vpop.f32.mrb[0].mxu0
      %v1081 = vadd.f32 %v489, %v1080
      %v1082 = vpop.f32.mrb[0].mxu0
      %v1083 = vadd.f32 %v489, %v1082
      %1084 = vmatprep.mubr.f32.mxu0 0.0
      %1085 = vmatmul.mubr.f32.gmra.mrb[0].mxu0 %v781
      %v1086 = vpop.f32.mrb[0].mxu0
      %v1087 = vadd.f32 %v494, %v1086
      %v1088 = vpop.f32.mrb[0].mxu0
      %v1089 = vadd.f32 %v494, %v1088
      %1090 = vmatprep.mubr.f32.mxu0 0.0
      %1091 = vmatmul.mubr.f32.gmra.mrb[0].mxu0 %v784
      %v1092 = vpop.f32.mrb[0].mxu0
      %v1093 = vadd.f32 %v499, %v1092
      %v1094 = vpop.f32.mrb[0].mxu0
      %v1095 = vadd.f32 %v499, %v1094
      %1096 = vmatprep.mubr.f32.mxu0 0.0
      %1097 = vmatmul.mubr.f32.gmra.mrb[0].mxu0 %v787
      %v1098 = vpop.f32.mrb[0].mxu0
      %v1099 = vadd.f32 %v504, %v1098
      %v1100 = vpop.f32.mrb[0].mxu0
      %v1101 = vadd.f32 %v504, %v1100
      %1102 = vmatprep.mubr.f32.mxu0 0.0
      %1103 = vmatmul.mubr.f32.gmra.mrb[0].mxu0 %v790
      %v1104 = vpop.f32.mrb[0].mxu0
      %v1105 = vadd.f32 %v509, %v1104
      %v1106 = vpop.f32.mrb[0].mxu0
      %v1107 = vadd.f32 %v509, %v1106
      %1108 = vmatprep.mubr.f32.mxu0 0.0
      %1109 = vmatmul.mubr.f32.gmra.mrb[0].mxu0 %v793
      %v1110 = vpop.f32.mrb[0].mxu0
      %v1111 = vadd.f32 %v514, %v1110
      %v1112 = vpop.f32.mrb[0].mxu0
      %v1113 = vadd.f32 %v514, %v1112
      %1114 = vmatprep.mubr.f32.mxu0 0.0
      %1115 = vmatmul.mubr.f32.gmra.mrb[0].mxu0 %v796
      %v1116 = vpop.f32.mrb[0].mxu0
      %v1117 = vadd.f32 %v519, %v1116
      %v1118 = vpop.f32.mrb[0].mxu0
      %v1119 = vadd.f32 %v519, %v1118
      %1120 = vmatprep.mubr.f32.mxu0 0.0
      %1121 = vmatmul.mubr.f32.gmra.mrb[0].mxu0 %v799
      %v1122 = vpop.f32.mrb[0].mxu0
      %v1123 = vadd.f32 %v524, %v1122
      %v1124 = vpop.f32.mrb[0].mxu0
      %v1125 = vadd.f32 %v524, %v1124
      %1126 = vmatprep.mubr.f32.mxu0 0.0
      %1127 = vmatmul.mubr.f32.gmra.mrb[0].mxu0 %v802
      %v1128 = vpop.f32.mrb[0].mxu0
      %v1129 = vadd.f32 %v529, %v1128
      %v1130 = vpop.f32.mrb[0].mxu0
      %v1131 = vadd.f32 %v529, %v1130
      %1132 = vmatprep.mubr.f32.mxu0 0.0
      %1133 = vmatmul.mubr.f32.gmra.mrb[0].mxu0 %v805
      %v1134 = vpop.f32.mrb[0].mxu0
      %v1135 = vadd.f32 %v534, %v1134
      %v1136 = vpop.f32.mrb[0].mxu0
      %v1137 = vadd.f32 %v534, %v1136
      %1138 = vmatprep.mubr.f32.mxu0 0.0
      %1139 = vmatmul.mubr.f32.gmra.mrb[0].mxu0 %v808
      %v1140 = vpop.f32.mrb[0].mxu0
      %v1141 = vadd.f32 %v539, %v1140
      %v1142 = vpop.f32.mrb[0].mxu0
      %v1143 = vadd.f32 %v539, %v1142
      %1144 = vmatprep.mubr.f32.mxu0 0.0
      %1145 = vmatmul.mubr.f32.gmra.mrb[0].mxu0 %v811
      %v1146 = vpop.f32.mrb[0].mxu0
      %v1147 = vadd.f32 %v544, %v1146
      %v1148 = vpop.f32.mrb[0].mxu0
      %v1149 = vadd.f32 %v544, %v1148
      %1150 = vmatprep.mubr.f32.mxu0 0.0
      %1151 = vmatmul.mubr.f32.gmra.mrb[0].mxu0 %v814
      %v1152 = vpop.f32.mrb[0].mxu0
      %v1153 = vadd.f32 %v549, %v1152
      %v1154 = vpop.f32.mrb[0].mxu0
      %v1155 = vadd.f32 %v549, %v1154
      %1156 = vmatprep.mubr.f32.mxu0 0.0
      %1157 = vmatmul.mubr.f32.gmra.mrb[0].mxu0 %v817
      %v1158 = vpop.f32.mrb[0].mxu0
      %v1159 = vadd.f32 %v554, %v1158
      %v1160 = vpop.f32.mrb[0].mxu0
      %v1161 = vadd.f32 %v554, %v1160
      %1162 = vmatprep.mubr.f32.mxu0 0.0
      %1163 = vmatmul.mubr.f32.gmra.mrb[0].mxu0 %v820
      %v1164 = vpop.f32.mrb[0].mxu0
      %v1165 = vadd.f32 %v559, %v1164
      %v1166 = vpop.f32.mrb[0].mxu0
      %v1167 = vadd.f32 %v559, %v1166
      %1168 = vmatprep.mubr.f32.mxu0 0.0
      %1169 = vmatmul.mubr.f32.gmra.mrb[0].mxu0 %v823
      %v1170 = vpop.f32.mrb[0].mxu0
      %v1171 = vadd.f32 %v564, %v1170
      %v1172 = vpop.f32.mrb[0].mxu0
      %v1173 = vadd.f32 %v564, %v1172
      %1174 = vmatprep.mubr.f32.mxu0 0.0
      %1175 = vmatmul.mubr.f32.gmra.mrb[0].mxu0 %v826
      %v1176 = vpop.f32.mrb[0].mxu0
      %v1177 = vadd.f32 %v569, %v1176
      %v1178 = vpop.f32.mrb[0].mxu0
      %v1179 = vadd.f32 %v569, %v1178
      %1180 = vmatprep.mubr.f32.mxu0 0.0
      %1181 = vmatmul.mubr.f32.gmra.mrb[0].mxu0 %v829
      %v1182 = vpop.f32.mrb[0].mxu0
      %v1183 = vadd.f32 %v574, %v1182
      %v1184 = vpop.f32.mrb[0].mxu0
      %v1185 = vadd.f32 %v574, %v1184
      %1186 = vmatprep.mubr.f32.mxu0 0.0
      %1187 = vmatmul.mubr.f32.gmra.mrb[0].mxu0 %v832
      %v1188 = vpop.f32.mrb[0].mxu0
      %v1189 = vadd.f32 %v579, %v1188
      %v1190 = vpop.f32.mrb[0].mxu0
      %v1191 = vadd.f32 %v579, %v1190
      %1192 = vmatprep.mubr.f32.mxu0 0.0
      %1193 = vmatmul.mubr.f32.gmra.mrb[0].mxu0 %v835
      %v1194 = vpop.f32.mrb[0].mxu0
      %v1195 = vadd.f32 %v584, %v1194
      %v1196 = vpop.f32.mrb[0].mxu0
      %v1197 = vadd.f32 %v584, %v1196
      %1198 = vmatprep.mubr.f32.mxu0 0.0
      %1199 = vmatmul.mubr.f32.gmra.mrb[0].mxu0 %v838
      %v1200 = vpop.f32.mrb[0].mxu0
      %v1201 = vadd.f32 %v589, %v1200
      %v1202 = vpop.f32.mrb[0].mxu0
      %v1203 = vadd.f32 %v589, %v1202
      %1204 = vmatprep.mubr.f32.mxu0 0.0
      %1205 = vmatmul.mubr.f32.gmra.mrb[0].mxu0 %v841
      %v1206 = vpop.f32.mrb[0].mxu0
      %v1207 = vadd.f32 %v594, %v1206
      %v1208 = vpop.f32.mrb[0].mxu0
      %v1209 = vadd.f32 %v594, %v1208
      %1210 = vmatprep.mubr.f32.mxu0 0.0
      %1211 = vmatmul.mubr.f32.gmra.mrb[0].mxu0 %v844
      %v1212 = vpop.f32.mrb[0].mxu0
      %v1213 = vadd.f32 %v599, %v1212
      %v1214 = vpop.f32.mrb[0].mxu0
      %v1215 = vadd.f32 %v599, %v1214
      %1216 = vmatprep.mubr.f32.mxu0 0.0
      %1217 = vmatmul.mubr.f32.gmra.mrb[0].mxu0 %v847
      %v1218 = vpop.f32.mrb[0].mxu0
      %v1219 = vadd.f32 %v604, %v1218
      %v1220 = vpop.f32.mrb[0].mxu0
      %v1221 = vadd.f32 %v604, %v1220
      %1222 = vmatprep.mubr.f32.mxu0 0.0
      %1223 = vmatmul.mubr.f32.gmra.mrb[0].mxu0 %v850
      %v1224 = vpop.f32.mrb[0].mxu0
      %v1225 = vadd.f32 %v609, %v1224
      %v1226 = vpop.f32.mrb[0].mxu0
      %v1227 = vadd.f32 %v609, %v1226
      %1228 = vmatprep.mubr.f32.mxu0 0.0
      %1229 = vmatmul.mubr.f32.gmra.mrb[0].mxu0 %v853
      %v1230 = vpop.f32.mrb[0].mxu0
      %v1231 = vadd.f32 %v614, %v1230
      %v1232 = vpop.f32.mrb[0].mxu0
      %v1233 = vadd.f32 %v614, %v1232
      %1234 = vmatprep.mubr.f32.mxu0 0.0
      %1235 = vmatmul.mubr.f32.gmra.mrb[0].mxu0 %v856
      %v1236 = vpop.f32.mrb[0].mxu0
      %v1237 = vadd.f32 %v619, %v1236
      %v1238 = vpop.f32.mrb[0].mxu0
      %v1239 = vadd.f32 %v619, %v1238
      %1240 = vmatprep.mubr.f32.mxu0 0.0
      %1241 = vmatmul.mubr.f32.gmra.mrb[0].mxu0 %v859
      %v1242 = vpop.f32.mrb[0].mxu0
      %v1243 = vadd.f32 %v624, %v1242
      %v1244 = vpop.f32.mrb[0].mxu0
      %v1245 = vadd.f32 %v624, %v1244
      %1246 = vmatprep.mubr.f32.mxu0 0.0
      %1247 = vmatmul.mubr.f32.gmra.mrb[0].mxu0 %v862
      %v1248 = vpop.f32.mrb[0].mxu0
      %v1249 = vadd.f32 %v629, %v1248
      %v1250 = vpop.f32.mrb[0].mxu0
      %v1251 = vadd.f32 %v629, %v1250
      %1252 = vmatprep.mubr.f32.mxu0 0.0
      %1253 = vmatmul.mubr.f32.gmra.mrb[0].mxu0 %v865
      %v1254 = vpop.f32.mrb[0].mxu0
      %v1255 = vadd.f32 %v634, %v1254
      %v1256 = vpop.f32.mrb[0].mxu0
      %v1257 = vadd.f32 %v634, %v1256
      %1258 = vmatprep.mubr.f32.mxu0 0.0
      %1259 = vmatmul.mubr.f32.gmra.mrb[0].mxu0 %v868
      %v1260 = vpop.f32.mrb[0].mxu0
      %v1261 = vadd.f32 %v639, %v1260
      %v1262 = vpop.f32.mrb[0].mxu0
      %v1263 = vadd.f32 %v639, %v1262
      %1264 = vmatprep.mubr.f32.mxu0 0.0
      %1265 = vmatmul.mubr.f32.gmra.mrb[0].mxu0 %v871
      %v1266 = vpop.f32.mrb[0].mxu0
      %v1267 = vadd.f32 %v644, %v1266
      %v1268 = vpop.f32.mrb[0].mxu0
      %v1269 = vadd.f32 %v644, %v1268
      %1270 = vmatprep.mubr.f32.mxu0 0.0
      %1271 = vmatmul.mubr.f32.gmra.mrb[0].mxu0 %v874
      %v1272 = vpop.f32.mrb[0].mxu0
      %v1273 = vadd.f32 %v649, %v1272
      %v1274 = vpop.f32.mrb[0].mxu0
      %v1275 = vadd.f32 %v649, %v1274
      %1276 = vmatprep.mubr.f32.mxu0 0.0
      %1277 = vmatmul.mubr.f32.gmra.mrb[0].mxu0 %v877
      %v1278 = vpop.f32.mrb[0].mxu0
      %v1279 = vadd.f32 %v654, %v1278
      %v1280 = vpop.f32.mrb[0].mxu0
      %v1281 = vadd.f32 %v654, %v1280
      %1282 = vmatprep.mubr.f32.mxu0 0.0
      %1283 = vmatmul.mubr.f32.gmra.mrb[0].mxu0 %v880
      %v1284 = vpop.f32.mrb[0].mxu0
      %v1285 = vadd.f32 %v659, %v1284
      %v1286 = vpop.f32.mrb[0].mxu0
      %v1287 = vadd.f32 %v659, %v1286
      %1288 = vmatprep.mubr.f32.mxu0 0.0
      %1289 = vmatmul.mubr.f32.gmra.mrb[0].mxu0 %v883
      %v1290 = vpop.f32.mrb[0].mxu0
      %v1291 = vadd.f32 %v664, %v1290
      %v1292 = vpop.f32.mrb[0].mxu0
      %v1293 = vadd.f32 %v664, %v1292
      %1294 = vmatprep.mubr.f32.mxu0 0.0
      %1295 = vmatmul.mubr.f32.gmra.mrb[0].mxu0 %v886
      %v1296 = vpop.f32.mrb[0].mxu0
      %v1297 = vadd.f32 %v669, %v1296
      %v1298 = vpop.f32.mrb[0].mxu0
      %v1299 = vadd.f32 %v669, %v1298
      %1300 = vmatprep.mubr.f32.mxu0 0.0
      %1301 = vmatmul.mubr.f32.gmra.mrb[0].mxu0 %v889
      %v1302 = vpop.f32.mrb[0].mxu0
      %v1303 = vadd.f32 %v674, %v1302
      %v1304 = vpop.f32.mrb[0].mxu0
      %v1305 = vadd.f32 %v674, %v1304
      %1306 = vmatprep.mubr.f32.mxu0 0.0
      %1307 = vmatmul.mubr.f32.gmra.mrb[0].mxu0 %v892
      %v1308 = vpop.f32.mrb[0].mxu0
      %v1309 = vadd.f32 %v679, %v1308
      %v1310 = vpop.f32.mrb[0].mxu0
      %v1311 = vadd.f32 %v679, %v1310
      %1312 = vmatprep.mubr.f32.mxu0 0.0
      %1313 = vmatmul.mubr.f32.gmra.mrb[0].mxu0 %v895
      %v1314 = vpop.f32.mrb[0].mxu0
      %v1315 = vadd.f32 %v684, %v1314
      %v1316 = vpop.f32.mrb[0].mxu0
      %v1317 = vadd.f32 %v684, %v1316
      %1318 = vmatprep.mubr.f32.mxu0 0.0
      %1319 = vmatmul.mubr.f32.gmra.mrb[0].mxu0 %v898
      %v1320 = vpop.f32.mrb[0].mxu0
      %v1321 = vadd.f32 %v689, %v1320
      %v1322 = vpop.f32.mrb[0].mxu0
      %v1323 = vadd.f32 %v689, %v1322
      %1324 = vmatprep.mubr.f32.mxu0 0.0
      %1325 = vmatmul.mubr.f32.gmra.mrb[0].mxu0 %v901
      %v1326 = vpop.f32.mrb[0].mxu0
      %v1327 = vadd.f32 %v694, %v1326
      %v1328 = vpop.f32.mrb[0].mxu0
      %v1329 = vadd.f32 %v694, %v1328
      %1330 = vmatprep.mubr.f32.mxu0 0.0
      %1331 = vmatmul.mubr.f32.gmra.mrb[0].mxu0 %v904
      %v1332 = vpop.f32.mrb[0].mxu0
      %v1333 = vadd.f32 %v699, %v1332
      %v1334 = vpop.f32.mrb[0].mxu0
      %v1335 = vadd.f32 %v699, %v1334
      %1336 = vmatprep.mubr.f32.mxu0 0.0
      %1337 = vmatmul.mubr.f32.gmra.mrb[0].mxu0 %v907
      %v1338 = vpop.f32.mrb[0].mxu0
      %v1339 = vadd.f32 %v704, %v1338
      %v1340 = vpop.f32.mrb[0].mxu0
      %v1341 = vadd.f32 %v704, %v1340
      %1342 = vmatprep.mubr.f32.mxu0 0.0
      %1343 = vmatmul.mubr.f32.gmra.mrb[0].mxu0 %v910
      %v1344 = vpop.f32.mrb[0].mxu0
      %v1345 = vadd.f32 %v709, %v1344
      %v1346 = vpop.f32.mrb[0].mxu0
      %v1347 = vadd.f32 %v709, %v1346
      %1348 = vmatprep.mubr.f32.mxu0 0.0
      %1349 = vmatmul.mubr.f32.gmra.mrb[0].mxu0 %v913
      %v1350 = vpop.f32.mrb[0].mxu0
      %v1351 = vadd.f32 %v714, %v1350
      %v1352 = vpop.f32.mrb[0].mxu0
      %v1353 = vadd.f32 %v714, %v1352
      %1354 = vmatprep.mubr.f32.mxu0 0.0
      %1355 = vmatmul.mubr.f32.gmra.mrb[0].mxu0 %v916
      %v1356 = vpop.f32.mrb[0].mxu0
      %v1357 = vadd.f32 %v719, %v1356
      %v1358 = vpop.f32.mrb[0].mxu0
      %v1359 = vadd.f32 %v719, %v1358
      %1360 = vmatprep.mubr.f32.mxu0 0.0
      %1361 = vmatmul.mubr.f32.gmra.mrb[0].mxu0 %v919
      %v1362 = vpop.f32.mrb[0].mxu0
      %v1363 = vadd.f32 %v724, %v1362
      %v1364 = vpop.f32.mrb[0].mxu0
      %v1365 = vadd.f32 %v724, %v1364
      %1366 = vmatprep.mubr.f32.mxu0 0.0
      %1367 = vmatmul.mubr.f32.gmra.mrb[0].mxu0 %v922
      %v1368 = vpop.f32.mrb[0].mxu0
      %v1369 = vadd.f32 %v729, %v1368
      %v1370 = vpop.f32.mrb[0].mxu0
      %v1371 = vadd.f32 %v729, %v1370
      %1372 = vdwg.mxu0
      %v1373 = vmax.f32 %v991, 0.0
      %v1374 = vmax.f32 %v993, 0.0
      %v1375 = vmax.f32 %v997, 0.0
      %v1376 = vmax.f32 %v999, 0.0
      %v1377 = vmax.f32 %v1003, 0.0
      %v1378 = vmax.f32 %v1005, 0.0
      %v1379 = vmax.f32 %v1009, 0.0
      %v1380 = vmax.f32 %v1011, 0.0
      %v1381 = vmax.f32 %v1015, 0.0
      %v1382 = vmax.f32 %v1017, 0.0
      %v1383 = vmax.f32 %v1021, 0.0
      %v1384 = vmax.f32 %v1023, 0.0
      %v1385 = vmax.f32 %v1027, 0.0
      %v1386 = vmax.f32 %v1029, 0.0
      %v1387 = vmax.f32 %v1033, 0.0
      %v1388 = vmax.f32 %v1035, 0.0
      %v1389 = vmax.f32 %v1039, 0.0
      %v1390 = vmax.f32 %v1041, 0.0
      %v1391 = vmax.f32 %v1045, 0.0
      %v1392 = vmax.f32 %v1047, 0.0
      %v1393 = vmax.f32 %v1051, 0.0
      %v1394 = vmax.f32 %v1053, 0.0
      %v1395 = vmax.f32 %v1057, 0.0
      %v1396 = vmax.f32 %v1059, 0.0
      %v1397 = vmax.f32 %v1063, 0.0
      %v1398 = vmax.f32 %v1065, 0.0
      %v1399 = vmax.f32 %v1069, 0.0
      %v1400 = vmax.f32 %v1071, 0.0
      %v1401 = vmax.f32 %v1075, 0.0
      %v1402 = vmax.f32 %v1077, 0.0
      %v1403 = vmax.f32 %v1081, 0.0
      %v1404 = vmax.f32 %v1083, 0.0
      %v1405 = vmax.f32 %v1087, 0.0
      %v1406 = vmax.f32 %v1089, 0.0
      %v1407 = vmax.f32 %v1093, 0.0
      %v1408 = vmax.f32 %v1095, 0.0
      %v1409 = vmax.f32 %v1099, 0.0
      %v1410 = vmax.f32 %v1101, 0.0
      %v1411 = vmax.f32 %v1105, 0.0
      %v1412 = vmax.f32 %v1107, 0.0
      %v1413 = vmax.f32 %v1111, 0.0
      %v1414 = vmax.f32 %v1113, 0.0
      %v1415 = vmax.f32 %v1117, 0.0
      %v1416 = vmax.f32 %v1119, 0.0
      %v1417 = vmax.f32 %v1123, 0.0
      %v1418 = vmax.f32 %v1125, 0.0
      %v1419 = vmax.f32 %v1129, 0.0
      %v1420 = vmax.f32 %v1131, 0.0
      %v1421 = vmax.f32 %v1135, 0.0
      %v1422 = vmax.f32 %v1137, 0.0
      %v1423 = vmax.f32 %v1141, 0.0
      %v1424 = vmax.f32 %v1143, 0.0
      %v1425 = vmax.f32 %v1147, 0.0
      %v1426 = vmax.f32 %v1149, 0.0
      %v1427 = vmax.f32 %v1153, 0.0
      %v1428 = vmax.f32 %v1155, 0.0
      %v1429 = vmax.f32 %v1159, 0.0
      %v1430 = vmax.f32 %v1161, 0.0
      %v1431 = vmax.f32 %v1165, 0.0
      %v1432 = vmax.f32 %v1167, 0.0
      %v1433 = vmax.f32 %v1171, 0.0
      %v1434 = vmax.f32 %v1173, 0.0
      %v1435 = vmax.f32 %v1177, 0.0
      %v1436 = vmax.f32 %v1179, 0.0
      %v1437 = vmax.f32 %v1183, 0.0
      %v1438 = vmax.f32 %v1185, 0.0
      %v1439 = vmax.f32 %v1189, 0.0
      %v1440 = vmax.f32 %v1191, 0.0
      %v1441 = vmax.f32 %v1195, 0.0
      %v1442 = vmax.f32 %v1197, 0.0
      %v1443 = vmax.f32 %v1201, 0.0
      %v1444 = vmax.f32 %v1203, 0.0
      %v1445 = vmax.f32 %v1207, 0.0
      %v1446 = vmax.f32 %v1209, 0.0
      %v1447 = vmax.f32 %v1213, 0.0
      %v1448 = vmax.f32 %v1215, 0.0
      %v1449 = vmax.f32 %v1219, 0.0
      %v1450 = vmax.f32 %v1221, 0.0
      %v1451 = vmax.f32 %v1225, 0.0
      %v1452 = vmax.f32 %v1227, 0.0
      %v1453 = vmax.f32 %v1231, 0.0
      %v1454 = vmax.f32 %v1233, 0.0
      %v1455 = vmax.f32 %v1237, 0.0
      %v1456 = vmax.f32 %v1239, 0.0
      %v1457 = vmax.f32 %v1243, 0.0
      %v1458 = vmax.f32 %v1245, 0.0
      %v1459 = vmax.f32 %v1249, 0.0
      %v1460 = vmax.f32 %v1251, 0.0
      %v1461 = vmax.f32 %v1255, 0.0
      %v1462 = vmax.f32 %v1257, 0.0
      %v1463 = vmax.f32 %v1261, 0.0
      %v1464 = vmax.f32 %v1263, 0.0
      %v1465 = vmax.f32 %v1267, 0.0
      %v1466 = vmax.f32 %v1269, 0.0
      %v1467 = vmax.f32 %v1273, 0.0
      %v1468 = vmax.f32 %v1275, 0.0
      %v1469 = vmax.f32 %v1279, 0.0
      %v1470 = vmax.f32 %v1281, 0.0
      %v1471 = vmax.f32 %v1285, 0.0
      %v1472 = vmax.f32 %v1287, 0.0
      %v1473 = vmax.f32 %v1291, 0.0
      %v1474 = vmax.f32 %v1293, 0.0
      %v1475 = vmax.f32 %v1297, 0.0
      %v1476 = vmax.f32 %v1299, 0.0
      %v1477 = vmax.f32 %v1303, 0.0
      %v1478 = vmax.f32 %v1305, 0.0
      %v1479 = vmax.f32 %v1309, 0.0
      %v1480 = vmax.f32 %v1311, 0.0
      %v1481 = vmax.f32 %v1315, 0.0
      %v1482 = vmax.f32 %v1317, 0.0
      %v1483 = vmax.f32 %v1321, 0.0
      %v1484 = vmax.f32 %v1323, 0.0
      %v1485 = vmax.f32 %v1327, 0.0
      %v1486 = vmax.f32 %v1329, 0.0
      %v1487 = vmax.f32 %v1333, 0.0
      %v1488 = vmax.f32 %v1335, 0.0
      %v1489 = vmax.f32 %v1339, 0.0
      %v1490 = vmax.f32 %v1341, 0.0
      %v1491 = vmax.f32 %v1345, 0.0
      %v1492 = vmax.f32 %v1347, 0.0
      %v1493 = vmax.f32 %v1351, 0.0
      %v1494 = vmax.f32 %v1353, 0.0
      %v1495 = vmax.f32 %v1357, 0.0
      %v1496 = vmax.f32 %v1359, 0.0
      %v1497 = vmax.f32 %v1363, 0.0
      %v1498 = vmax.f32 %v1365, 0.0
      %v1499 = vmax.f32 %v1369, 0.0
      %v1500 = vmax.f32 %v1371, 0.0
      %v1501 = vld [vmem:[%s3] sm:$0xff]
      %v1502 = vld [vmem:[%s3 + $0x8] sm:$0xff]
      %v1503 = vld [vmem:[%s3 + $0x10] sm:$0xff]
      %v1504 = vld [vmem:[%s3 + $0x18] sm:$0xff]
      %v1505 = vld [vmem:[%s3 + $0x20] sm:$0xff]
      %v1506 = vld [vmem:[%s3 + $0x28] sm:$0xff]
      %v1507 = vld [vmem:[%s3 + $0x30] sm:$0xff]
      %v1508 = vld [vmem:[%s3 + $0x38] sm:$0xff]
      %v1509 = vld [vmem:[%s3 + $0x40] sm:$0xff]
      %v1510 = vld [vmem:[%s3 + $0x48] sm:$0xff]
      %v1511 = vld [vmem:[%s3 + $0x50] sm:$0xff]
      %v1512 = vld [vmem:[%s3 + $0x58] sm:$0xff]
      %v1513 = vld [vmem:[%s3 + $0x60] sm:$0xff]
      %v1514 = vld [vmem:[%s3 + $0x68] sm:$0xff]
      %v1515 = vld [vmem:[%s3 + $0x70] sm:$0xff]
      %v1516 = vld [vmem:[%s3 + $0x78] sm:$0xff]
      %v1517 = vld [vmem:[%s3 + $0x80] sm:$0xff]
      %v1518 = vld [vmem:[%s3 + $0x88] sm:$0xff]
      %v1519 = vld [vmem:[%s3 + $0x90] sm:$0xff]
      %v1520 = vld [vmem:[%s3 + $0x98] sm:$0xff]
      %v1521 = vld [vmem:[%s3 + $0xa0] sm:$0xff]
      %v1522 = vld [vmem:[%s3 + $0xa8] sm:$0xff]
      %v1523 = vld [vmem:[%s3 + $0xb0] sm:$0xff]
      %v1524 = vld [vmem:[%s3 + $0xb8] sm:$0xff]
      %v1525 = vld [vmem:[%s3 + $0xc0] sm:$0xff]
      %v1526 = vld [vmem:[%s3 + $0xc8] sm:$0xff]
      %v1527 = vld [vmem:[%s3 + $0xd0] sm:$0xff]
      %v1528 = vld [vmem:[%s3 + $0xd8] sm:$0xff]
      %v1529 = vld [vmem:[%s3 + $0xe0] sm:$0xff]
      %v1530 = vld [vmem:[%s3 + $0xe8] sm:$0xff]
      %v1531 = vld [vmem:[%s3 + $0xf0] sm:$0xff]
      %v1532 = vld [vmem:[%s3 + $0xf8] sm:$0xff]
      %v1533 = vld [vmem:[%s3 + $0x100] sm:$0xff]
      %v1534 = vld [vmem:[%s3 + $0x108] sm:$0xff]
      %v1535 = vld [vmem:[%s3 + $0x110] sm:$0xff]
      %v1536 = vld [vmem:[%s3 + $0x118] sm:$0xff]
      %v1537 = vld [vmem:[%s3 + $0x120] sm:$0xff]
      %v1538 = vld [vmem:[%s3 + $0x128] sm:$0xff]
      %v1539 = vld [vmem:[%s3 + $0x130] sm:$0xff]
      %v1540 = vld [vmem:[%s3 + $0x138] sm:$0xff]
      %v1541 = vld [vmem:[%s3 + $0x140] sm:$0xff]
      %v1542 = vld [vmem:[%s3 + $0x148] sm:$0xff]
      %v1543 = vld [vmem:[%s3 + $0x150] sm:$0xff]
      %v1544 = vld [vmem:[%s3 + $0x158] sm:$0xff]
      %v1545 = vld [vmem:[%s3 + $0x160] sm:$0xff]
      %v1546 = vld [vmem:[%s3 + $0x168] sm:$0xff]
      %v1547 = vld [vmem:[%s3 + $0x170] sm:$0xff]
      %v1548 = vld [vmem:[%s3 + $0x178] sm:$0xff]
      %v1549 = vld [vmem:[%s3 + $0x180] sm:$0xff]
      %v1550 = vld [vmem:[%s3 + $0x188] sm:$0xff]
      %v1551 = vld [vmem:[%s3 + $0x190] sm:$0xff]
      %v1552 = vld [vmem:[%s3 + $0x198] sm:$0xff]
      %v1553 = vld [vmem:[%s3 + $0x1a0] sm:$0xff]
      %v1554 = vld [vmem:[%s3 + $0x1a8] sm:$0xff]
      %v1555 = vld [vmem:[%s3 + $0x1b0] sm:$0xff]
      %v1556 = vld [vmem:[%s3 + $0x1b8] sm:$0xff]
      %v1557 = vld [vmem:[%s3 + $0x1c0] sm:$0xff]
      %v1558 = vld [vmem:[%s3 + $0x1c8] sm:$0xff]
      %v1559 = vld [vmem:[%s3 + $0x1d0] sm:$0xff]
      %v1560 = vld [vmem:[%s3 + $0x1d8] sm:$0xff]
      %v1561 = vld [vmem:[%s3 + $0x1e0] sm:$0xff]
      %v1562 = vld [vmem:[%s3 + $0x1e8] sm:$0xff]
      %v1563 = vld [vmem:[%s3 + $0x1f0] sm:$0xff]
      %v1564 = vld [vmem:[%s3 + $0x1f8] sm:$0xff]
      %v1565 = vld [vmem:[%s3 + $0x200] sm:$0xff]
      %v1566 = vld [vmem:[%s3 + $0x208] sm:$0xff]
      %v1567 = vld [vmem:[%s3 + $0x210] sm:$0xff]
      %v1568 = vld [vmem:[%s3 + $0x218] sm:$0xff]
      %v1569 = vld [vmem:[%s3 + $0x220] sm:$0xff]
      %v1570 = vld [vmem:[%s3 + $0x228] sm:$0xff]
      %v1571 = vld [vmem:[%s3 + $0x230] sm:$0xff]
      %v1572 = vld [vmem:[%s3 + $0x238] sm:$0xff]
      %v1573 = vld [vmem:[%s3 + $0x240] sm:$0xff]
      %v1574 = vld [vmem:[%s3 + $0x248] sm:$0xff]
      %v1575 = vld [vmem:[%s3 + $0x250] sm:$0xff]
      %v1576 = vld [vmem:[%s3 + $0x258] sm:$0xff]
      %v1577 = vld [vmem:[%s3 + $0x260] sm:$0xff]
      %v1578 = vld [vmem:[%s3 + $0x268] sm:$0xff]
      %v1579 = vld [vmem:[%s3 + $0x270] sm:$0xff]
      %v1580 = vld [vmem:[%s3 + $0x278] sm:$0xff]
      %v1581 = vld [vmem:[%s3 + $0x280] sm:$0xff]
      %v1582 = vld [vmem:[%s3 + $0x288] sm:$0xff]
      %v1583 = vld [vmem:[%s3 + $0x290] sm:$0xff]
      %v1584 = vld [vmem:[%s3 + $0x298] sm:$0xff]
      %v1585 = vld [vmem:[%s3 + $0x2a0] sm:$0xff]
      %v1586 = vld [vmem:[%s3 + $0x2a8] sm:$0xff]
      %v1587 = vld [vmem:[%s3 + $0x2b0] sm:$0xff]
      %v1588 = vld [vmem:[%s3 + $0x2b8] sm:$0xff]
      %v1589 = vld [vmem:[%s3 + $0x2c0] sm:$0xff]
      %v1590 = vld [vmem:[%s3 + $0x2c8] sm:$0xff]
      %v1591 = vld [vmem:[%s3 + $0x2d0] sm:$0xff]
      %v1592 = vld [vmem:[%s3 + $0x2d8] sm:$0xff]
      %v1593 = vld [vmem:[%s3 + $0x2e0] sm:$0xff]
      %v1594 = vld [vmem:[%s3 + $0x2e8] sm:$0xff]
      %v1595 = vld [vmem:[%s3 + $0x2f0] sm:$0xff]
      %v1596 = vld [vmem:[%s3 + $0x2f8] sm:$0xff]
      %v1597 = vld [vmem:[%s3 + $0x300] sm:$0xff]
      %v1598 = vld [vmem:[%s3 + $0x308] sm:$0xff]
      %v1599 = vld [vmem:[%s3 + $0x310] sm:$0xff]
      %v1600 = vld [vmem:[%s3 + $0x318] sm:$0xff]
      %v1601 = vld [vmem:[%s3 + $0x320] sm:$0xff]
      %v1602 = vld [vmem:[%s3 + $0x328] sm:$0xff]
      %v1603 = vld [vmem:[%s3 + $0x330] sm:$0xff]
      %v1604 = vld [vmem:[%s3 + $0x338] sm:$0xff]
      %v1605 = vld [vmem:[%s3 + $0x340] sm:$0xff]
      %v1606 = vld [vmem:[%s3 + $0x348] sm:$0xff]
      %v1607 = vld [vmem:[%s3 + $0x350] sm:$0xff]
      %v1608 = vld [vmem:[%s3 + $0x358] sm:$0xff]
      %v1609 = vld [vmem:[%s3 + $0x360] sm:$0xff]
      %v1610 = vld [vmem:[%s3 + $0x368] sm:$0xff]
      %v1611 = vld [vmem:[%s3 + $0x370] sm:$0xff]
      %v1612 = vld [vmem:[%s3 + $0x378] sm:$0xff]
      %v1613 = vld [vmem:[%s3 + $0x380] sm:$0xff]
      %v1614 = vld [vmem:[%s3 + $0x388] sm:$0xff]
      %v1615 = vld [vmem:[%s3 + $0x390] sm:$0xff]
      %v1616 = vld [vmem:[%s3 + $0x398] sm:$0xff]
      %v1617 = vld [vmem:[%s3 + $0x3a0] sm:$0xff]
      %v1618 = vld [vmem:[%s3 + $0x3a8] sm:$0xff]
      %v1619 = vld [vmem:[%s3 + $0x3b0] sm:$0xff]
      %v1620 = vld [vmem:[%s3 + $0x3b8] sm:$0xff]
      %v1621 = vld [vmem:[%s3 + $0x3c0] sm:$0xff]
      %v1622 = vld [vmem:[%s3 + $0x3c8] sm:$0xff]
      %v1623 = vld [vmem:[%s3 + $0x3d0] sm:$0xff]
      %v1624 = vld [vmem:[%s3 + $0x3d8] sm:$0xff]
      %v1625 = vld [vmem:[%s3 + $0x3e0] sm:$0xff]
      %v1626 = vld [vmem:[%s3 + $0x3e8] sm:$0xff]
      %v1627 = vld [vmem:[%s3 + $0x3f0] sm:$0xff]
      %v1628 = vld [vmem:[%s3 + $0x3f8] sm:$0xff]
      %v1629 = vpack.c.bf16 %v1375, %v1373
      %v1630 = vpack.c.bf16 %v1376, %v1374
      %v1631 = vpack.c.bf16 %v1379, %v1377
      %v1632 = vpack.c.bf16 %v1380, %v1378
      %v1633 = vpack.c.bf16 %v1383, %v1381
      %v1634 = vpack.c.bf16 %v1384, %v1382
      %v1635 = vpack.c.bf16 %v1387, %v1385
      %v1636 = vpack.c.bf16 %v1388, %v1386
      %v1637 = vpack.c.bf16 %v1391, %v1389
      %v1638 = vpack.c.bf16 %v1392, %v1390
      %v1639 = vpack.c.bf16 %v1395, %v1393
      %v1640 = vpack.c.bf16 %v1396, %v1394
      %v1641 = vpack.c.bf16 %v1399, %v1397
      %v1642 = vpack.c.bf16 %v1400, %v1398
      %v1643 = vpack.c.bf16 %v1403, %v1401
      %v1644 = vpack.c.bf16 %v1404, %v1402
      %v1645 = vpack.c.bf16 %v1407, %v1405
      %v1646 = vpack.c.bf16 %v1408, %v1406
      %v1647 = vpack.c.bf16 %v1411, %v1409
      %v1648 = vpack.c.bf16 %v1412, %v1410
      %v1649 = vpack.c.bf16 %v1415, %v1413
      %v1650 = vpack.c.bf16 %v1416, %v1414
      %v1651 = vpack.c.bf16 %v1419, %v1417
      %v1652 = vpack.c.bf16 %v1420, %v1418
      %v1653 = vpack.c.bf16 %v1423, %v1421
      %v1654 = vpack.c.bf16 %v1424, %v1422
      %v1655 = vpack.c.bf16 %v1427, %v1425
      %v1656 = vpack.c.bf16 %v1428, %v1426
      %v1657 = vpack.c.bf16 %v1431, %v1429
      %v1658 = vpack.c.bf16 %v1432, %v1430
      %v1659 = vpack.c.bf16 %v1435, %v1433
      %v1660 = vpack.c.bf16 %v1436, %v1434
      %v1661 = vpack.c.bf16 %v1439, %v1437
      %v1662 = vpack.c.bf16 %v1440, %v1438
      %v1663 = vpack.c.bf16 %v1443, %v1441
      %v1664 = vpack.c.bf16 %v1444, %v1442
      %v1665 = vpack.c.bf16 %v1447, %v1445
      %v1666 = vpack.c.bf16 %v1448, %v1446
      %v1667 = vpack.c.bf16 %v1451, %v1449
      %v1668 = vpack.c.bf16 %v1452, %v1450
      %v1669 = vpack.c.bf16 %v1455, %v1453
      %v1670 = vpack.c.bf16 %v1456, %v1454
      %v1671 = vpack.c.bf16 %v1459, %v1457
      %v1672 = vpack.c.bf16 %v1460, %v1458
      %v1673 = vpack.c.bf16 %v1463, %v1461
      %v1674 = vpack.c.bf16 %v1464, %v1462
      %v1675 = vpack.c.bf16 %v1467, %v1465
      %v1676 = vpack.c.bf16 %v1468, %v1466
      %v1677 = vpack.c.bf16 %v1471, %v1469
      %v1678 = vpack.c.bf16 %v1472, %v1470
      %v1679 = vpack.c.bf16 %v1475, %v1473
      %v1680 = vpack.c.bf16 %v1476, %v1474
      %v1681 = vpack.c.bf16 %v1479, %v1477
      %v1682 = vpack.c.bf16 %v1480, %v1478
      %v1683 = vpack.c.bf16 %v1483, %v1481
      %v1684 = vpack.c.bf16 %v1484, %v1482
      %v1685 = vpack.c.bf16 %v1487, %v1485
      %v1686 = vpack.c.bf16 %v1488, %v1486
      %v1687 = vpack.c.bf16 %v1491, %v1489
      %v1688 = vpack.c.bf16 %v1492, %v1490
      %v1689 = vpack.c.bf16 %v1495, %v1493
      %v1690 = vpack.c.bf16 %v1496, %v1494
      %v1691 = vpack.c.bf16 %v1499, %v1497
      %v1692 = vpack.c.bf16 %v1500, %v1498
      %v1693 = vld [vmem:[%s4] sm:$0xff]
      %v1694 = vld [vmem:[%s4 + $0x8] sm:$0xff]
      %v1695 = vld [vmem:[%s4 + $0x10] sm:$0xff]
      %v1696 = vld [vmem:[%s4 + $0x18] sm:$0xff]
      %v1697 = vld [vmem:[%s4 + $0x20] sm:$0xff]
      %v1698 = vld [vmem:[%s4 + $0x28] sm:$0xff]
      %v1699 = vld [vmem:[%s4 + $0x30] sm:$0xff]
      %v1700 = vld [vmem:[%s4 + $0x38] sm:$0xff]
      %v1701 = vld [vmem:[%s4 + $0x40] sm:$0xff]
      %v1702 = vld [vmem:[%s4 + $0x48] sm:$0xff]
      %v1703 = vld [vmem:[%s4 + $0x50] sm:$0xff]
      %v1704 = vld [vmem:[%s4 + $0x58] sm:$0xff]
      %v1705 = vld [vmem:[%s4 + $0x60] sm:$0xff]
      %v1706 = vld [vmem:[%s4 + $0x68] sm:$0xff]
      %v1707 = vld [vmem:[%s4 + $0x70] sm:$0xff]
      %v1708 = vld [vmem:[%s4 + $0x78] sm:$0xff]
      %v1709 = vld [vmem:[%s4 + $0x80] sm:$0xff]
      %v1710 = vld [vmem:[%s4 + $0x88] sm:$0xff]
      %v1711 = vld [vmem:[%s4 + $0x90] sm:$0xff]
      %v1712 = vld [vmem:[%s4 + $0x98] sm:$0xff]
      %v1713 = vld [vmem:[%s4 + $0xa0] sm:$0xff]
      %v1714 = vld [vmem:[%s4 + $0xa8] sm:$0xff]
      %v1715 = vld [vmem:[%s4 + $0xb0] sm:$0xff]
      %v1716 = vld [vmem:[%s4 + $0xb8] sm:$0xff]
      %v1717 = vld [vmem:[%s4 + $0xc0] sm:$0xff]
      %v1718 = vld [vmem:[%s4 + $0xc8] sm:$0xff]
      %v1719 = vld [vmem:[%s4 + $0xd0] sm:$0xff]
      %v1720 = vld [vmem:[%s4 + $0xd8] sm:$0xff]
      %v1721 = vld [vmem:[%s4 + $0xe0] sm:$0xff]
      %v1722 = vld [vmem:[%s4 + $0xe8] sm:$0xff]
      %v1723 = vld [vmem:[%s4 + $0xf0] sm:$0xff]
      %v1724 = vld [vmem:[%s4 + $0xf8] sm:$0xff]
      %v1725 = vld [vmem:[%s4 + $0x100] sm:$0xff]
      %v1726 = vld [vmem:[%s4 + $0x108] sm:$0xff]
      %v1727 = vld [vmem:[%s4 + $0x110] sm:$0xff]
      %v1728 = vld [vmem:[%s4 + $0x118] sm:$0xff]
      %v1729 = vld [vmem:[%s4 + $0x120] sm:$0xff]
      %v1730 = vld [vmem:[%s4 + $0x128] sm:$0xff]
      %v1731 = vld [vmem:[%s4 + $0x130] sm:$0xff]
      %v1732 = vld [vmem:[%s4 + $0x138] sm:$0xff]
      %v1733 = vld [vmem:[%s4 + $0x140] sm:$0xff]
      %v1734 = vld [vmem:[%s4 + $0x148] sm:$0xff]
      %v1735 = vld [vmem:[%s4 + $0x150] sm:$0xff]
      %v1736 = vld [vmem:[%s4 + $0x158] sm:$0xff]
      %v1737 = vld [vmem:[%s4 + $0x160] sm:$0xff]
      %v1738 = vld [vmem:[%s4 + $0x168] sm:$0xff]
      %v1739 = vld [vmem:[%s4 + $0x170] sm:$0xff]
      %v1740 = vld [vmem:[%s4 + $0x178] sm:$0xff]
      %v1741 = vld [vmem:[%s4 + $0x180] sm:$0xff]
      %v1742 = vld [vmem:[%s4 + $0x188] sm:$0xff]
      %v1743 = vld [vmem:[%s4 + $0x190] sm:$0xff]
      %v1744 = vld [vmem:[%s4 + $0x198] sm:$0xff]
      %v1745 = vld [vmem:[%s4 + $0x1a0] sm:$0xff]
      %v1746 = vld [vmem:[%s4 + $0x1a8] sm:$0xff]
      %v1747 = vld [vmem:[%s4 + $0x1b0] sm:$0xff]
      %v1748 = vld [vmem:[%s4 + $0x1b8] sm:$0xff]
      %v1749 = vld [vmem:[%s4 + $0x1c0] sm:$0xff]
      %v1750 = vld [vmem:[%s4 + $0x1c8] sm:$0xff]
      %v1751 = vld [vmem:[%s4 + $0x1d0] sm:$0xff]
      %v1752 = vld [vmem:[%s4 + $0x1d8] sm:$0xff]
      %v1753 = vld [vmem:[%s4 + $0x1e0] sm:$0xff]
      %v1754 = vld [vmem:[%s4 + $0x1e8] sm:$0xff]
      %v1755 = vld [vmem:[%s4 + $0x1f0] sm:$0xff]
      %v1756 = vld [vmem:[%s4 + $0x1f8] sm:$0xff]
      %1758 = vset.pattern.permute.xlu0 0
      %1759 = vperm.xlu0 %1758, %v1693
      %v1760 = vpop.permute.xlu0 %1759
      %1763 = vset.pattern.permute.xlu0 0
      %1764 = vperm.xlu0 %1763, %v1694
      %v1765 = vpop.permute.xlu0 %1764
      %1768 = vset.pattern.permute.xlu0 0
      %1769 = vperm.xlu0 %1768, %v1695
      %v1770 = vpop.permute.xlu0 %1769
      %1773 = vset.pattern.permute.xlu0 0
      %1774 = vperm.xlu0 %1773, %v1696
      %v1775 = vpop.permute.xlu0 %1774
      %1778 = vset.pattern.permute.xlu0 0
      %1779 = vperm.xlu0 %1778, %v1697
      %v1780 = vpop.permute.xlu0 %1779
      %1783 = vset.pattern.permute.xlu0 0
      %1784 = vperm.xlu0 %1783, %v1698
      %v1785 = vpop.permute.xlu0 %1784
      %1788 = vset.pattern.permute.xlu0 0
      %1789 = vperm.xlu0 %1788, %v1699
      %v1790 = vpop.permute.xlu0 %1789
      %1793 = vset.pattern.permute.xlu0 0
      %1794 = vperm.xlu0 %1793, %v1700
      %v1795 = vpop.permute.xlu0 %1794
      %1798 = vset.pattern.permute.xlu0 0
      %1799 = vperm.xlu0 %1798, %v1701
      %v1800 = vpop.permute.xlu0 %1799
      %1803 = vset.pattern.permute.xlu0 0
      %1804 = vperm.xlu0 %1803, %v1702
      %v1805 = vpop.permute.xlu0 %1804
      %1808 = vset.pattern.permute.xlu0 0
      %1809 = vperm.xlu0 %1808, %v1703
      %v1810 = vpop.permute.xlu0 %1809
      %1813 = vset.pattern.permute.xlu0 0
      %1814 = vperm.xlu0 %1813, %v1704
      %v1815 = vpop.permute.xlu0 %1814
      %1818 = vset.pattern.permute.xlu0 0
      %1819 = vperm.xlu0 %1818, %v1705
      %v1820 = vpop.permute.xlu0 %1819
      %1823 = vset.pattern.permute.xlu0 0
      %1824 = vperm.xlu0 %1823, %v1706
      %v1825 = vpop.permute.xlu0 %1824
      %1828 = vset.pattern.permute.xlu0 0
      %1829 = vperm.xlu0 %1828, %v1707
      %v1830 = vpop.permute.xlu0 %1829
      %1833 = vset.pattern.permute.xlu0 0
      %1834 = vperm.xlu0 %1833, %v1708
      %v1835 = vpop.permute.xlu0 %1834
      %1838 = vset.pattern.permute.xlu0 0
      %1839 = vperm.xlu0 %1838, %v1709
      %v1840 = vpop.permute.xlu0 %1839
      %1843 = vset.pattern.permute.xlu0 0
      %1844 = vperm.xlu0 %1843, %v1710
      %v1845 = vpop.permute.xlu0 %1844
      %1848 = vset.pattern.permute.xlu0 0
      %1849 = vperm.xlu0 %1848, %v1711
      %v1850 = vpop.permute.xlu0 %1849
      %1853 = vset.pattern.permute.xlu0 0
      %1854 = vperm.xlu0 %1853, %v1712
      %v1855 = vpop.permute.xlu0 %1854
      %1858 = vset.pattern.permute.xlu0 0
      %1859 = vperm.xlu0 %1858, %v1713
      %v1860 = vpop.permute.xlu0 %1859
      %1863 = vset.pattern.permute.xlu0 0
      %1864 = vperm.xlu0 %1863, %v1714
      %v1865 = vpop.permute.xlu0 %1864
      %1868 = vset.pattern.permute.xlu0 0
      %1869 = vperm.xlu0 %1868, %v1715
      %v1870 = vpop.permute.xlu0 %1869
      %1873 = vset.pattern.permute.xlu0 0
      %1874 = vperm.xlu0 %1873, %v1716
      %v1875 = vpop.permute.xlu0 %1874
      %1878 = vset.pattern.permute.xlu0 0
      %1879 = vperm.xlu0 %1878, %v1717
      %v1880 = vpop.permute.xlu0 %1879
      %1883 = vset.pattern.permute.xlu0 0
      %1884 = vperm.xlu0 %1883, %v1718
      %v1885 = vpop.permute.xlu0 %1884
      %1888 = vset.pattern.permute.xlu0 0
      %1889 = vperm.xlu0 %1888, %v1719
      %v1890 = vpop.permute.xlu0 %1889
      %1893 = vset.pattern.permute.xlu0 0
      %1894 = vperm.xlu0 %1893, %v1720
      %v1895 = vpop.permute.xlu0 %1894
      %1898 = vset.pattern.permute.xlu0 0
      %1899 = vperm.xlu0 %1898, %v1721
      %v1900 = vpop.permute.xlu0 %1899
      %1903 = vset.pattern.permute.xlu0 0
      %1904 = vperm.xlu0 %1903, %v1722
      %v1905 = vpop.permute.xlu0 %1904
      %1908 = vset.pattern.permute.xlu0 0
      %1909 = vperm.xlu0 %1908, %v1723
      %v1910 = vpop.permute.xlu0 %1909
      %1913 = vset.pattern.permute.xlu0 0
      %1914 = vperm.xlu0 %1913, %v1724
      %v1915 = vpop.permute.xlu0 %1914
      %1918 = vset.pattern.permute.xlu0 0
      %1919 = vperm.xlu0 %1918, %v1725
      %v1920 = vpop.permute.xlu0 %1919
      %1923 = vset.pattern.permute.xlu0 0
      %1924 = vperm.xlu0 %1923, %v1726
      %v1925 = vpop.permute.xlu0 %1924
      %1928 = vset.pattern.permute.xlu0 0
      %1929 = vperm.xlu0 %1928, %v1727
      %v1930 = vpop.permute.xlu0 %1929
      %1933 = vset.pattern.permute.xlu0 0
      %1934 = vperm.xlu0 %1933, %v1728
      %v1935 = vpop.permute.xlu0 %1934
      %1938 = vset.pattern.permute.xlu0 0
      %1939 = vperm.xlu0 %1938, %v1729
      %v1940 = vpop.permute.xlu0 %1939
      %1943 = vset.pattern.permute.xlu0 0
      %1944 = vperm.xlu0 %1943, %v1730
      %v1945 = vpop.permute.xlu0 %1944
      %1948 = vset.pattern.permute.xlu0 0
      %1949 = vperm.xlu0 %1948, %v1731
      %v1950 = vpop.permute.xlu0 %1949
      %1953 = vset.pattern.permute.xlu0 0
      %1954 = vperm.xlu0 %1953, %v1732
      %v1955 = vpop.permute.xlu0 %1954
      %1958 = vset.pattern.permute.xlu0 0
      %1959 = vperm.xlu0 %1958, %v1733
      %v1960 = vpop.permute.xlu0 %1959
      %1963 = vset.pattern.permute.xlu0 0
      %1964 = vperm.xlu0 %1963, %v1734
      %v1965 = vpop.permute.xlu0 %1964
      %1968 = vset.pattern.permute.xlu0 0
      %1969 = vperm.xlu0 %1968, %v1735
      %v1970 = vpop.permute.xlu0 %1969
      %1973 = vset.pattern.permute.xlu0 0
      %1974 = vperm.xlu0 %1973, %v1736
      %v1975 = vpop.permute.xlu0 %1974
      %1978 = vset.pattern.permute.xlu0 0
      %1979 = vperm.xlu0 %1978, %v1737
      %v1980 = vpop.permute.xlu0 %1979
      %1983 = vset.pattern.permute.xlu0 0
      %1984 = vperm.xlu0 %1983, %v1738
      %v1985 = vpop.permute.xlu0 %1984
      %1988 = vset.pattern.permute.xlu0 0
      %1989 = vperm.xlu0 %1988, %v1739
      %v1990 = vpop.permute.xlu0 %1989
      %1993 = vset.pattern.permute.xlu0 0
      %1994 = vperm.xlu0 %1993, %v1740
      %v1995 = vpop.permute.xlu0 %1994
      %1998 = vset.pattern.permute.xlu0 0
      %1999 = vperm.xlu0 %1998, %v1741
      %v2000 = vpop.permute.xlu0 %1999
      %2003 = vset.pattern.permute.xlu0 0
      %2004 = vperm.xlu0 %2003, %v1742
      %v2005 = vpop.permute.xlu0 %2004
      %2008 = vset.pattern.permute.xlu0 0
      %2009 = vperm.xlu0 %2008, %v1743
      %v2010 = vpop.permute.xlu0 %2009
      %2013 = vset.pattern.permute.xlu0 0
      %2014 = vperm.xlu0 %2013, %v1744
      %v2015 = vpop.permute.xlu0 %2014
      %2018 = vset.pattern.permute.xlu0 0
      %2019 = vperm.xlu0 %2018, %v1745
      %v2020 = vpop.permute.xlu0 %2019
      %2023 = vset.pattern.permute.xlu0 0
      %2024 = vperm.xlu0 %2023, %v1746
      %v2025 = vpop.permute.xlu0 %2024
      %2028 = vset.pattern.permute.xlu0 0
      %2029 = vperm.xlu0 %2028, %v1747
      %v2030 = vpop.permute.xlu0 %2029
      %2033 = vset.pattern.permute.xlu0 0
      %2034 = vperm.xlu0 %2033, %v1748
      %v2035 = vpop.permute.xlu0 %2034
      %2038 = vset.pattern.permute.xlu0 0
      %2039 = vperm.xlu0 %2038, %v1749
      %v2040 = vpop.permute.xlu0 %2039
      %2043 = vset.pattern.permute.xlu0 0
      %2044 = vperm.xlu0 %2043, %v1750
      %v2045 = vpop.permute.xlu0 %2044
      %2048 = vset.pattern.permute.xlu0 0
      %2049 = vperm.xlu0 %2048, %v1751
      %v2050 = vpop.permute.xlu0 %2049
      %2053 = vset.pattern.permute.xlu0 0
      %2054 = vperm.xlu0 %2053, %v1752
      %v2055 = vpop.permute.xlu0 %2054
      %2058 = vset.pattern.permute.xlu0 0
      %2059 = vperm.xlu0 %2058, %v1753
      %v2060 = vpop.permute.xlu0 %2059
      %2063 = vset.pattern.permute.xlu0 0
      %2064 = vperm.xlu0 %2063, %v1754
      %v2065 = vpop.permute.xlu0 %2064
      %2068 = vset.pattern.permute.xlu0 0
      %2069 = vperm.xlu0 %2068, %v1755
      %v2070 = vpop.permute.xlu0 %2069
      %2073 = vset.pattern.permute.xlu0 0
      %2074 = vperm.xlu0 %2073, %v1756
      %v2075 = vpop.permute.xlu0 %2074
      %v2205 = vunpack.c.l.b16 %v1501
      %v2206 = vunpack.c.h.b16 %v1501
      %v2207 = vunpack.c.l.b16 %v1502
      %v2208 = vunpack.c.h.b16 %v1502
      %v2209 = vunpack.c.l.b16 %v1503
      %v2210 = vunpack.c.h.b16 %v1503
      %v2211 = vunpack.c.l.b16 %v1504
      %v2212 = vunpack.c.h.b16 %v1504
      %v2213 = vunpack.c.l.b16 %v1505
      %v2214 = vunpack.c.h.b16 %v1505
      %v2215 = vunpack.c.l.b16 %v1506
      %v2216 = vunpack.c.h.b16 %v1506
      %v2217 = vunpack.c.l.b16 %v1507
      %v2218 = vunpack.c.h.b16 %v1507
      %v2219 = vunpack.c.l.b16 %v1508
      %v2220 = vunpack.c.h.b16 %v1508
      %v2221 = vunpack.c.l.b16 %v1509
      %v2222 = vunpack.c.h.b16 %v1509
      %v2223 = vunpack.c.l.b16 %v1510
      %v2224 = vunpack.c.h.b16 %v1510
      %v2225 = vunpack.c.l.b16 %v1511
      %v2226 = vunpack.c.h.b16 %v1511
      %v2227 = vunpack.c.l.b16 %v1512
      %v2228 = vunpack.c.h.b16 %v1512
      %v2229 = vunpack.c.l.b16 %v1513
      %v2230 = vunpack.c.h.b16 %v1513
      %v2231 = vunpack.c.l.b16 %v1514
      %v2232 = vunpack.c.h.b16 %v1514
      %v2233 = vunpack.c.l.b16 %v1515
      %v2234 = vunpack.c.h.b16 %v1515
      %v2235 = vunpack.c.l.b16 %v1516
      %v2236 = vunpack.c.h.b16 %v1516
      %v2237 = vunpack.c.l.b16 %v1517
      %v2238 = vunpack.c.h.b16 %v1517
      %v2239 = vunpack.c.l.b16 %v1518
      %v2240 = vunpack.c.h.b16 %v1518
      %v2241 = vunpack.c.l.b16 %v1519
      %v2242 = vunpack.c.h.b16 %v1519
      %v2243 = vunpack.c.l.b16 %v1520
      %v2244 = vunpack.c.h.b16 %v1520
      %v2245 = vunpack.c.l.b16 %v1521
      %v2246 = vunpack.c.h.b16 %v1521
      %v2247 = vunpack.c.l.b16 %v1522
      %v2248 = vunpack.c.h.b16 %v1522
      %v2249 = vunpack.c.l.b16 %v1523
      %v2250 = vunpack.c.h.b16 %v1523
      %v2251 = vunpack.c.l.b16 %v1524
      %v2252 = vunpack.c.h.b16 %v1524
      %v2253 = vunpack.c.l.b16 %v1525
      %v2254 = vunpack.c.h.b16 %v1525
      %v2255 = vunpack.c.l.b16 %v1526
      %v2256 = vunpack.c.h.b16 %v1526
      %v2257 = vunpack.c.l.b16 %v1527
      %v2258 = vunpack.c.h.b16 %v1527
      %v2259 = vunpack.c.l.b16 %v1528
      %v2260 = vunpack.c.h.b16 %v1528
      %v2261 = vunpack.c.l.b16 %v1529
      %v2262 = vunpack.c.h.b16 %v1529
      %v2263 = vunpack.c.l.b16 %v1530
      %v2264 = vunpack.c.h.b16 %v1530
      %v2265 = vunpack.c.l.b16 %v1531
      %v2266 = vunpack.c.h.b16 %v1531
      %v2267 = vunpack.c.l.b16 %v1532
      %v2268 = vunpack.c.h.b16 %v1532
      %v2269 = vunpack.c.l.b16 %v1533
      %v2270 = vunpack.c.h.b16 %v1533
      %v2271 = vunpack.c.l.b16 %v1534
      %v2272 = vunpack.c.h.b16 %v1534
      %v2273 = vunpack.c.l.b16 %v1535
      %v2274 = vunpack.c.h.b16 %v1535
      %v2275 = vunpack.c.l.b16 %v1536
      %v2276 = vunpack.c.h.b16 %v1536
      %v2277 = vunpack.c.l.b16 %v1537
      %v2278 = vunpack.c.h.b16 %v1537
      %v2279 = vunpack.c.l.b16 %v1538
      %v2280 = vunpack.c.h.b16 %v1538
      %v2281 = vunpack.c.l.b16 %v1539
      %v2282 = vunpack.c.h.b16 %v1539
      %v2283 = vunpack.c.l.b16 %v1540
      %v2284 = vunpack.c.h.b16 %v1540
      %v2285 = vunpack.c.l.b16 %v1541
      %v2286 = vunpack.c.h.b16 %v1541
      %v2287 = vunpack.c.l.b16 %v1542
      %v2288 = vunpack.c.h.b16 %v1542
      %v2289 = vunpack.c.l.b16 %v1543
      %v2290 = vunpack.c.h.b16 %v1543
      %v2291 = vunpack.c.l.b16 %v1544
      %v2292 = vunpack.c.h.b16 %v1544
      %v2293 = vunpack.c.l.b16 %v1545
      %v2294 = vunpack.c.h.b16 %v1545
      %v2295 = vunpack.c.l.b16 %v1546
      %v2296 = vunpack.c.h.b16 %v1546
      %v2297 = vunpack.c.l.b16 %v1547
      %v2298 = vunpack.c.h.b16 %v1547
      %v2299 = vunpack.c.l.b16 %v1548
      %v2300 = vunpack.c.h.b16 %v1548
      %v2301 = vunpack.c.l.b16 %v1549
      %v2302 = vunpack.c.h.b16 %v1549
      %v2303 = vunpack.c.l.b16 %v1550
      %v2304 = vunpack.c.h.b16 %v1550
      %v2305 = vunpack.c.l.b16 %v1551
      %v2306 = vunpack.c.h.b16 %v1551
      %v2307 = vunpack.c.l.b16 %v1552
      %v2308 = vunpack.c.h.b16 %v1552
      %v2309 = vunpack.c.l.b16 %v1553
      %v2310 = vunpack.c.h.b16 %v1553
      %v2311 = vunpack.c.l.b16 %v1554
      %v2312 = vunpack.c.h.b16 %v1554
      %v2313 = vunpack.c.l.b16 %v1555
      %v2314 = vunpack.c.h.b16 %v1555
      %v2315 = vunpack.c.l.b16 %v1556
      %v2316 = vunpack.c.h.b16 %v1556
      %v2317 = vunpack.c.l.b16 %v1557
      %v2318 = vunpack.c.h.b16 %v1557
      %v2319 = vunpack.c.l.b16 %v1558
      %v2320 = vunpack.c.h.b16 %v1558
      %v2321 = vunpack.c.l.b16 %v1559
      %v2322 = vunpack.c.h.b16 %v1559
      %v2323 = vunpack.c.l.b16 %v1560
      %v2324 = vunpack.c.h.b16 %v1560
      %v2325 = vunpack.c.l.b16 %v1561
      %v2326 = vunpack.c.h.b16 %v1561
      %v2327 = vunpack.c.l.b16 %v1562
      %v2328 = vunpack.c.h.b16 %v1562
      %v2329 = vunpack.c.l.b16 %v1563
      %v2330 = vunpack.c.h.b16 %v1563
      %v2331 = vunpack.c.l.b16 %v1564
      %v2332 = vunpack.c.h.b16 %v1564
      %v2333 = vunpack.c.l.b16 %v1565
      %v2334 = vunpack.c.h.b16 %v1565
      %v2335 = vunpack.c.l.b16 %v1566
      %v2336 = vunpack.c.h.b16 %v1566
      %v2337 = vunpack.c.l.b16 %v1567
      %v2338 = vunpack.c.h.b16 %v1567
      %v2339 = vunpack.c.l.b16 %v1568
      %v2340 = vunpack.c.h.b16 %v1568
      %v2341 = vunpack.c.l.b16 %v1569
      %v2342 = vunpack.c.h.b16 %v1569
      %v2343 = vunpack.c.l.b16 %v1570
      %v2344 = vunpack.c.h.b16 %v1570
      %v2345 = vunpack.c.l.b16 %v1571
      %v2346 = vunpack.c.h.b16 %v1571
      %v2347 = vunpack.c.l.b16 %v1572
      %v2348 = vunpack.c.h.b16 %v1572
      %v2349 = vunpack.c.l.b16 %v1573
      %v2350 = vunpack.c.h.b16 %v1573
      %v2351 = vunpack.c.l.b16 %v1574
      %v2352 = vunpack.c.h.b16 %v1574
      %v2353 = vunpack.c.l.b16 %v1575
      %v2354 = vunpack.c.h.b16 %v1575
      %v2355 = vunpack.c.l.b16 %v1576
      %v2356 = vunpack.c.h.b16 %v1576
      %v2357 = vunpack.c.l.b16 %v1577
      %v2358 = vunpack.c.h.b16 %v1577
      %v2359 = vunpack.c.l.b16 %v1578
      %v2360 = vunpack.c.h.b16 %v1578
      %v2361 = vunpack.c.l.b16 %v1579
      %v2362 = vunpack.c.h.b16 %v1579
      %v2363 = vunpack.c.l.b16 %v1580
      %v2364 = vunpack.c.h.b16 %v1580
      %v2365 = vunpack.c.l.b16 %v1581
      %v2366 = vunpack.c.h.b16 %v1581
      %v2367 = vunpack.c.l.b16 %v1582
      %v2368 = vunpack.c.h.b16 %v1582
      %v2369 = vunpack.c.l.b16 %v1583
      %v2370 = vunpack.c.h.b16 %v1583
      %v2371 = vunpack.c.l.b16 %v1584
      %v2372 = vunpack.c.h.b16 %v1584
      %v2373 = vunpack.c.l.b16 %v1585
      %v2374 = vunpack.c.h.b16 %v1585
      %v2375 = vunpack.c.l.b16 %v1586
      %v2376 = vunpack.c.h.b16 %v1586
      %v2377 = vunpack.c.l.b16 %v1587
      %v2378 = vunpack.c.h.b16 %v1587
      %v2379 = vunpack.c.l.b16 %v1588
      %v2380 = vunpack.c.h.b16 %v1588
      %v2381 = vunpack.c.l.b16 %v1589
      %v2382 = vunpack.c.h.b16 %v1589
      %v2383 = vunpack.c.l.b16 %v1590
      %v2384 = vunpack.c.h.b16 %v1590
      %v2385 = vunpack.c.l.b16 %v1591
      %v2386 = vunpack.c.h.b16 %v1591
      %v2387 = vunpack.c.l.b16 %v1592
      %v2388 = vunpack.c.h.b16 %v1592
      %v2389 = vunpack.c.l.b16 %v1593
      %v2390 = vunpack.c.h.b16 %v1593
      %v2391 = vunpack.c.l.b16 %v1594
      %v2392 = vunpack.c.h.b16 %v1594
      %v2393 = vunpack.c.l.b16 %v1595
      %v2394 = vunpack.c.h.b16 %v1595
      %v2395 = vunpack.c.l.b16 %v1596
      %v2396 = vunpack.c.h.b16 %v1596
      %v2397 = vunpack.c.l.b16 %v1597
      %v2398 = vunpack.c.h.b16 %v1597
      %v2399 = vunpack.c.l.b16 %v1598
      %v2400 = vunpack.c.h.b16 %v1598
      %v2401 = vunpack.c.l.b16 %v1599
      %v2402 = vunpack.c.h.b16 %v1599
      %v2403 = vunpack.c.l.b16 %v1600
      %v2404 = vunpack.c.h.b16 %v1600
      %v2405 = vunpack.c.l.b16 %v1601
      %v2406 = vunpack.c.h.b16 %v1601
      %v2407 = vunpack.c.l.b16 %v1602
      %v2408 = vunpack.c.h.b16 %v1602
      %v2409 = vunpack.c.l.b16 %v1603
      %v2410 = vunpack.c.h.b16 %v1603
      %v2411 = vunpack.c.l.b16 %v1604
      %v2412 = vunpack.c.h.b16 %v1604
      %v2413 = vunpack.c.l.b16 %v1605
      %v2414 = vunpack.c.h.b16 %v1605
      %v2415 = vunpack.c.l.b16 %v1606
      %v2416 = vunpack.c.h.b16 %v1606
      %v2417 = vunpack.c.l.b16 %v1607
      %v2418 = vunpack.c.h.b16 %v1607
      %v2419 = vunpack.c.l.b16 %v1608
      %v2420 = vunpack.c.h.b16 %v1608
      %v2421 = vunpack.c.l.b16 %v1609
      %v2422 = vunpack.c.h.b16 %v1609
      %v2423 = vunpack.c.l.b16 %v1610
      %v2424 = vunpack.c.h.b16 %v1610
      %v2425 = vunpack.c.l.b16 %v1611
      %v2426 = vunpack.c.h.b16 %v1611
      %v2427 = vunpack.c.l.b16 %v1612
      %v2428 = vunpack.c.h.b16 %v1612
      %v2429 = vunpack.c.l.b16 %v1613
      %v2430 = vunpack.c.h.b16 %v1613
      %v2431 = vunpack.c.l.b16 %v1614
      %v2432 = vunpack.c.h.b16 %v1614
      %v2433 = vunpack.c.l.b16 %v1615
      %v2434 = vunpack.c.h.b16 %v1615
      %v2435 = vunpack.c.l.b16 %v1616
      %v2436 = vunpack.c.h.b16 %v1616
      %v2437 = vunpack.c.l.b16 %v1617
      %v2438 = vunpack.c.h.b16 %v1617
      %v2439 = vunpack.c.l.b16 %v1618
      %v2440 = vunpack.c.h.b16 %v1618
      %v2441 = vunpack.c.l.b16 %v1619
      %v2442 = vunpack.c.h.b16 %v1619
      %v2443 = vunpack.c.l.b16 %v1620
      %v2444 = vunpack.c.h.b16 %v1620
      %v2445 = vunpack.c.l.b16 %v1621
      %v2446 = vunpack.c.h.b16 %v1621
      %v2447 = vunpack.c.l.b16 %v1622
      %v2448 = vunpack.c.h.b16 %v1622
      %v2449 = vunpack.c.l.b16 %v1623
      %v2450 = vunpack.c.h.b16 %v1623
      %v2451 = vunpack.c.l.b16 %v1624
      %v2452 = vunpack.c.h.b16 %v1624
      %v2453 = vunpack.c.l.b16 %v1625
      %v2454 = vunpack.c.h.b16 %v1625
      %v2455 = vunpack.c.l.b16 %v1626
      %v2456 = vunpack.c.h.b16 %v1626
      %v2457 = vunpack.c.l.b16 %v1627
      %v2458 = vunpack.c.h.b16 %v1627
      %v2459 = vunpack.c.l.b16 %v1628
      %v2460 = vunpack.c.h.b16 %v1628
      %v2461 = vpack.c.b16 %v2209, %v2205
      %v2462 = vpack.c.b16 %v2210, %v2206
      %v2463 = vpack.c.b16 %v2211, %v2207
      %v2464 = vpack.c.b16 %v2212, %v2208
      %v2465 = vpack.c.b16 %v2217, %v2213
      %v2466 = vpack.c.b16 %v2218, %v2214
      %v2467 = vpack.c.b16 %v2219, %v2215
      %v2468 = vpack.c.b16 %v2220, %v2216
      %v2469 = vpack.c.b16 %v2225, %v2221
      %v2470 = vpack.c.b16 %v2226, %v2222
      %v2471 = vpack.c.b16 %v2227, %v2223
      %v2472 = vpack.c.b16 %v2228, %v2224
      %v2473 = vpack.c.b16 %v2233, %v2229
      %v2474 = vpack.c.b16 %v2234, %v2230
      %v2475 = vpack.c.b16 %v2235, %v2231
      %v2476 = vpack.c.b16 %v2236, %v2232
      %v2477 = vpack.c.b16 %v2241, %v2237
      %v2478 = vpack.c.b16 %v2242, %v2238
      %v2479 = vpack.c.b16 %v2243, %v2239
      %v2480 = vpack.c.b16 %v2244, %v2240
      %v2481 = vpack.c.b16 %v2249, %v2245
      %v2482 = vpack.c.b16 %v2250, %v2246
      %v2483 = vpack.c.b16 %v2251, %v2247
      %v2484 = vpack.c.b16 %v2252, %v2248
      %v2485 = vpack.c.b16 %v2257, %v2253
      %v2486 = vpack.c.b16 %v2258, %v2254
      %v2487 = vpack.c.b16 %v2259, %v2255
      %v2488 = vpack.c.b16 %v2260, %v2256
      %v2489 = vpack.c.b16 %v2265, %v2261
      %v2490 = vpack.c.b16 %v2266, %v2262
      %v2491 = vpack.c.b16 %v2267, %v2263
      %v2492 = vpack.c.b16 %v2268, %v2264
      %v2493 = vpack.c.b16 %v2273, %v2269
      %v2494 = vpack.c.b16 %v2274, %v2270
      %v2495 = vpack.c.b16 %v2275, %v2271
      %v2496 = vpack.c.b16 %v2276, %v2272
      %v2497 = vpack.c.b16 %v2281, %v2277
      %v2498 = vpack.c.b16 %v2282, %v2278
      %v2499 = vpack.c.b16 %v2283, %v2279
      %v2500 = vpack.c.b16 %v2284, %v2280
      %v2501 = vpack.c.b16 %v2289, %v2285
      %v2502 = vpack.c.b16 %v2290, %v2286
      %v2503 = vpack.c.b16 %v2291, %v2287
      %v2504 = vpack.c.b16 %v2292, %v2288
      %v2505 = vpack.c.b16 %v2297, %v2293
      %v2506 = vpack.c.b16 %v2298, %v2294
      %v2507 = vpack.c.b16 %v2299, %v2295
      %v2508 = vpack.c.b16 %v2300, %v2296
      %v2509 = vpack.c.b16 %v2305, %v2301
      %v2510 = vpack.c.b16 %v2306, %v2302
      %v2511 = vpack.c.b16 %v2307, %v2303
      %v2512 = vpack.c.b16 %v2308, %v2304
      %v2513 = vpack.c.b16 %v2313, %v2309
      %v2514 = vpack.c.b16 %v2314, %v2310
      %v2515 = vpack.c.b16 %v2315, %v2311
      %v2516 = vpack.c.b16 %v2316, %v2312
      %v2517 = vpack.c.b16 %v2321, %v2317
      %v2518 = vpack.c.b16 %v2322, %v2318
      %v2519 = vpack.c.b16 %v2323, %v2319
      %v2520 = vpack.c.b16 %v2324, %v2320
      %v2521 = vpack.c.b16 %v2329, %v2325
      %v2522 = vpack.c.b16 %v2330, %v2326
      %v2523 = vpack.c.b16 %v2331, %v2327
      %v2524 = vpack.c.b16 %v2332, %v2328
      %v2525 = vpack.c.b16 %v2337, %v2333
      %v2526 = vpack.c.b16 %v2338, %v2334
      %v2527 = vpack.c.b16 %v2339, %v2335
      %v2528 = vpack.c.b16 %v2340, %v2336
      %v2529 = vpack.c.b16 %v2345, %v2341
      %v2530 = vpack.c.b16 %v2346, %v2342
      %v2531 = vpack.c.b16 %v2347, %v2343
      %v2532 = vpack.c.b16 %v2348, %v2344
      %v2533 = vpack.c.b16 %v2353, %v2349
      %v2534 = vpack.c.b16 %v2354, %v2350
      %v2535 = vpack.c.b16 %v2355, %v2351
      %v2536 = vpack.c.b16 %v2356, %v2352
      %v2537 = vpack.c.b16 %v2361, %v2357
      %v2538 = vpack.c.b16 %v2362, %v2358
      %v2539 = vpack.c.b16 %v2363, %v2359
      %v2540 = vpack.c.b16 %v2364, %v2360
      %v2541 = vpack.c.b16 %v2369, %v2365
      %v2542 = vpack.c.b16 %v2370, %v2366
      %v2543 = vpack.c.b16 %v2371, %v2367
      %v2544 = vpack.c.b16 %v2372, %v2368
      %v2545 = vpack.c.b16 %v2377, %v2373
      %v2546 = vpack.c.b16 %v2378, %v2374
      %v2547 = vpack.c.b16 %v2379, %v2375
      %v2548 = vpack.c.b16 %v2380, %v2376
      %v2549 = vpack.c.b16 %v2385, %v2381
      %v2550 = vpack.c.b16 %v2386, %v2382
      %v2551 = vpack.c.b16 %v2387, %v2383
      %v2552 = vpack.c.b16 %v2388, %v2384
      %v2553 = vpack.c.b16 %v2393, %v2389
      %v2554 = vpack.c.b16 %v2394, %v2390
      %v2555 = vpack.c.b16 %v2395, %v2391
      %v2556 = vpack.c.b16 %v2396, %v2392
      %v2557 = vpack.c.b16 %v2401, %v2397
      %v2558 = vpack.c.b16 %v2402, %v2398
      %v2559 = vpack.c.b16 %v2403, %v2399
      %v2560 = vpack.c.b16 %v2404, %v2400
      %v2561 = vpack.c.b16 %v2409, %v2405
      %v2562 = vpack.c.b16 %v2410, %v2406
      %v2563 = vpack.c.b16 %v2411, %v2407
      %v2564 = vpack.c.b16 %v2412, %v2408
      %v2565 = vpack.c.b16 %v2417, %v2413
      %v2566 = vpack.c.b16 %v2418, %v2414
      %v2567 = vpack.c.b16 %v2419, %v2415
      %v2568 = vpack.c.b16 %v2420, %v2416
      %v2569 = vpack.c.b16 %v2425, %v2421
      %v2570 = vpack.c.b16 %v2426, %v2422
      %v2571 = vpack.c.b16 %v2427, %v2423
      %v2572 = vpack.c.b16 %v2428, %v2424
      %v2573 = vpack.c.b16 %v2433, %v2429
      %v2574 = vpack.c.b16 %v2434, %v2430
      %v2575 = vpack.c.b16 %v2435, %v2431
      %v2576 = vpack.c.b16 %v2436, %v2432
      %v2577 = vpack.c.b16 %v2441, %v2437
      %v2578 = vpack.c.b16 %v2442, %v2438
      %v2579 = vpack.c.b16 %v2443, %v2439
      %v2580 = vpack.c.b16 %v2444, %v2440
      %v2581 = vpack.c.b16 %v2449, %v2445
      %v2582 = vpack.c.b16 %v2450, %v2446
      %v2583 = vpack.c.b16 %v2451, %v2447
      %v2584 = vpack.c.b16 %v2452, %v2448
      %v2585 = vpack.c.b16 %v2457, %v2453
      %v2586 = vpack.c.b16 %v2458, %v2454
      %v2587 = vpack.c.b16 %v2459, %v2455
      %v2588 = vpack.c.b16 %v2460, %v2456
      %2717 = vmatprep.subr.bf16.mxu0 %v1630
      %2718 = vmatpush1.bf16.msra.mxu0 %v1629
      %2719 = vmatprep.subr.bf16.mxu0 %v1632
      %2720 = vmatpush1.bf16.msra.mxu0 %v1631
      %2721 = vmatprep.subr.bf16.mxu0 %v1634
      %2722 = vmatpush1.bf16.msra.mxu0 %v1633
      %2723 = vmatprep.subr.bf16.mxu0 %v1636
      %2724 = vmatpush1.bf16.msra.mxu0 %v1635
      %2725 = vmatprep.subr.bf16.mxu0 %v1638
      %2726 = vmatpush1.bf16.msra.mxu0 %v1637
      %2727 = vmatprep.subr.bf16.mxu0 %v1640
      %2728 = vmatpush1.bf16.msra.mxu0 %v1639
      %2729 = vmatprep.subr.bf16.mxu0 %v1642
      %2730 = vmatpush1.bf16.msra.mxu0 %v1641
      %2731 = vmatprep.subr.bf16.mxu0 %v1644
      %2732 = vmatpush1.bf16.msra.mxu0 %v1643
      %2733 = vmatprep.subr.bf16.mxu0 %v1646
      %2734 = vmatpush1.bf16.msra.mxu0 %v1645
      %2735 = vmatprep.subr.bf16.mxu0 %v1648
      %2736 = vmatpush1.bf16.msra.mxu0 %v1647
      %2737 = vmatprep.subr.bf16.mxu0 %v1650
      %2738 = vmatpush1.bf16.msra.mxu0 %v1649
      %2739 = vmatprep.subr.bf16.mxu0 %v1652
      %2740 = vmatpush1.bf16.msra.mxu0 %v1651
      %2741 = vmatprep.subr.bf16.mxu0 %v1654
      %2742 = vmatpush1.bf16.msra.mxu0 %v1653
      %2743 = vmatprep.subr.bf16.mxu0 %v1656
      %2744 = vmatpush1.bf16.msra.mxu0 %v1655
      %2745 = vmatprep.subr.bf16.mxu0 %v1658
      %2746 = vmatpush1.bf16.msra.mxu0 %v1657
      %2747 = vmatprep.subr.bf16.mxu0 %v1660
      %2748 = vmatpush1.bf16.msra.mxu0 %v1659
      %2749 = vmatprep.mubr.bf16.mxu0 %v2462
      %2750 = vmatmul.mubr.bf16.gmra.mrb[0].mxu0 %v2461
      %v2751 = vpop.f32.mrb[0].mxu0
      %v2752 = vadd.f32 %v1760, %v2751
      %v2753 = vpop.f32.mrb[0].mxu0
      %v2754 = vadd.f32 %v1760, %v2753
      %v2755 = vpop.f32.mrb[0].mxu0
      %v2756 = vadd.f32 %v1765, %v2755
      %v2757 = vpop.f32.mrb[0].mxu0
      %v2758 = vadd.f32 %v1765, %v2757
      %2759 = vmatprep.mubr.bf16.mxu0 %v2466
      %2760 = vmatmul.mubr.bf16.gmra.mrb[0].mxu0 %v2465
      %v2761 = vpop.f32.mrb[0].mxu0
      %v2762 = vadd.f32 %v1770, %v2761
      %v2763 = vpop.f32.mrb[0].mxu0
      %v2764 = vadd.f32 %v1770, %v2763
      %v2765 = vpop.f32.mrb[0].mxu0
      %v2766 = vadd.f32 %v1775, %v2765
      %v2767 = vpop.f32.mrb[0].mxu0
      %v2768 = vadd.f32 %v1775, %v2767
      %2769 = vmatprep.mubr.bf16.mxu0 %v2470
      %2770 = vmatmul.mubr.bf16.gmra.mrb[0].mxu0 %v2469
      %v2771 = vpop.f32.mrb[0].mxu0
      %v2772 = vadd.f32 %v1780, %v2771
      %v2773 = vpop.f32.mrb[0].mxu0
      %v2774 = vadd.f32 %v1780, %v2773
      %v2775 = vpop.f32.mrb[0].mxu0
      %v2776 = vadd.f32 %v1785, %v2775
      %v2777 = vpop.f32.mrb[0].mxu0
      %v2778 = vadd.f32 %v1785, %v2777
      %2779 = vmatprep.mubr.bf16.mxu0 %v2474
      %2780 = vmatmul.mubr.bf16.gmra.mrb[0].mxu0 %v2473
      %v2781 = vpop.f32.mrb[0].mxu0
      %v2782 = vadd.f32 %v1790, %v2781
      %v2783 = vpop.f32.mrb[0].mxu0
      %v2784 = vadd.f32 %v1790, %v2783
      %v2785 = vpop.f32.mrb[0].mxu0
      %v2786 = vadd.f32 %v1795, %v2785
      %v2787 = vpop.f32.mrb[0].mxu0
      %v2788 = vadd.f32 %v1795, %v2787
      %2789 = vmatprep.mubr.bf16.mxu0 %v2478
      %2790 = vmatmul.mubr.bf16.gmra.mrb[0].mxu0 %v2477
      %v2791 = vpop.f32.mrb[0].mxu0
      %v2792 = vadd.f32 %v1800, %v2791
      %v2793 = vpop.f32.mrb[0].mxu0
      %v2794 = vadd.f32 %v1800, %v2793
      %v2795 = vpop.f32.mrb[0].mxu0
      %v2796 = vadd.f32 %v1805, %v2795
      %v2797 = vpop.f32.mrb[0].mxu0
      %v2798 = vadd.f32 %v1805, %v2797
      %2799 = vmatprep.mubr.bf16.mxu0 %v2482
      %2800 = vmatmul.mubr.bf16.gmra.mrb[0].mxu0 %v2481
      %v2801 = vpop.f32.mrb[0].mxu0
      %v2802 = vadd.f32 %v1810, %v2801
      %v2803 = vpop.f32.mrb[0].mxu0
      %v2804 = vadd.f32 %v1810, %v2803
      %v2805 = vpop.f32.mrb[0].mxu0
      %v2806 = vadd.f32 %v1815, %v2805
      %v2807 = vpop.f32.mrb[0].mxu0
      %v2808 = vadd.f32 %v1815, %v2807
      %2809 = vmatprep.mubr.bf16.mxu0 %v2486
      %2810 = vmatmul.mubr.bf16.gmra.mrb[0].mxu0 %v2485
      %v2811 = vpop.f32.mrb[0].mxu0
      %v2812 = vadd.f32 %v1820, %v2811
      %v2813 = vpop.f32.mrb[0].mxu0
      %v2814 = vadd.f32 %v1820, %v2813
      %v2815 = vpop.f32.mrb[0].mxu0
      %v2816 = vadd.f32 %v1825, %v2815
      %v2817 = vpop.f32.mrb[0].mxu0
      %v2818 = vadd.f32 %v1825, %v2817
      %2819 = vmatprep.mubr.bf16.mxu0 %v2490
      %2820 = vmatmul.mubr.bf16.gmra.mrb[0].mxu0 %v2489
      %v2821 = vpop.f32.mrb[0].mxu0
      %v2822 = vadd.f32 %v1830, %v2821
      %v2823 = vpop.f32.mrb[0].mxu0
      %v2824 = vadd.f32 %v1830, %v2823
      %v2825 = vpop.f32.mrb[0].mxu0
      %v2826 = vadd.f32 %v1835, %v2825
      %v2827 = vpop.f32.mrb[0].mxu0
      %v2828 = vadd.f32 %v1835, %v2827
      %2829 = vmatprep.mubr.bf16.mxu0 %v2494
      %2830 = vmatmul.mubr.bf16.gmra.mrb[0].mxu0 %v2493
      %v2831 = vpop.f32.mrb[0].mxu0
      %v2832 = vadd.f32 %v1840, %v2831
      %v2833 = vpop.f32.mrb[0].mxu0
      %v2834 = vadd.f32 %v1840, %v2833
      %v2835 = vpop.f32.mrb[0].mxu0
      %v2836 = vadd.f32 %v1845, %v2835
      %v2837 = vpop.f32.mrb[0].mxu0
      %v2838 = vadd.f32 %v1845, %v2837
      %2839 = vmatprep.mubr.bf16.mxu0 %v2498
      %2840 = vmatmul.mubr.bf16.gmra.mrb[0].mxu0 %v2497
      %v2841 = vpop.f32.mrb[0].mxu0
      %v2842 = vadd.f32 %v1850, %v2841
      %v2843 = vpop.f32.mrb[0].mxu0
      %v2844 = vadd.f32 %v1850, %v2843
      %v2845 = vpop.f32.mrb[0].mxu0
      %v2846 = vadd.f32 %v1855, %v2845
      %v2847 = vpop.f32.mrb[0].mxu0
      %v2848 = vadd.f32 %v1855, %v2847
      %2849 = vmatprep.mubr.bf16.mxu0 %v2502
      %2850 = vmatmul.mubr.bf16.gmra.mrb[0].mxu0 %v2501
      %v2851 = vpop.f32.mrb[0].mxu0
      %v2852 = vadd.f32 %v1860, %v2851
      %v2853 = vpop.f32.mrb[0].mxu0
      %v2854 = vadd.f32 %v1860, %v2853
      %v2855 = vpop.f32.mrb[0].mxu0
      %v2856 = vadd.f32 %v1865, %v2855
      %v2857 = vpop.f32.mrb[0].mxu0
      %v2858 = vadd.f32 %v1865, %v2857
      %2859 = vmatprep.mubr.bf16.mxu0 %v2506
      %2860 = vmatmul.mubr.bf16.gmra.mrb[0].mxu0 %v2505
      %v2861 = vpop.f32.mrb[0].mxu0
      %v2862 = vadd.f32 %v1870, %v2861
      %v2863 = vpop.f32.mrb[0].mxu0
      %v2864 = vadd.f32 %v1870, %v2863
      %v2865 = vpop.f32.mrb[0].mxu0
      %v2866 = vadd.f32 %v1875, %v2865
      %v2867 = vpop.f32.mrb[0].mxu0
      %v2868 = vadd.f32 %v1875, %v2867
      %2869 = vmatprep.mubr.bf16.mxu0 %v2510
      %2870 = vmatmul.mubr.bf16.gmra.mrb[0].mxu0 %v2509
      %v2871 = vpop.f32.mrb[0].mxu0
      %v2872 = vadd.f32 %v1880, %v2871
      %v2873 = vpop.f32.mrb[0].mxu0
      %v2874 = vadd.f32 %v1880, %v2873
      %v2875 = vpop.f32.mrb[0].mxu0
      %v2876 = vadd.f32 %v1885, %v2875
      %v2877 = vpop.f32.mrb[0].mxu0
      %v2878 = vadd.f32 %v1885, %v2877
      %2879 = vmatprep.mubr.bf16.mxu0 %v2514
      %2880 = vmatmul.mubr.bf16.gmra.mrb[0].mxu0 %v2513
      %v2881 = vpop.f32.mrb[0].mxu0
      %v2882 = vadd.f32 %v1890, %v2881
      %v2883 = vpop.f32.mrb[0].mxu0
      %v2884 = vadd.f32 %v1890, %v2883
      %v2885 = vpop.f32.mrb[0].mxu0
      %v2886 = vadd.f32 %v1895, %v2885
      %v2887 = vpop.f32.mrb[0].mxu0
      %v2888 = vadd.f32 %v1895, %v2887
      %2889 = vmatprep.mubr.bf16.mxu0 %v2518
      %2890 = vmatmul.mubr.bf16.gmra.mrb[0].mxu0 %v2517
      %v2891 = vpop.f32.mrb[0].mxu0
      %v2892 = vadd.f32 %v1900, %v2891
      %v2893 = vpop.f32.mrb[0].mxu0
      %v2894 = vadd.f32 %v1900, %v2893
      %v2895 = vpop.f32.mrb[0].mxu0
      %v2896 = vadd.f32 %v1905, %v2895
      %v2897 = vpop.f32.mrb[0].mxu0
      %v2898 = vadd.f32 %v1905, %v2897
      %2899 = vmatprep.mubr.bf16.mxu0 %v2522
      %2900 = vmatmul.mubr.bf16.gmra.mrb[0].mxu0 %v2521
      %v2901 = vpop.f32.mrb[0].mxu0
      %v2902 = vadd.f32 %v1910, %v2901
      %v2903 = vpop.f32.mrb[0].mxu0
      %v2904 = vadd.f32 %v1910, %v2903
      %v2905 = vpop.f32.mrb[0].mxu0
      %v2906 = vadd.f32 %v1915, %v2905
      %v2907 = vpop.f32.mrb[0].mxu0
      %v2908 = vadd.f32 %v1915, %v2907
      %2909 = vmatprep.mubr.bf16.mxu0 %v2526
      %2910 = vmatmul.mubr.bf16.gmra.mrb[0].mxu0 %v2525
      %v2911 = vpop.f32.mrb[0].mxu0
      %v2912 = vadd.f32 %v1920, %v2911
      %v2913 = vpop.f32.mrb[0].mxu0
      %v2914 = vadd.f32 %v1920, %v2913
      %v2915 = vpop.f32.mrb[0].mxu0
      %v2916 = vadd.f32 %v1925, %v2915
      %v2917 = vpop.f32.mrb[0].mxu0
      %v2918 = vadd.f32 %v1925, %v2917
      %2919 = vmatprep.mubr.bf16.mxu0 %v2530
      %2920 = vmatmul.mubr.bf16.gmra.mrb[0].mxu0 %v2529
      %v2921 = vpop.f32.mrb[0].mxu0
      %v2922 = vadd.f32 %v1930, %v2921
      %v2923 = vpop.f32.mrb[0].mxu0
      %v2924 = vadd.f32 %v1930, %v2923
      %v2925 = vpop.f32.mrb[0].mxu0
      %v2926 = vadd.f32 %v1935, %v2925
      %v2927 = vpop.f32.mrb[0].mxu0
      %v2928 = vadd.f32 %v1935, %v2927
      %2929 = vmatprep.mubr.bf16.mxu0 %v2534
      %2930 = vmatmul.mubr.bf16.gmra.mrb[0].mxu0 %v2533
      %v2931 = vpop.f32.mrb[0].mxu0
      %v2932 = vadd.f32 %v1940, %v2931
      %v2933 = vpop.f32.mrb[0].mxu0
      %v2934 = vadd.f32 %v1940, %v2933
      %v2935 = vpop.f32.mrb[0].mxu0
      %v2936 = vadd.f32 %v1945, %v2935
      %v2937 = vpop.f32.mrb[0].mxu0
      %v2938 = vadd.f32 %v1945, %v2937
      %2939 = vmatprep.mubr.bf16.mxu0 %v2538
      %2940 = vmatmul.mubr.bf16.gmra.mrb[0].mxu0 %v2537
      %v2941 = vpop.f32.mrb[0].mxu0
      %v2942 = vadd.f32 %v1950, %v2941
      %v2943 = vpop.f32.mrb[0].mxu0
      %v2944 = vadd.f32 %v1950, %v2943
      %v2945 = vpop.f32.mrb[0].mxu0
      %v2946 = vadd.f32 %v1955, %v2945
      %v2947 = vpop.f32.mrb[0].mxu0
      %v2948 = vadd.f32 %v1955, %v2947
      %2949 = vmatprep.mubr.bf16.mxu0 %v2542
      %2950 = vmatmul.mubr.bf16.gmra.mrb[0].mxu0 %v2541
      %v2951 = vpop.f32.mrb[0].mxu0
      %v2952 = vadd.f32 %v1960, %v2951
      %v2953 = vpop.f32.mrb[0].mxu0
      %v2954 = vadd.f32 %v1960, %v2953
      %v2955 = vpop.f32.mrb[0].mxu0
      %v2956 = vadd.f32 %v1965, %v2955
      %v2957 = vpop.f32.mrb[0].mxu0
      %v2958 = vadd.f32 %v1965, %v2957
      %2959 = vmatprep.mubr.bf16.mxu0 %v2546
      %2960 = vmatmul.mubr.bf16.gmra.mrb[0].mxu0 %v2545
      %v2961 = vpop.f32.mrb[0].mxu0
      %v2962 = vadd.f32 %v1970, %v2961
      %v2963 = vpop.f32.mrb[0].mxu0
      %v2964 = vadd.f32 %v1970, %v2963
      %v2965 = vpop.f32.mrb[0].mxu0
      %v2966 = vadd.f32 %v1975, %v2965
      %v2967 = vpop.f32.mrb[0].mxu0
      %v2968 = vadd.f32 %v1975, %v2967
      %2969 = vmatprep.mubr.bf16.mxu0 %v2550
      %2970 = vmatmul.mubr.bf16.gmra.mrb[0].mxu0 %v2549
      %v2971 = vpop.f32.mrb[0].mxu0
      %v2972 = vadd.f32 %v1980, %v2971
      %v2973 = vpop.f32.mrb[0].mxu0
      %v2974 = vadd.f32 %v1980, %v2973
      %v2975 = vpop.f32.mrb[0].mxu0
      %v2976 = vadd.f32 %v1985, %v2975
      %v2977 = vpop.f32.mrb[0].mxu0
      %v2978 = vadd.f32 %v1985, %v2977
      %2979 = vmatprep.mubr.bf16.mxu0 %v2554
      %2980 = vmatmul.mubr.bf16.gmra.mrb[0].mxu0 %v2553
      %v2981 = vpop.f32.mrb[0].mxu0
      %v2982 = vadd.f32 %v1990, %v2981
      %v2983 = vpop.f32.mrb[0].mxu0
      %v2984 = vadd.f32 %v1990, %v2983
      %v2985 = vpop.f32.mrb[0].mxu0
      %v2986 = vadd.f32 %v1995, %v2985
      %v2987 = vpop.f32.mrb[0].mxu0
      %v2988 = vadd.f32 %v1995, %v2987
      %2989 = vmatprep.mubr.bf16.mxu0 %v2558
      %2990 = vmatmul.mubr.bf16.gmra.mrb[0].mxu0 %v2557
      %v2991 = vpop.f32.mrb[0].mxu0
      %v2992 = vadd.f32 %v2000, %v2991
      %v2993 = vpop.f32.mrb[0].mxu0
      %v2994 = vadd.f32 %v2000, %v2993
      %v2995 = vpop.f32.mrb[0].mxu0
      %v2996 = vadd.f32 %v2005, %v2995
      %v2997 = vpop.f32.mrb[0].mxu0
      %v2998 = vadd.f32 %v2005, %v2997
      %2999 = vmatprep.mubr.bf16.mxu0 %v2562
      %3000 = vmatmul.mubr.bf16.gmra.mrb[0].mxu0 %v2561
      %v3001 = vpop.f32.mrb[0].mxu0
      %v3002 = vadd.f32 %v2010, %v3001
      %v3003 = vpop.f32.mrb[0].mxu0
      %v3004 = vadd.f32 %v2010, %v3003
      %v3005 = vpop.f32.mrb[0].mxu0
      %v3006 = vadd.f32 %v2015, %v3005
      %v3007 = vpop.f32.mrb[0].mxu0
      %v3008 = vadd.f32 %v2015, %v3007
      %3009 = vmatprep.mubr.bf16.mxu0 %v2566
      %3010 = vmatmul.mubr.bf16.gmra.mrb[0].mxu0 %v2565
      %v3011 = vpop.f32.mrb[0].mxu0
      %v3012 = vadd.f32 %v2020, %v3011
      %v3013 = vpop.f32.mrb[0].mxu0
      %v3014 = vadd.f32 %v2020, %v3013
      %v3015 = vpop.f32.mrb[0].mxu0
      %v3016 = vadd.f32 %v2025, %v3015
      %v3017 = vpop.f32.mrb[0].mxu0
      %v3018 = vadd.f32 %v2025, %v3017
      %3019 = vmatprep.mubr.bf16.mxu0 %v2570
      %3020 = vmatmul.mubr.bf16.gmra.mrb[0].mxu0 %v2569
      %v3021 = vpop.f32.mrb[0].mxu0
      %v3022 = vadd.f32 %v2030, %v3021
      %v3023 = vpop.f32.mrb[0].mxu0
      %v3024 = vadd.f32 %v2030, %v3023
      %v3025 = vpop.f32.mrb[0].mxu0
      %v3026 = vadd.f32 %v2035, %v3025
      %v3027 = vpop.f32.mrb[0].mxu0
      %v3028 = vadd.f32 %v2035, %v3027
      %3029 = vmatprep.mubr.bf16.mxu0 %v2574
      %3030 = vmatmul.mubr.bf16.gmra.mrb[0].mxu0 %v2573
      %v3031 = vpop.f32.mrb[0].mxu0
      %v3032 = vadd.f32 %v2040, %v3031
      %v3033 = vpop.f32.mrb[0].mxu0
      %v3034 = vadd.f32 %v2040, %v3033
      %v3035 = vpop.f32.mrb[0].mxu0
      %v3036 = vadd.f32 %v2045, %v3035
      %v3037 = vpop.f32.mrb[0].mxu0
      %v3038 = vadd.f32 %v2045, %v3037
      %3039 = vmatprep.mubr.bf16.mxu0 %v2578
      %3040 = vmatmul.mubr.bf16.gmra.mrb[0].mxu0 %v2577
      %v3041 = vpop.f32.mrb[0].mxu0
      %v3042 = vadd.f32 %v2050, %v3041
      %v3043 = vpop.f32.mrb[0].mxu0
      %v3044 = vadd.f32 %v2050, %v3043
      %v3045 = vpop.f32.mrb[0].mxu0
      %v3046 = vadd.f32 %v2055, %v3045
      %v3047 = vpop.f32.mrb[0].mxu0
      %v3048 = vadd.f32 %v2055, %v3047
      %3049 = vmatprep.mubr.bf16.mxu0 %v2582
      %3050 = vmatmul.mubr.bf16.gmra.mrb[0].mxu0 %v2581
      %v3051 = vpop.f32.mrb[0].mxu0
      %v3052 = vadd.f32 %v2060, %v3051
      %v3053 = vpop.f32.mrb[0].mxu0
      %v3054 = vadd.f32 %v2060, %v3053
      %v3055 = vpop.f32.mrb[0].mxu0
      %v3056 = vadd.f32 %v2065, %v3055
      %v3057 = vpop.f32.mrb[0].mxu0
      %v3058 = vadd.f32 %v2065, %v3057
      %3059 = vmatprep.mubr.bf16.mxu0 %v2586
      %3060 = vmatmul.mubr.bf16.gmra.mrb[0].mxu0 %v2585
      %v3061 = vpop.f32.mrb[0].mxu0
      %v3062 = vadd.f32 %v2070, %v3061
      %v3063 = vpop.f32.mrb[0].mxu0
      %v3064 = vadd.f32 %v2070, %v3063
      %v3065 = vpop.f32.mrb[0].mxu0
      %v3066 = vadd.f32 %v2075, %v3065
      %v3067 = vpop.f32.mrb[0].mxu0
      %v3068 = vadd.f32 %v2075, %v3067
      %3069 = vdwg.mxu0
      %3070 = vmatprep.subr.bf16.mxu0 %v1662
      %3071 = vmatpush1.bf16.msra.mxu0 %v1661
      %3072 = vmatprep.subr.bf16.mxu0 %v1664
      %3073 = vmatpush1.bf16.msra.mxu0 %v1663
      %3074 = vmatprep.subr.bf16.mxu0 %v1666
      %3075 = vmatpush1.bf16.msra.mxu0 %v1665
      %3076 = vmatprep.subr.bf16.mxu0 %v1668
      %3077 = vmatpush1.bf16.msra.mxu0 %v1667
      %3078 = vmatprep.subr.bf16.mxu0 %v1670
      %3079 = vmatpush1.bf16.msra.mxu0 %v1669
      %3080 = vmatprep.subr.bf16.mxu0 %v1672
      %3081 = vmatpush1.bf16.msra.mxu0 %v1671
      %3082 = vmatprep.subr.bf16.mxu0 %v1674
      %3083 = vmatpush1.bf16.msra.mxu0 %v1673
      %3084 = vmatprep.subr.bf16.mxu0 %v1676
      %3085 = vmatpush1.bf16.msra.mxu0 %v1675
      %3086 = vmatprep.subr.bf16.mxu0 %v1678
      %3087 = vmatpush1.bf16.msra.mxu0 %v1677
      %3088 = vmatprep.subr.bf16.mxu0 %v1680
      %3089 = vmatpush1.bf16.msra.mxu0 %v1679
      %3090 = vmatprep.subr.bf16.mxu0 %v1682
      %3091 = vmatpush1.bf16.msra.mxu0 %v1681
      %3092 = vmatprep.subr.bf16.mxu0 %v1684
      %3093 = vmatpush1.bf16.msra.mxu0 %v1683
      %3094 = vmatprep.subr.bf16.mxu0 %v1686
      %3095 = vmatpush1.bf16.msra.mxu0 %v1685
      %3096 = vmatprep.subr.bf16.mxu0 %v1688
      %3097 = vmatpush1.bf16.msra.mxu0 %v1687
      %3098 = vmatprep.subr.bf16.mxu0 %v1690
      %3099 = vmatpush1.bf16.msra.mxu0 %v1689
      %3100 = vmatprep.subr.bf16.mxu0 %v1692
      %3101 = vmatpush1.bf16.msra.mxu0 %v1691
      %3102 = vmatprep.mubr.bf16.mxu0 %v2464
      %3103 = vmatmul.mubr.bf16.gmra.mrb[0].mxu0 %v2463
      %v3104 = vpop.f32.mrb[0].mxu0
      %v3105 = vadd.f32 %v2752, %v3104
      %v3106 = vpop.f32.mrb[0].mxu0
      %v3107 = vadd.f32 %v2754, %v3106
      %v3108 = vpop.f32.mrb[0].mxu0
      %v3109 = vadd.f32 %v2756, %v3108
      %v3110 = vpop.f32.mrb[0].mxu0
      %v3111 = vadd.f32 %v2758, %v3110
      %3112 = vmatprep.mubr.bf16.mxu0 %v2468
      %3113 = vmatmul.mubr.bf16.gmra.mrb[0].mxu0 %v2467
      %v3114 = vpop.f32.mrb[0].mxu0
      %v3115 = vadd.f32 %v2762, %v3114
      %v3116 = vpop.f32.mrb[0].mxu0
      %v3117 = vadd.f32 %v2764, %v3116
      %v3118 = vpop.f32.mrb[0].mxu0
      %v3119 = vadd.f32 %v2766, %v3118
      %v3120 = vpop.f32.mrb[0].mxu0
      %v3121 = vadd.f32 %v2768, %v3120
      %3122 = vmatprep.mubr.bf16.mxu0 %v2472
      %3123 = vmatmul.mubr.bf16.gmra.mrb[0].mxu0 %v2471
      %v3124 = vpop.f32.mrb[0].mxu0
      %v3125 = vadd.f32 %v2772, %v3124
      %v3126 = vpop.f32.mrb[0].mxu0
      %v3127 = vadd.f32 %v2774, %v3126
      %v3128 = vpop.f32.mrb[0].mxu0
      %v3129 = vadd.f32 %v2776, %v3128
      %v3130 = vpop.f32.mrb[0].mxu0
      %v3131 = vadd.f32 %v2778, %v3130
      %3132 = vmatprep.mubr.bf16.mxu0 %v2476
      %3133 = vmatmul.mubr.bf16.gmra.mrb[0].mxu0 %v2475
      %v3134 = vpop.f32.mrb[0].mxu0
      %v3135 = vadd.f32 %v2782, %v3134
      %v3136 = vpop.f32.mrb[0].mxu0
      %v3137 = vadd.f32 %v2784, %v3136
      %v3138 = vpop.f32.mrb[0].mxu0
      %v3139 = vadd.f32 %v2786, %v3138
      %v3140 = vpop.f32.mrb[0].mxu0
      %v3141 = vadd.f32 %v2788, %v3140
      %3142 = vmatprep.mubr.bf16.mxu0 %v2480
      %3143 = vmatmul.mubr.bf16.gmra.mrb[0].mxu0 %v2479
      %v3144 = vpop.f32.mrb[0].mxu0
      %v3145 = vadd.f32 %v2792, %v3144
      %v3146 = vpop.f32.mrb[0].mxu0
      %v3147 = vadd.f32 %v2794, %v3146
      %v3148 = vpop.f32.mrb[0].mxu0
      %v3149 = vadd.f32 %v2796, %v3148
      %v3150 = vpop.f32.mrb[0].mxu0
      %v3151 = vadd.f32 %v2798, %v3150
      %3152 = vmatprep.mubr.bf16.mxu0 %v2484
      %3153 = vmatmul.mubr.bf16.gmra.mrb[0].mxu0 %v2483
      %v3154 = vpop.f32.mrb[0].mxu0
      %v3155 = vadd.f32 %v2802, %v3154
      %v3156 = vpop.f32.mrb[0].mxu0
      %v3157 = vadd.f32 %v2804, %v3156
      %v3158 = vpop.f32.mrb[0].mxu0
      %v3159 = vadd.f32 %v2806, %v3158
      %v3160 = vpop.f32.mrb[0].mxu0
      %v3161 = vadd.f32 %v2808, %v3160
      %3162 = vmatprep.mubr.bf16.mxu0 %v2488
      %3163 = vmatmul.mubr.bf16.gmra.mrb[0].mxu0 %v2487
      %v3164 = vpop.f32.mrb[0].mxu0
      %v3165 = vadd.f32 %v2812, %v3164
      %v3166 = vpop.f32.mrb[0].mxu0
      %v3167 = vadd.f32 %v2814, %v3166
      %v3168 = vpop.f32.mrb[0].mxu0
      %v3169 = vadd.f32 %v2816, %v3168
      %v3170 = vpop.f32.mrb[0].mxu0
      %v3171 = vadd.f32 %v2818, %v3170
      %3172 = vmatprep.mubr.bf16.mxu0 %v2492
      %3173 = vmatmul.mubr.bf16.gmra.mrb[0].mxu0 %v2491
      %v3174 = vpop.f32.mrb[0].mxu0
      %v3175 = vadd.f32 %v2822, %v3174
      %v3176 = vpop.f32.mrb[0].mxu0
      %v3177 = vadd.f32 %v2824, %v3176
      %v3178 = vpop.f32.mrb[0].mxu0
      %v3179 = vadd.f32 %v2826, %v3178
      %v3180 = vpop.f32.mrb[0].mxu0
      %v3181 = vadd.f32 %v2828, %v3180
      %3182 = vmatprep.mubr.bf16.mxu0 %v2496
      %3183 = vmatmul.mubr.bf16.gmra.mrb[0].mxu0 %v2495
      %v3184 = vpop.f32.mrb[0].mxu0
      %v3185 = vadd.f32 %v2832, %v3184
      %v3186 = vpop.f32.mrb[0].mxu0
      %v3187 = vadd.f32 %v2834, %v3186
      %v3188 = vpop.f32.mrb[0].mxu0
      %v3189 = vadd.f32 %v2836, %v3188
      %v3190 = vpop.f32.mrb[0].mxu0
      %v3191 = vadd.f32 %v2838, %v3190
      %3192 = vmatprep.mubr.bf16.mxu0 %v2500
      %3193 = vmatmul.mubr.bf16.gmra.mrb[0].mxu0 %v2499
      %v3194 = vpop.f32.mrb[0].mxu0
      %v3195 = vadd.f32 %v2842, %v3194
      %v3196 = vpop.f32.mrb[0].mxu0
      %v3197 = vadd.f32 %v2844, %v3196
      %v3198 = vpop.f32.mrb[0].mxu0
      %v3199 = vadd.f32 %v2846, %v3198
      %v3200 = vpop.f32.mrb[0].mxu0
      %v3201 = vadd.f32 %v2848, %v3200
      %3202 = vmatprep.mubr.bf16.mxu0 %v2504
      %3203 = vmatmul.mubr.bf16.gmra.mrb[0].mxu0 %v2503
      %v3204 = vpop.f32.mrb[0].mxu0
      %v3205 = vadd.f32 %v2852, %v3204
      %v3206 = vpop.f32.mrb[0].mxu0
      %v3207 = vadd.f32 %v2854, %v3206
      %v3208 = vpop.f32.mrb[0].mxu0
      %v3209 = vadd.f32 %v2856, %v3208
      %v3210 = vpop.f32.mrb[0].mxu0
      %v3211 = vadd.f32 %v2858, %v3210
      %3212 = vmatprep.mubr.bf16.mxu0 %v2508
      %3213 = vmatmul.mubr.bf16.gmra.mrb[0].mxu0 %v2507
      %v3214 = vpop.f32.mrb[0].mxu0
      %v3215 = vadd.f32 %v2862, %v3214
      %v3216 = vpop.f32.mrb[0].mxu0
      %v3217 = vadd.f32 %v2864, %v3216
      %v3218 = vpop.f32.mrb[0].mxu0
      %v3219 = vadd.f32 %v2866, %v3218
      %v3220 = vpop.f32.mrb[0].mxu0
      %v3221 = vadd.f32 %v2868, %v3220
      %3222 = vmatprep.mubr.bf16.mxu0 %v2512
      %3223 = vmatmul.mubr.bf16.gmra.mrb[0].mxu0 %v2511
      %v3224 = vpop.f32.mrb[0].mxu0
      %v3225 = vadd.f32 %v2872, %v3224
      %v3226 = vpop.f32.mrb[0].mxu0
      %v3227 = vadd.f32 %v2874, %v3226
      %v3228 = vpop.f32.mrb[0].mxu0
      %v3229 = vadd.f32 %v2876, %v3228
      %v3230 = vpop.f32.mrb[0].mxu0
      %v3231 = vadd.f32 %v2878, %v3230
      %3232 = vmatprep.mubr.bf16.mxu0 %v2516
      %3233 = vmatmul.mubr.bf16.gmra.mrb[0].mxu0 %v2515
      %v3234 = vpop.f32.mrb[0].mxu0
      %v3235 = vadd.f32 %v2882, %v3234
      %v3236 = vpop.f32.mrb[0].mxu0
      %v3237 = vadd.f32 %v2884, %v3236
      %v3238 = vpop.f32.mrb[0].mxu0
      %v3239 = vadd.f32 %v2886, %v3238
      %v3240 = vpop.f32.mrb[0].mxu0
      %v3241 = vadd.f32 %v2888, %v3240
      %3242 = vmatprep.mubr.bf16.mxu0 %v2520
      %3243 = vmatmul.mubr.bf16.gmra.mrb[0].mxu0 %v2519
      %v3244 = vpop.f32.mrb[0].mxu0
      %v3245 = vadd.f32 %v2892, %v3244
      %v3246 = vpop.f32.mrb[0].mxu0
      %v3247 = vadd.f32 %v2894, %v3246
      %v3248 = vpop.f32.mrb[0].mxu0
      %v3249 = vadd.f32 %v2896, %v3248
      %v3250 = vpop.f32.mrb[0].mxu0
      %v3251 = vadd.f32 %v2898, %v3250
      %3252 = vmatprep.mubr.bf16.mxu0 %v2524
      %3253 = vmatmul.mubr.bf16.gmra.mrb[0].mxu0 %v2523
      %v3254 = vpop.f32.mrb[0].mxu0
      %v3255 = vadd.f32 %v2902, %v3254
      %v3256 = vpop.f32.mrb[0].mxu0
      %v3257 = vadd.f32 %v2904, %v3256
      %v3258 = vpop.f32.mrb[0].mxu0
      %v3259 = vadd.f32 %v2906, %v3258
      %v3260 = vpop.f32.mrb[0].mxu0
      %v3261 = vadd.f32 %v2908, %v3260
      %3262 = vmatprep.mubr.bf16.mxu0 %v2528
      %3263 = vmatmul.mubr.bf16.gmra.mrb[0].mxu0 %v2527
      %v3264 = vpop.f32.mrb[0].mxu0
      %v3265 = vadd.f32 %v2912, %v3264
      %v3266 = vpop.f32.mrb[0].mxu0
      %v3267 = vadd.f32 %v2914, %v3266
      %v3268 = vpop.f32.mrb[0].mxu0
      %v3269 = vadd.f32 %v2916, %v3268
      %v3270 = vpop.f32.mrb[0].mxu0
      %v3271 = vadd.f32 %v2918, %v3270
      %3272 = vmatprep.mubr.bf16.mxu0 %v2532
      %3273 = vmatmul.mubr.bf16.gmra.mrb[0].mxu0 %v2531
      %v3274 = vpop.f32.mrb[0].mxu0
      %v3275 = vadd.f32 %v2922, %v3274
      %v3276 = vpop.f32.mrb[0].mxu0
      %v3277 = vadd.f32 %v2924, %v3276
      %v3278 = vpop.f32.mrb[0].mxu0
      %v3279 = vadd.f32 %v2926, %v3278
      %v3280 = vpop.f32.mrb[0].mxu0
      %v3281 = vadd.f32 %v2928, %v3280
      %3282 = vmatprep.mubr.bf16.mxu0 %v2536
      %3283 = vmatmul.mubr.bf16.gmra.mrb[0].mxu0 %v2535
      %v3284 = vpop.f32.mrb[0].mxu0
      %v3285 = vadd.f32 %v2932, %v3284
      %v3286 = vpop.f32.mrb[0].mxu0
      %v3287 = vadd.f32 %v2934, %v3286
      %v3288 = vpop.f32.mrb[0].mxu0
      %v3289 = vadd.f32 %v2936, %v3288
      %v3290 = vpop.f32.mrb[0].mxu0
      %v3291 = vadd.f32 %v2938, %v3290
      %3292 = vmatprep.mubr.bf16.mxu0 %v2540
      %3293 = vmatmul.mubr.bf16.gmra.mrb[0].mxu0 %v2539
      %v3294 = vpop.f32.mrb[0].mxu0
      %v3295 = vadd.f32 %v2942, %v3294
      %v3296 = vpop.f32.mrb[0].mxu0
      %v3297 = vadd.f32 %v2944, %v3296
      %v3298 = vpop.f32.mrb[0].mxu0
      %v3299 = vadd.f32 %v2946, %v3298
      %v3300 = vpop.f32.mrb[0].mxu0
      %v3301 = vadd.f32 %v2948, %v3300
      %3302 = vmatprep.mubr.bf16.mxu0 %v2544
      %3303 = vmatmul.mubr.bf16.gmra.mrb[0].mxu0 %v2543
      %v3304 = vpop.f32.mrb[0].mxu0
      %v3305 = vadd.f32 %v2952, %v3304
      %v3306 = vpop.f32.mrb[0].mxu0
      %v3307 = vadd.f32 %v2954, %v3306
      %v3308 = vpop.f32.mrb[0].mxu0
      %v3309 = vadd.f32 %v2956, %v3308
      %v3310 = vpop.f32.mrb[0].mxu0
      %v3311 = vadd.f32 %v2958, %v3310
      %3312 = vmatprep.mubr.bf16.mxu0 %v2548
      %3313 = vmatmul.mubr.bf16.gmra.mrb[0].mxu0 %v2547
      %v3314 = vpop.f32.mrb[0].mxu0
      %v3315 = vadd.f32 %v2962, %v3314
      %v3316 = vpop.f32.mrb[0].mxu0
      %v3317 = vadd.f32 %v2964, %v3316
      %v3318 = vpop.f32.mrb[0].mxu0
      %v3319 = vadd.f32 %v2966, %v3318
      %v3320 = vpop.f32.mrb[0].mxu0
      %v3321 = vadd.f32 %v2968, %v3320
      %3322 = vmatprep.mubr.bf16.mxu0 %v2552
      %3323 = vmatmul.mubr.bf16.gmra.mrb[0].mxu0 %v2551
      %v3324 = vpop.f32.mrb[0].mxu0
      %v3325 = vadd.f32 %v2972, %v3324
      %v3326 = vpop.f32.mrb[0].mxu0
      %v3327 = vadd.f32 %v2974, %v3326
      %v3328 = vpop.f32.mrb[0].mxu0
      %v3329 = vadd.f32 %v2976, %v3328
      %v3330 = vpop.f32.mrb[0].mxu0
      %v3331 = vadd.f32 %v2978, %v3330
      %3332 = vmatprep.mubr.bf16.mxu0 %v2556
      %3333 = vmatmul.mubr.bf16.gmra.mrb[0].mxu0 %v2555
      %v3334 = vpop.f32.mrb[0].mxu0
      %v3335 = vadd.f32 %v2982, %v3334
      %v3336 = vpop.f32.mrb[0].mxu0
      %v3337 = vadd.f32 %v2984, %v3336
      %v3338 = vpop.f32.mrb[0].mxu0
      %v3339 = vadd.f32 %v2986, %v3338
      %v3340 = vpop.f32.mrb[0].mxu0
      %v3341 = vadd.f32 %v2988, %v3340
      %3342 = vmatprep.mubr.bf16.mxu0 %v2560
      %3343 = vmatmul.mubr.bf16.gmra.mrb[0].mxu0 %v2559
      %v3344 = vpop.f32.mrb[0].mxu0
      %v3345 = vadd.f32 %v2992, %v3344
      %v3346 = vpop.f32.mrb[0].mxu0
      %v3347 = vadd.f32 %v2994, %v3346
      %v3348 = vpop.f32.mrb[0].mxu0
      %v3349 = vadd.f32 %v2996, %v3348
      %v3350 = vpop.f32.mrb[0].mxu0
      %v3351 = vadd.f32 %v2998, %v3350
      %3352 = vmatprep.mubr.bf16.mxu0 %v2564
      %3353 = vmatmul.mubr.bf16.gmra.mrb[0].mxu0 %v2563
      %v3354 = vpop.f32.mrb[0].mxu0
      %v3355 = vadd.f32 %v3002, %v3354
      %v3356 = vpop.f32.mrb[0].mxu0
      %v3357 = vadd.f32 %v3004, %v3356
      %v3358 = vpop.f32.mrb[0].mxu0
      %v3359 = vadd.f32 %v3006, %v3358
      %v3360 = vpop.f32.mrb[0].mxu0
      %v3361 = vadd.f32 %v3008, %v3360
      %3362 = vmatprep.mubr.bf16.mxu0 %v2568
      %3363 = vmatmul.mubr.bf16.gmra.mrb[0].mxu0 %v2567
      %v3364 = vpop.f32.mrb[0].mxu0
      %v3365 = vadd.f32 %v3012, %v3364
      %v3366 = vpop.f32.mrb[0].mxu0
      %v3367 = vadd.f32 %v3014, %v3366
      %v3368 = vpop.f32.mrb[0].mxu0
      %v3369 = vadd.f32 %v3016, %v3368
      %v3370 = vpop.f32.mrb[0].mxu0
      %v3371 = vadd.f32 %v3018, %v3370
      %3372 = vmatprep.mubr.bf16.mxu0 %v2572
      %3373 = vmatmul.mubr.bf16.gmra.mrb[0].mxu0 %v2571
      %v3374 = vpop.f32.mrb[0].mxu0
      %v3375 = vadd.f32 %v3022, %v3374
      %v3376 = vpop.f32.mrb[0].mxu0
      %v3377 = vadd.f32 %v3024, %v3376
      %v3378 = vpop.f32.mrb[0].mxu0
      %v3379 = vadd.f32 %v3026, %v3378
      %v3380 = vpop.f32.mrb[0].mxu0
      %v3381 = vadd.f32 %v3028, %v3380
      %3382 = vmatprep.mubr.bf16.mxu0 %v2576
      %3383 = vmatmul.mubr.bf16.gmra.mrb[0].mxu0 %v2575
      %v3384 = vpop.f32.mrb[0].mxu0
      %v3385 = vadd.f32 %v3032, %v3384
      %v3386 = vpop.f32.mrb[0].mxu0
      %v3387 = vadd.f32 %v3034, %v3386
      %v3388 = vpop.f32.mrb[0].mxu0
      %v3389 = vadd.f32 %v3036, %v3388
      %v3390 = vpop.f32.mrb[0].mxu0
      %v3391 = vadd.f32 %v3038, %v3390
      %3392 = vmatprep.mubr.bf16.mxu0 %v2580
      %3393 = vmatmul.mubr.bf16.gmra.mrb[0].mxu0 %v2579
      %v3394 = vpop.f32.mrb[0].mxu0
      %v3395 = vadd.f32 %v3042, %v3394
      %v3396 = vpop.f32.mrb[0].mxu0
      %v3397 = vadd.f32 %v3044, %v3396
      %v3398 = vpop.f32.mrb[0].mxu0
      %v3399 = vadd.f32 %v3046, %v3398
      %v3400 = vpop.f32.mrb[0].mxu0
      %v3401 = vadd.f32 %v3048, %v3400
      %3402 = vmatprep.mubr.bf16.mxu0 %v2584
      %3403 = vmatmul.mubr.bf16.gmra.mrb[0].mxu0 %v2583
      %v3404 = vpop.f32.mrb[0].mxu0
      %v3405 = vadd.f32 %v3052, %v3404
      %v3406 = vpop.f32.mrb[0].mxu0
      %v3407 = vadd.f32 %v3054, %v3406
      %v3408 = vpop.f32.mrb[0].mxu0
      %v3409 = vadd.f32 %v3056, %v3408
      %v3410 = vpop.f32.mrb[0].mxu0
      %v3411 = vadd.f32 %v3058, %v3410
      %3412 = vmatprep.mubr.bf16.mxu0 %v2588
      %3413 = vmatmul.mubr.bf16.gmra.mrb[0].mxu0 %v2587
      %v3414 = vpop.f32.mrb[0].mxu0
      %v3415 = vadd.f32 %v3062, %v3414
      %v3416 = vpop.f32.mrb[0].mxu0
      %v3417 = vadd.f32 %v3064, %v3416
      %v3418 = vpop.f32.mrb[0].mxu0
      %v3419 = vadd.f32 %v3066, %v3418
      %v3420 = vpop.f32.mrb[0].mxu0
      %v3421 = vadd.f32 %v3068, %v3420
      %3422 = vdwg.mxu0
      %v3423 = vmax.f32 %v3105, 0.0
      %v3424 = vmax.f32 %v3107, 0.0
      %v3425 = vmax.f32 %v3109, 0.0
      %v3426 = vmax.f32 %v3111, 0.0
      %v3427 = vmax.f32 %v3115, 0.0
      %v3428 = vmax.f32 %v3117, 0.0
      %v3429 = vmax.f32 %v3119, 0.0
      %v3430 = vmax.f32 %v3121, 0.0
      %v3431 = vmax.f32 %v3125, 0.0
      %v3432 = vmax.f32 %v3127, 0.0
      %v3433 = vmax.f32 %v3129, 0.0
      %v3434 = vmax.f32 %v3131, 0.0
      %v3435 = vmax.f32 %v3135, 0.0
      %v3436 = vmax.f32 %v3137, 0.0
      %v3437 = vmax.f32 %v3139, 0.0
      %v3438 = vmax.f32 %v3141, 0.0
      %v3439 = vmax.f32 %v3145, 0.0
      %v3440 = vmax.f32 %v3147, 0.0
      %v3441 = vmax.f32 %v3149, 0.0
      %v3442 = vmax.f32 %v3151, 0.0
      %v3443 = vmax.f32 %v3155, 0.0
      %v3444 = vmax.f32 %v3157, 0.0
      %v3445 = vmax.f32 %v3159, 0.0
      %v3446 = vmax.f32 %v3161, 0.0
      %v3447 = vmax.f32 %v3165, 0.0
      %v3448 = vmax.f32 %v3167, 0.0
      %v3449 = vmax.f32 %v3169, 0.0
      %v3450 = vmax.f32 %v3171, 0.0
      %v3451 = vmax.f32 %v3175, 0.0
      %v3452 = vmax.f32 %v3177, 0.0
      %v3453 = vmax.f32 %v3179, 0.0
      %v3454 = vmax.f32 %v3181, 0.0
      %v3455 = vmax.f32 %v3185, 0.0
      %v3456 = vmax.f32 %v3187, 0.0
      %v3457 = vmax.f32 %v3189, 0.0
      %v3458 = vmax.f32 %v3191, 0.0
      %v3459 = vmax.f32 %v3195, 0.0
      %v3460 = vmax.f32 %v3197, 0.0
      %v3461 = vmax.f32 %v3199, 0.0
      %v3462 = vmax.f32 %v3201, 0.0
      %v3463 = vmax.f32 %v3205, 0.0
      %v3464 = vmax.f32 %v3207, 0.0
      %v3465 = vmax.f32 %v3209, 0.0
      %v3466 = vmax.f32 %v3211, 0.0
      %v3467 = vmax.f32 %v3215, 0.0
      %v3468 = vmax.f32 %v3217, 0.0
      %v3469 = vmax.f32 %v3219, 0.0
      %v3470 = vmax.f32 %v3221, 0.0
      %v3471 = vmax.f32 %v3225, 0.0
      %v3472 = vmax.f32 %v3227, 0.0
      %v3473 = vmax.f32 %v3229, 0.0
      %v3474 = vmax.f32 %v3231, 0.0
      %v3475 = vmax.f32 %v3235, 0.0
      %v3476 = vmax.f32 %v3237, 0.0
      %v3477 = vmax.f32 %v3239, 0.0
      %v3478 = vmax.f32 %v3241, 0.0
      %v3479 = vmax.f32 %v3245, 0.0
      %v3480 = vmax.f32 %v3247, 0.0
      %v3481 = vmax.f32 %v3249, 0.0
      %v3482 = vmax.f32 %v3251, 0.0
      %v3483 = vmax.f32 %v3255, 0.0
      %v3484 = vmax.f32 %v3257, 0.0
      %v3485 = vmax.f32 %v3259, 0.0
      %v3486 = vmax.f32 %v3261, 0.0
      %v3487 = vmax.f32 %v3265, 0.0
      %v3488 = vmax.f32 %v3267, 0.0
      %v3489 = vmax.f32 %v3269, 0.0
      %v3490 = vmax.f32 %v3271, 0.0
      %v3491 = vmax.f32 %v3275, 0.0
      %v3492 = vmax.f32 %v3277, 0.0
      %v3493 = vmax.f32 %v3279, 0.0
      %v3494 = vmax.f32 %v3281, 0.0
      %v3495 = vmax.f32 %v3285, 0.0
      %v3496 = vmax.f32 %v3287, 0.0
      %v3497 = vmax.f32 %v3289, 0.0
      %v3498 = vmax.f32 %v3291, 0.0
      %v3499 = vmax.f32 %v3295, 0.0
      %v3500 = vmax.f32 %v3297, 0.0
      %v3501 = vmax.f32 %v3299, 0.0
      %v3502 = vmax.f32 %v3301, 0.0
      %v3503 = vmax.f32 %v3305, 0.0
      %v3504 = vmax.f32 %v3307, 0.0
      %v3505 = vmax.f32 %v3309, 0.0
      %v3506 = vmax.f32 %v3311, 0.0
      %v3507 = vmax.f32 %v3315, 0.0
      %v3508 = vmax.f32 %v3317, 0.0
      %v3509 = vmax.f32 %v3319, 0.0
      %v3510 = vmax.f32 %v3321, 0.0
      %v3511 = vmax.f32 %v3325, 0.0
      %v3512 = vmax.f32 %v3327, 0.0
      %v3513 = vmax.f32 %v3329, 0.0
      %v3514 = vmax.f32 %v3331, 0.0
      %v3515 = vmax.f32 %v3335, 0.0
      %v3516 = vmax.f32 %v3337, 0.0
      %v3517 = vmax.f32 %v3339, 0.0
      %v3518 = vmax.f32 %v3341, 0.0
      %v3519 = vmax.f32 %v3345, 0.0
      %v3520 = vmax.f32 %v3347, 0.0
      %v3521 = vmax.f32 %v3349, 0.0
      %v3522 = vmax.f32 %v3351, 0.0
      %v3523 = vmax.f32 %v3355, 0.0
      %v3524 = vmax.f32 %v3357, 0.0
      %v3525 = vmax.f32 %v3359, 0.0
      %v3526 = vmax.f32 %v3361, 0.0
      %v3527 = vmax.f32 %v3365, 0.0
      %v3528 = vmax.f32 %v3367, 0.0
      %v3529 = vmax.f32 %v3369, 0.0
      %v3530 = vmax.f32 %v3371, 0.0
      %v3531 = vmax.f32 %v3375, 0.0
      %v3532 = vmax.f32 %v3377, 0.0
      %v3533 = vmax.f32 %v3379, 0.0
      %v3534 = vmax.f32 %v3381, 0.0
      %v3535 = vmax.f32 %v3385, 0.0
      %v3536 = vmax.f32 %v3387, 0.0
      %v3537 = vmax.f32 %v3389, 0.0
      %v3538 = vmax.f32 %v3391, 0.0
      %v3539 = vmax.f32 %v3395, 0.0
      %v3540 = vmax.f32 %v3397, 0.0
      %v3541 = vmax.f32 %v3399, 0.0
      %v3542 = vmax.f32 %v3401, 0.0
      %v3543 = vmax.f32 %v3405, 0.0
      %v3544 = vmax.f32 %v3407, 0.0
      %v3545 = vmax.f32 %v3409, 0.0
      %v3546 = vmax.f32 %v3411, 0.0
      %v3547 = vmax.f32 %v3415, 0.0
      %v3548 = vmax.f32 %v3417, 0.0
      %v3549 = vmax.f32 %v3419, 0.0
      %v3550 = vmax.f32 %v3421, 0.0
      %v3551 = vld [vmem:[%s5] sm:$0xff]
      %v3552 = vld [vmem:[%s5 + $0x8] sm:$0xff]
      %v3553 = vld [vmem:[%s5 + $0x10] sm:$0xff]
      %v3554 = vld [vmem:[%s5 + $0x18] sm:$0xff]
      %v3555 = vld [vmem:[%s5 + $0x20] sm:$0xff]
      %v3556 = vld [vmem:[%s5 + $0x28] sm:$0xff]
      %v3557 = vld [vmem:[%s5 + $0x30] sm:$0xff]
      %v3558 = vld [vmem:[%s5 + $0x38] sm:$0xff]
      %v3559 = vld [vmem:[%s5 + $0x40] sm:$0xff]
      %v3560 = vld [vmem:[%s5 + $0x48] sm:$0xff]
      %v3561 = vld [vmem:[%s5 + $0x50] sm:$0xff]
      %v3562 = vld [vmem:[%s5 + $0x58] sm:$0xff]
      %v3563 = vld [vmem:[%s5 + $0x60] sm:$0xff]
      %v3564 = vld [vmem:[%s5 + $0x68] sm:$0xff]
      %v3565 = vld [vmem:[%s5 + $0x70] sm:$0xff]
      %v3566 = vld [vmem:[%s5 + $0x78] sm:$0xff]
      %v3567 = vld [vmem:[%s5 + $0x80] sm:$0xff]
      %v3568 = vld [vmem:[%s5 + $0x88] sm:$0xff]
      %v3569 = vld [vmem:[%s5 + $0x90] sm:$0xff]
      %v3570 = vld [vmem:[%s5 + $0x98] sm:$0xff]
      %v3571 = vld [vmem:[%s5 + $0xa0] sm:$0xff]
      %v3572 = vld [vmem:[%s5 + $0xa8] sm:$0xff]
      %v3573 = vld [vmem:[%s5 + $0xb0] sm:$0xff]
      %v3574 = vld [vmem:[%s5 + $0xb8] sm:$0xff]
      %v3575 = vld [vmem:[%s5 + $0xc0] sm:$0xff]
      %v3576 = vld [vmem:[%s5 + $0xc8] sm:$0xff]
      %v3577 = vld [vmem:[%s5 + $0xd0] sm:$0xff]
      %v3578 = vld [vmem:[%s5 + $0xd8] sm:$0xff]
      %v3579 = vld [vmem:[%s5 + $0xe0] sm:$0xff]
      %v3580 = vld [vmem:[%s5 + $0xe8] sm:$0xff]
      %v3581 = vld [vmem:[%s5 + $0xf0] sm:$0xff]
      %v3582 = vld [vmem:[%s5 + $0xf8] sm:$0xff]
      %v3583 = vld [vmem:[%s5 + $0x100] sm:$0xff]
      %v3584 = vld [vmem:[%s5 + $0x108] sm:$0xff]
      %v3585 = vld [vmem:[%s5 + $0x110] sm:$0xff]
      %v3586 = vld [vmem:[%s5 + $0x118] sm:$0xff]
      %v3587 = vld [vmem:[%s5 + $0x120] sm:$0xff]
      %v3588 = vld [vmem:[%s5 + $0x128] sm:$0xff]
      %v3589 = vld [vmem:[%s5 + $0x130] sm:$0xff]
      %v3590 = vld [vmem:[%s5 + $0x138] sm:$0xff]
      %v3591 = vld [vmem:[%s5 + $0x140] sm:$0xff]
      %v3592 = vld [vmem:[%s5 + $0x148] sm:$0xff]
      %v3593 = vld [vmem:[%s5 + $0x150] sm:$0xff]
      %v3594 = vld [vmem:[%s5 + $0x158] sm:$0xff]
      %v3595 = vld [vmem:[%s5 + $0x160] sm:$0xff]
      %v3596 = vld [vmem:[%s5 + $0x168] sm:$0xff]
      %v3597 = vld [vmem:[%s5 + $0x170] sm:$0xff]
      %v3598 = vld [vmem:[%s5 + $0x178] sm:$0xff]
      %v3599 = vld [vmem:[%s5 + $0x180] sm:$0xff]
      %v3600 = vld [vmem:[%s5 + $0x188] sm:$0xff]
      %v3601 = vld [vmem:[%s5 + $0x190] sm:$0xff]
      %v3602 = vld [vmem:[%s5 + $0x198] sm:$0xff]
      %v3603 = vld [vmem:[%s5 + $0x1a0] sm:$0xff]
      %v3604 = vld [vmem:[%s5 + $0x1a8] sm:$0xff]
      %v3605 = vld [vmem:[%s5 + $0x1b0] sm:$0xff]
      %v3606 = vld [vmem:[%s5 + $0x1b8] sm:$0xff]
      %v3607 = vld [vmem:[%s5 + $0x1c0] sm:$0xff]
      %v3608 = vld [vmem:[%s5 + $0x1c8] sm:$0xff]
      %v3609 = vld [vmem:[%s5 + $0x1d0] sm:$0xff]
      %v3610 = vld [vmem:[%s5 + $0x1d8] sm:$0xff]
      %v3611 = vld [vmem:[%s5 + $0x1e0] sm:$0xff]
      %v3612 = vld [vmem:[%s5 + $0x1e8] sm:$0xff]
      %v3613 = vld [vmem:[%s5 + $0x1f0] sm:$0xff]
      %v3614 = vld [vmem:[%s5 + $0x1f8] sm:$0xff]
      %3616 = vset.pattern.permute.xlu0 0
      %3617 = vperm.xlu0 %3616, %v3551
      %v3618 = vpop.permute.xlu0 %3617
      %3621 = vset.pattern.permute.xlu0 0
      %3622 = vperm.xlu0 %3621, %v3552
      %v3623 = vpop.permute.xlu0 %3622
      %3626 = vset.pattern.permute.xlu0 0
      %3627 = vperm.xlu0 %3626, %v3553
      %v3628 = vpop.permute.xlu0 %3627
      %3631 = vset.pattern.permute.xlu0 0
      %3632 = vperm.xlu0 %3631, %v3554
      %v3633 = vpop.permute.xlu0 %3632
      %3636 = vset.pattern.permute.xlu0 0
      %3637 = vperm.xlu0 %3636, %v3555
      %v3638 = vpop.permute.xlu0 %3637
      %3641 = vset.pattern.permute.xlu0 0
      %3642 = vperm.xlu0 %3641, %v3556
      %v3643 = vpop.permute.xlu0 %3642
      %3646 = vset.pattern.permute.xlu0 0
      %3647 = vperm.xlu0 %3646, %v3557
      %v3648 = vpop.permute.xlu0 %3647
      %3651 = vset.pattern.permute.xlu0 0
      %3652 = vperm.xlu0 %3651, %v3558
      %v3653 = vpop.permute.xlu0 %3652
      %3656 = vset.pattern.permute.xlu0 0
      %3657 = vperm.xlu0 %3656, %v3559
      %v3658 = vpop.permute.xlu0 %3657
      %3661 = vset.pattern.permute.xlu0 0
      %3662 = vperm.xlu0 %3661, %v3560
      %v3663 = vpop.permute.xlu0 %3662
      %3666 = vset.pattern.permute.xlu0 0
      %3667 = vperm.xlu0 %3666, %v3561
      %v3668 = vpop.permute.xlu0 %3667
      %3671 = vset.pattern.permute.xlu0 0
      %3672 = vperm.xlu0 %3671, %v3562
      %v3673 = vpop.permute.xlu0 %3672
      %3676 = vset.pattern.permute.xlu0 0
      %3677 = vperm.xlu0 %3676, %v3563
      %v3678 = vpop.permute.xlu0 %3677
      %3681 = vset.pattern.permute.xlu0 0
      %3682 = vperm.xlu0 %3681, %v3564
      %v3683 = vpop.permute.xlu0 %3682
      %3686 = vset.pattern.permute.xlu0 0
      %3687 = vperm.xlu0 %3686, %v3565
      %v3688 = vpop.permute.xlu0 %3687
      %3691 = vset.pattern.permute.xlu0 0
      %3692 = vperm.xlu0 %3691, %v3566
      %v3693 = vpop.permute.xlu0 %3692
      %3696 = vset.pattern.permute.xlu0 0
      %3697 = vperm.xlu0 %3696, %v3567
      %v3698 = vpop.permute.xlu0 %3697
      %3701 = vset.pattern.permute.xlu0 0
      %3702 = vperm.xlu0 %3701, %v3568
      %v3703 = vpop.permute.xlu0 %3702
      %3706 = vset.pattern.permute.xlu0 0
      %3707 = vperm.xlu0 %3706, %v3569
      %v3708 = vpop.permute.xlu0 %3707
      %3711 = vset.pattern.permute.xlu0 0
      %3712 = vperm.xlu0 %3711, %v3570
      %v3713 = vpop.permute.xlu0 %3712
      %3716 = vset.pattern.permute.xlu0 0
      %3717 = vperm.xlu0 %3716, %v3571
      %v3718 = vpop.permute.xlu0 %3717
      %3721 = vset.pattern.permute.xlu0 0
      %3722 = vperm.xlu0 %3721, %v3572
      %v3723 = vpop.permute.xlu0 %3722
      %3726 = vset.pattern.permute.xlu0 0
      %3727 = vperm.xlu0 %3726, %v3573
      %v3728 = vpop.permute.xlu0 %3727
      %3731 = vset.pattern.permute.xlu0 0
      %3732 = vperm.xlu0 %3731, %v3574
      %v3733 = vpop.permute.xlu0 %3732
      %3736 = vset.pattern.permute.xlu0 0
      %3737 = vperm.xlu0 %3736, %v3575
      %v3738 = vpop.permute.xlu0 %3737
      %3741 = vset.pattern.permute.xlu0 0
      %3742 = vperm.xlu0 %3741, %v3576
      %v3743 = vpop.permute.xlu0 %3742
      %3746 = vset.pattern.permute.xlu0 0
      %3747 = vperm.xlu0 %3746, %v3577
      %v3748 = vpop.permute.xlu0 %3747
      %3751 = vset.pattern.permute.xlu0 0
      %3752 = vperm.xlu0 %3751, %v3578
      %v3753 = vpop.permute.xlu0 %3752
      %3756 = vset.pattern.permute.xlu0 0
      %3757 = vperm.xlu0 %3756, %v3579
      %v3758 = vpop.permute.xlu0 %3757
      %3761 = vset.pattern.permute.xlu0 0
      %3762 = vperm.xlu0 %3761, %v3580
      %v3763 = vpop.permute.xlu0 %3762
      %3766 = vset.pattern.permute.xlu0 0
      %3767 = vperm.xlu0 %3766, %v3581
      %v3768 = vpop.permute.xlu0 %3767
      %3771 = vset.pattern.permute.xlu0 0
      %3772 = vperm.xlu0 %3771, %v3582
      %v3773 = vpop.permute.xlu0 %3772
      %3776 = vset.pattern.permute.xlu0 0
      %3777 = vperm.xlu0 %3776, %v3583
      %v3778 = vpop.permute.xlu0 %3777
      %3781 = vset.pattern.permute.xlu0 0
      %3782 = vperm.xlu0 %3781, %v3584
      %v3783 = vpop.permute.xlu0 %3782
      %3786 = vset.pattern.permute.xlu0 0
      %3787 = vperm.xlu0 %3786, %v3585
      %v3788 = vpop.permute.xlu0 %3787
      %3791 = vset.pattern.permute.xlu0 0
      %3792 = vperm.xlu0 %3791, %v3586
      %v3793 = vpop.permute.xlu0 %3792
      %3796 = vset.pattern.permute.xlu0 0
      %3797 = vperm.xlu0 %3796, %v3587
      %v3798 = vpop.permute.xlu0 %3797
      %3801 = vset.pattern.permute.xlu0 0
      %3802 = vperm.xlu0 %3801, %v3588
      %v3803 = vpop.permute.xlu0 %3802
      %3806 = vset.pattern.permute.xlu0 0
      %3807 = vperm.xlu0 %3806, %v3589
      %v3808 = vpop.permute.xlu0 %3807
      %3811 = vset.pattern.permute.xlu0 0
      %3812 = vperm.xlu0 %3811, %v3590
      %v3813 = vpop.permute.xlu0 %3812
      %3816 = vset.pattern.permute.xlu0 0
      %3817 = vperm.xlu0 %3816, %v3591
      %v3818 = vpop.permute.xlu0 %3817
      %3821 = vset.pattern.permute.xlu0 0
      %3822 = vperm.xlu0 %3821, %v3592
      %v3823 = vpop.permute.xlu0 %3822
      %3826 = vset.pattern.permute.xlu0 0
      %3827 = vperm.xlu0 %3826, %v3593
      %v3828 = vpop.permute.xlu0 %3827
      %3831 = vset.pattern.permute.xlu0 0
      %3832 = vperm.xlu0 %3831, %v3594
      %v3833 = vpop.permute.xlu0 %3832
      %3836 = vset.pattern.permute.xlu0 0
      %3837 = vperm.xlu0 %3836, %v3595
      %v3838 = vpop.permute.xlu0 %3837
      %3841 = vset.pattern.permute.xlu0 0
      %3842 = vperm.xlu0 %3841, %v3596
      %v3843 = vpop.permute.xlu0 %3842
      %3846 = vset.pattern.permute.xlu0 0
      %3847 = vperm.xlu0 %3846, %v3597
      %v3848 = vpop.permute.xlu0 %3847
      %3851 = vset.pattern.permute.xlu0 0
      %3852 = vperm.xlu0 %3851, %v3598
      %v3853 = vpop.permute.xlu0 %3852
      %3856 = vset.pattern.permute.xlu0 0
      %3857 = vperm.xlu0 %3856, %v3599
      %v3858 = vpop.permute.xlu0 %3857
      %3861 = vset.pattern.permute.xlu0 0
      %3862 = vperm.xlu0 %3861, %v3600
      %v3863 = vpop.permute.xlu0 %3862
      %3866 = vset.pattern.permute.xlu0 0
      %3867 = vperm.xlu0 %3866, %v3601
      %v3868 = vpop.permute.xlu0 %3867
      %3871 = vset.pattern.permute.xlu0 0
      %3872 = vperm.xlu0 %3871, %v3602
      %v3873 = vpop.permute.xlu0 %3872
      %3876 = vset.pattern.permute.xlu0 0
      %3877 = vperm.xlu0 %3876, %v3603
      %v3878 = vpop.permute.xlu0 %3877
      %3881 = vset.pattern.permute.xlu0 0
      %3882 = vperm.xlu0 %3881, %v3604
      %v3883 = vpop.permute.xlu0 %3882
      %3886 = vset.pattern.permute.xlu0 0
      %3887 = vperm.xlu0 %3886, %v3605
      %v3888 = vpop.permute.xlu0 %3887
      %3891 = vset.pattern.permute.xlu0 0
      %3892 = vperm.xlu0 %3891, %v3606
      %v3893 = vpop.permute.xlu0 %3892
      %3896 = vset.pattern.permute.xlu0 0
      %3897 = vperm.xlu0 %3896, %v3607
      %v3898 = vpop.permute.xlu0 %3897
      %3901 = vset.pattern.permute.xlu0 0
      %3902 = vperm.xlu0 %3901, %v3608
      %v3903 = vpop.permute.xlu0 %3902
      %3906 = vset.pattern.permute.xlu0 0
      %3907 = vperm.xlu0 %3906, %v3609
      %v3908 = vpop.permute.xlu0 %3907
      %3911 = vset.pattern.permute.xlu0 0
      %3912 = vperm.xlu0 %3911, %v3610
      %v3913 = vpop.permute.xlu0 %3912
      %3916 = vset.pattern.permute.xlu0 0
      %3917 = vperm.xlu0 %3916, %v3611
      %v3918 = vpop.permute.xlu0 %3917
      %3921 = vset.pattern.permute.xlu0 0
      %3922 = vperm.xlu0 %3921, %v3612
      %v3923 = vpop.permute.xlu0 %3922
      %3926 = vset.pattern.permute.xlu0 0
      %3927 = vperm.xlu0 %3926, %v3613
      %v3928 = vpop.permute.xlu0 %3927
      %3931 = vset.pattern.permute.xlu0 0
      %3932 = vperm.xlu0 %3931, %v3614
      %v3933 = vpop.permute.xlu0 %3932
      %v3935 = vmul.f32 %v3423, %v3618
      %v3936 = vmul.f32 %v3424, %v3618
      %v3937 = vmul.f32 %v3425, %v3623
      %v3938 = vmul.f32 %v3426, %v3623
      %v3939 = vmul.f32 %v3427, %v3628
      %v3940 = vmul.f32 %v3428, %v3628
      %v3941 = vmul.f32 %v3429, %v3633
      %v3942 = vmul.f32 %v3430, %v3633
      %v3943 = vmul.f32 %v3431, %v3638
      %v3944 = vmul.f32 %v3432, %v3638
      %v3945 = vmul.f32 %v3433, %v3643
      %v3946 = vmul.f32 %v3434, %v3643
      %v3947 = vmul.f32 %v3435, %v3648
      %v3948 = vmul.f32 %v3436, %v3648
      %v3949 = vmul.f32 %v3437, %v3653
      %v3950 = vmul.f32 %v3438, %v3653
      %v3951 = vmul.f32 %v3439, %v3658
      %v3952 = vmul.f32 %v3440, %v3658
      %v3953 = vmul.f32 %v3441, %v3663
      %v3954 = vmul.f32 %v3442, %v3663
      %v3955 = vmul.f32 %v3443, %v3668
      %v3956 = vmul.f32 %v3444, %v3668
      %v3957 = vmul.f32 %v3445, %v3673
      %v3958 = vmul.f32 %v3446, %v3673
      %v3959 = vmul.f32 %v3447, %v3678
      %v3960 = vmul.f32 %v3448, %v3678
      %v3961 = vmul.f32 %v3449, %v3683
      %v3962 = vmul.f32 %v3450, %v3683
      %v3963 = vmul.f32 %v3451, %v3688
      %v3964 = vmul.f32 %v3452, %v3688
      %v3965 = vmul.f32 %v3453, %v3693
      %v3966 = vmul.f32 %v3454, %v3693
      %v3967 = vmul.f32 %v3455, %v3698
      %v3968 = vmul.f32 %v3456, %v3698
      %v3969 = vmul.f32 %v3457, %v3703
      %v3970 = vmul.f32 %v3458, %v3703
      %v3971 = vmul.f32 %v3459, %v3708
      %v3972 = vmul.f32 %v3460, %v3708
      %v3973 = vmul.f32 %v3461, %v3713
      %v3974 = vmul.f32 %v3462, %v3713
      %v3975 = vmul.f32 %v3463, %v3718
      %v3976 = vmul.f32 %v3464, %v3718
      %v3977 = vmul.f32 %v3465, %v3723
      %v3978 = vmul.f32 %v3466, %v3723
      %v3979 = vmul.f32 %v3467, %v3728
      %v3980 = vmul.f32 %v3468, %v3728
      %v3981 = vmul.f32 %v3469, %v3733
      %v3982 = vmul.f32 %v3470, %v3733
      %v3983 = vmul.f32 %v3471, %v3738
      %v3984 = vmul.f32 %v3472, %v3738
      %v3985 = vmul.f32 %v3473, %v3743
      %v3986 = vmul.f32 %v3474, %v3743
      %v3987 = vmul.f32 %v3475, %v3748
      %v3988 = vmul.f32 %v3476, %v3748
      %v3989 = vmul.f32 %v3477, %v3753
      %v3990 = vmul.f32 %v3478, %v3753
      %v3991 = vmul.f32 %v3479, %v3758
      %v3992 = vmul.f32 %v3480, %v3758
      %v3993 = vmul.f32 %v3481, %v3763
      %v3994 = vmul.f32 %v3482, %v3763
      %v3995 = vmul.f32 %v3483, %v3768
      %v3996 = vmul.f32 %v3484, %v3768
      %v3997 = vmul.f32 %v3485, %v3773
      %v3998 = vmul.f32 %v3486, %v3773
      %v3999 = vmul.f32 %v3487, %v3778
      %v4000 = vmul.f32 %v3488, %v3778
      %v4001 = vmul.f32 %v3489, %v3783
      %v4002 = vmul.f32 %v3490, %v3783
      %v4003 = vmul.f32 %v3491, %v3788
      %v4004 = vmul.f32 %v3492, %v3788
      %v4005 = vmul.f32 %v3493, %v3793
      %v4006 = vmul.f32 %v3494, %v3793
      %v4007 = vmul.f32 %v3495, %v3798
      %v4008 = vmul.f32 %v3496, %v3798
      %v4009 = vmul.f32 %v3497, %v3803
      %v4010 = vmul.f32 %v3498, %v3803
      %v4011 = vmul.f32 %v3499, %v3808
      %v4012 = vmul.f32 %v3500, %v3808
      %v4013 = vmul.f32 %v3501, %v3813
      %v4014 = vmul.f32 %v3502, %v3813
      %v4015 = vmul.f32 %v3503, %v3818
      %v4016 = vmul.f32 %v3504, %v3818
      %v4017 = vmul.f32 %v3505, %v3823
      %v4018 = vmul.f32 %v3506, %v3823
      %v4019 = vmul.f32 %v3507, %v3828
      %v4020 = vmul.f32 %v3508, %v3828
      %v4021 = vmul.f32 %v3509, %v3833
      %v4022 = vmul.f32 %v3510, %v3833
      %v4023 = vmul.f32 %v3511, %v3838
      %v4024 = vmul.f32 %v3512, %v3838
      %v4025 = vmul.f32 %v3513, %v3843
      %v4026 = vmul.f32 %v3514, %v3843
      %v4027 = vmul.f32 %v3515, %v3848
      %v4028 = vmul.f32 %v3516, %v3848
      %v4029 = vmul.f32 %v3517, %v3853
      %v4030 = vmul.f32 %v3518, %v3853
      %v4031 = vmul.f32 %v3519, %v3858
      %v4032 = vmul.f32 %v3520, %v3858
      %v4033 = vmul.f32 %v3521, %v3863
      %v4034 = vmul.f32 %v3522, %v3863
      %v4035 = vmul.f32 %v3523, %v3868
      %v4036 = vmul.f32 %v3524, %v3868
      %v4037 = vmul.f32 %v3525, %v3873
      %v4038 = vmul.f32 %v3526, %v3873
      %v4039 = vmul.f32 %v3527, %v3878
      %v4040 = vmul.f32 %v3528, %v3878
      %v4041 = vmul.f32 %v3529, %v3883
      %v4042 = vmul.f32 %v3530, %v3883
      %v4043 = vmul.f32 %v3531, %v3888
      %v4044 = vmul.f32 %v3532, %v3888
      %v4045 = vmul.f32 %v3533, %v3893
      %v4046 = vmul.f32 %v3534, %v3893
      %v4047 = vmul.f32 %v3535, %v3898
      %v4048 = vmul.f32 %v3536, %v3898
      %v4049 = vmul.f32 %v3537, %v3903
      %v4050 = vmul.f32 %v3538, %v3903
      %v4051 = vmul.f32 %v3539, %v3908
      %v4052 = vmul.f32 %v3540, %v3908
      %v4053 = vmul.f32 %v3541, %v3913
      %v4054 = vmul.f32 %v3542, %v3913
      %v4055 = vmul.f32 %v3543, %v3918
      %v4056 = vmul.f32 %v3544, %v3918
      %v4057 = vmul.f32 %v3545, %v3923
      %v4058 = vmul.f32 %v3546, %v3923
      %v4059 = vmul.f32 %v3547, %v3928
      %v4060 = vmul.f32 %v3548, %v3928
      %v4061 = vmul.f32 %v3549, %v3933
      %v4062 = vmul.f32 %v3550, %v3933
      %v4063 = vadd.f32 %v3935, %v3937
      %v4064 = vadd.f32 %v4063, %v3939
      %v4065 = vadd.f32 %v4064, %v3941
      %v4066 = vadd.f32 %v4065, %v3943
      %v4067 = vadd.f32 %v4066, %v3945
      %v4068 = vadd.f32 %v4067, %v3947
      %v4069 = vadd.f32 %v4068, %v3949
      %v4070 = vadd.f32 %v4069, %v3951
      %v4071 = vadd.f32 %v4070, %v3953
      %v4072 = vadd.f32 %v4071, %v3955
      %v4073 = vadd.f32 %v4072, %v3957
      %v4074 = vadd.f32 %v4073, %v3959
      %v4075 = vadd.f32 %v4074, %v3961
      %v4076 = vadd.f32 %v4075, %v3963
      %v4077 = vadd.f32 %v4076, %v3965
      %v4078 = vadd.f32 %v4077, %v3967
      %v4079 = vadd.f32 %v4078, %v3969
      %v4080 = vadd.f32 %v4079, %v3971
      %v4081 = vadd.f32 %v4080, %v3973
      %v4082 = vadd.f32 %v4081, %v3975
      %v4083 = vadd.f32 %v4082, %v3977
      %v4084 = vadd.f32 %v4083, %v3979
      %v4085 = vadd.f32 %v4084, %v3981
      %v4086 = vadd.f32 %v4085, %v3983
      %v4087 = vadd.f32 %v4086, %v3985
      %v4088 = vadd.f32 %v4087, %v3987
      %v4089 = vadd.f32 %v4088, %v3989
      %v4090 = vadd.f32 %v4089, %v3991
      %v4091 = vadd.f32 %v4090, %v3993
      %v4092 = vadd.f32 %v4091, %v3995
      %v4093 = vadd.f32 %v4092, %v3997
      %v4094 = vadd.f32 %v4093, %v3999
      %v4095 = vadd.f32 %v4094, %v4001
      %v4096 = vadd.f32 %v4095, %v4003
      %v4097 = vadd.f32 %v4096, %v4005
      %v4098 = vadd.f32 %v4097, %v4007
      %v4099 = vadd.f32 %v4098, %v4009
      %v4100 = vadd.f32 %v4099, %v4011
      %v4101 = vadd.f32 %v4100, %v4013
      %v4102 = vadd.f32 %v4101, %v4015
      %v4103 = vadd.f32 %v4102, %v4017
      %v4104 = vadd.f32 %v4103, %v4019
      %v4105 = vadd.f32 %v4104, %v4021
      %v4106 = vadd.f32 %v4105, %v4023
      %v4107 = vadd.f32 %v4106, %v4025
      %v4108 = vadd.f32 %v4107, %v4027
      %v4109 = vadd.f32 %v4108, %v4029
      %v4110 = vadd.f32 %v4109, %v4031
      %v4111 = vadd.f32 %v4110, %v4033
      %v4112 = vadd.f32 %v4111, %v4035
      %v4113 = vadd.f32 %v4112, %v4037
      %v4114 = vadd.f32 %v4113, %v4039
      %v4115 = vadd.f32 %v4114, %v4041
      %v4116 = vadd.f32 %v4115, %v4043
      %v4117 = vadd.f32 %v4116, %v4045
      %v4118 = vadd.f32 %v4117, %v4047
      %v4119 = vadd.f32 %v4118, %v4049
      %v4120 = vadd.f32 %v4119, %v4051
      %v4121 = vadd.f32 %v4120, %v4053
      %v4122 = vadd.f32 %v4121, %v4055
      %v4123 = vadd.f32 %v4122, %v4057
      %v4124 = vadd.f32 %v4123, %v4059
      %v4125 = vadd.f32 %v4124, %v4061
      %v4126 = vrot.slane %v4125, 4
      %v4127 = vadd.f32 %v4125, %v4126
      %v4128 = vrot.slane %v4127, 2
      %v4129 = vadd.f32 %v4127, %v4128
      %v4130 = vrot.slane %v4129, 1
      %v4131 = vadd.f32 %v4129, %v4130
      %v4132 = vadd.f32 %v3936, %v3938
      %v4133 = vadd.f32 %v4132, %v3940
      %v4134 = vadd.f32 %v4133, %v3942
      %v4135 = vadd.f32 %v4134, %v3944
      %v4136 = vadd.f32 %v4135, %v3946
      %v4137 = vadd.f32 %v4136, %v3948
      %v4138 = vadd.f32 %v4137, %v3950
      %v4139 = vadd.f32 %v4138, %v3952
      %v4140 = vadd.f32 %v4139, %v3954
      %v4141 = vadd.f32 %v4140, %v3956
      %v4142 = vadd.f32 %v4141, %v3958
      %v4143 = vadd.f32 %v4142, %v3960
      %v4144 = vadd.f32 %v4143, %v3962
      %v4145 = vadd.f32 %v4144, %v3964
      %v4146 = vadd.f32 %v4145, %v3966
      %v4147 = vadd.f32 %v4146, %v3968
      %v4148 = vadd.f32 %v4147, %v3970
      %v4149 = vadd.f32 %v4148, %v3972
      %v4150 = vadd.f32 %v4149, %v3974
      %v4151 = vadd.f32 %v4150, %v3976
      %v4152 = vadd.f32 %v4151, %v3978
      %v4153 = vadd.f32 %v4152, %v3980
      %v4154 = vadd.f32 %v4153, %v3982
      %v4155 = vadd.f32 %v4154, %v3984
      %v4156 = vadd.f32 %v4155, %v3986
      %v4157 = vadd.f32 %v4156, %v3988
      %v4158 = vadd.f32 %v4157, %v3990
      %v4159 = vadd.f32 %v4158, %v3992
      %v4160 = vadd.f32 %v4159, %v3994
      %v4161 = vadd.f32 %v4160, %v3996
      %v4162 = vadd.f32 %v4161, %v3998
      %v4163 = vadd.f32 %v4162, %v4000
      %v4164 = vadd.f32 %v4163, %v4002
      %v4165 = vadd.f32 %v4164, %v4004
      %v4166 = vadd.f32 %v4165, %v4006
      %v4167 = vadd.f32 %v4166, %v4008
      %v4168 = vadd.f32 %v4167, %v4010
      %v4169 = vadd.f32 %v4168, %v4012
      %v4170 = vadd.f32 %v4169, %v4014
      %v4171 = vadd.f32 %v4170, %v4016
      %v4172 = vadd.f32 %v4171, %v4018
      %v4173 = vadd.f32 %v4172, %v4020
      %v4174 = vadd.f32 %v4173, %v4022
      %v4175 = vadd.f32 %v4174, %v4024
      %v4176 = vadd.f32 %v4175, %v4026
      %v4177 = vadd.f32 %v4176, %v4028
      %v4178 = vadd.f32 %v4177, %v4030
      %v4179 = vadd.f32 %v4178, %v4032
      %v4180 = vadd.f32 %v4179, %v4034
      %v4181 = vadd.f32 %v4180, %v4036
      %v4182 = vadd.f32 %v4181, %v4038
      %v4183 = vadd.f32 %v4182, %v4040
      %v4184 = vadd.f32 %v4183, %v4042
      %v4185 = vadd.f32 %v4184, %v4044
      %v4186 = vadd.f32 %v4185, %v4046
      %v4187 = vadd.f32 %v4186, %v4048
      %v4188 = vadd.f32 %v4187, %v4050
      %v4189 = vadd.f32 %v4188, %v4052
      %v4190 = vadd.f32 %v4189, %v4054
      %v4191 = vadd.f32 %v4190, %v4056
      %v4192 = vadd.f32 %v4191, %v4058
      %v4193 = vadd.f32 %v4192, %v4060
      %v4194 = vadd.f32 %v4193, %v4062
      %v4195 = vrot.slane %v4194, 4
      %v4196 = vadd.f32 %v4194, %v4195
      %v4197 = vrot.slane %v4196, 2
      %v4198 = vadd.f32 %v4196, %v4197
      %v4199 = vrot.slane %v4198, 1
      %v4200 = vadd.f32 %v4198, %v4199
      %s4201 = sld [smem:[#allocation2]]
      %v4202 = vstv %s4201
      %v4203 = vadd.f32 %v4131, %v4202
      %v4204 = vadd.f32 %v4200, %v4202
      %v4207 = vcombine.low %v4203, %v4204
      %v4209 = vunpack.c.l.s4 1966171168
      %v4210 = vunpack.c.0.s8 %v4209
      %v4211 = vlaneseq
      %v4212 = vshrl.u32 %v4211, 7
      %v4213 = vsub.s32 %v4210, %v4212
      %v4214 = vrot.slane %v4207, %v4213
      %v4216 = vunpack.c.l.s4 1966171168
      %v4217 = vunpack.c.0.s8 %v4216
      %v4218 = vlaneseq
      %v4219 = vshrl.u32 %v4218, 7
      %v4220 = vsub.s32 %v4217, %v4219
      %v4221 = vrot.slane %v4214, %v4220
      %v4223 = vlaneseq
      %vm4224 = vcmp.ge.s32.totalorder %v4223, 0
      %vm4225 = vcmp.lt.s32.totalorder %v4223, 256
      %vm4226 = vmand %vm4224, %vm4225
      %4227 = vst.msk [vmem:[%s279] sm:$0x3] %vm4226, %v4221
      %s4228 = smul.u32 2, %s19
      %p4229 = scmp.lt.s32.totalorder %s4228, 3
      %s4230 = scalar_select %p4229, %s4228, 3
      %s4231 = scalar_lea.vmem %s7, %s4230
      // Predicated region
      $region49: #{mlp_forward.1} parent=47 // pred_check
        %p4232 = pneg %p189
      $region50: #{mlp_forward.1} parent=47 // pred_check_branch
        %4234 = sbr.rel (%p4232) target = $region52
      $region51: #{mlp_forward.1} parent=47 // pred_region
        %s4235 = smul.u32 2, %s19
      $region52: #{mlp_forward.1} parent=47 // pred_fallthru
        _
    $region48: #{mlp_forward.1} parent=5 // pred_fallthru
      _
    %p4236 = scmp.le.s32.totalorder 2, %s14
    // Predicated region
    $region53: #{mlp_forward.1} parent=5 // pred_check
      %p4237 = pneg %p4236
    $region54: #{mlp_forward.1} parent=5 // pred_check_branch
      %4239 = sbr.rel (%p4237) target = $region56
    $region55: #{mlp_forward.1} parent=5 // pred_region
      %s4240 = ssub.s32 %s14, 2
      // Predicated region
      $region57: #{mlp_forward.1} parent=55 // pred_check
        %p4241 = pneg %p195
      $region58: #{mlp_forward.1} parent=55 // pred_check_branch
        %4243 = sbr.rel (%p4241) target = $region60
      $region59: #{mlp_forward.1} parent=55 // pred_region
        %s4244 = smul.u32 2, %s20
        %p4245 = scmp.lt.s32.totalorder %s4244, 3
        %s4246 = scalar_select %p4245, %s4244, 3
        %s4247 = scalar_lea.vmem %s7, %s4246
      $region60: #{mlp_forward.1} parent=55 // pred_fallthru
        _
    $region56: #{mlp_forward.1} parent=5 // pred_fallthru
      _
  $region6: #{mlp_forward.1} parent=0 // loop_footer
    %s18 = sadd.s32 1, %s14
  $region7: #{mlp_forward.1} parent=0 // loop_footer_branch
    %13 = sbr.rel target = $region3
  $region8: #{mlp_forward.1} parent=0 // loop_exit
    _

</llo_original>
